<compile_context>
chip_gen: v7x
topology: tpu7x:2x2x1
jax: 0.10.0
libtpu: 0.0.40
codegen_flags: <defaults>
</compile_context>

<pallas_src>
import jax
import jax.numpy as jnp
from jax.experimental import pallas as pl
from jax.experimental.pallas import tpu as pltpu

MAX_CHARS  = 50
CHAR_VOCAB = 262
CHAR_DIM   = 16
FILTERS    = ((1, 8), (2, 8), (3, 16), (4, 32))   # (kernel width, num filters)
N_FILTERS  = sum(n for _, n in FILTERS)           # 64
MAX_WIDTH  = max(w for w, _ in FILTERS)           # 4
N_HIGHWAY  = 1
PROJ_DIM   = 32                                   # per-direction LSTM dim
OUT_DIM    = 2 * PROJ_DIM                         # ELMo representation dim (64)

# Packed / padded (lane-dense) sizes.
NPOS    = ((MAX_CHARS + 7) // 8) * 8              # 56 conv positions (8-aligned)
CONV_K  = MAX_WIDTH * CHAR_DIM                    # 64  im2col contraction dim
CONV_N  = 128                                     # filters padded 64 -> 128 lanes
HW_K    = 128                                     # highway input padded 64 -> 128
HW_N    = 256                                     # [proj(64) 0(64) gate(64) 0(64)]
GATE_N  = 4 * OUT_DIM                             # 256 stacked fwd/bwd LSTM gates
SIG_N   = 3 * OUT_DIM                             # 192 sigmoid lanes ([i f o])
OUT_PAD = 128                                     # lane-dense output row width
NEG_INF = -1e30
BB_CAP  = 32   # batch-block cap; sized for v7x's 64 MiB VMEM, raise on v5e/v6e


# ---------------------------------------------------------------------------
# Fused kernel factory: char-CNN -> highway -> projection -> 2-layer biLSTM
# -> ScalarMix.  One grid step == BB sequences, token rows (t, b)-ordered.
# ---------------------------------------------------------------------------
def _make_kernel(T, BB):
    M = T * BB   # token rows per grid step

    def time_reverse(x):
        # per-sequence time reversal of a (T*BB, C) tensor ((t, b)-ordered rows)
        return jnp.concatenate(
            [x[s * BB:(s + 1) * BB] for s in reversed(range(T))], axis=0)

    def kernel(win_ref, mask_ref, convw_ref, convb_ref,
               hww_ref, hwb_ref, projw_ref, projb_ref,
               wx_ref, wh_ref, lstmb_ref, mix_ref,
               out_ref,
               xg_ref, hp1_ref, hp2_ref):
        # ---- char CNN: single im2col matmul over all filter widths ----
        conv = jnp.dot(win_ref[...], convw_ref[...],
                       preferred_element_type=jnp.float32)        # (M*NPOS, 128) f32
        conv = conv.reshape(M, NPOS, CONV_N) + mask_ref[...]      # invalid pos -> -1e30
        token = jnp.max(conv, axis=1) + convb_ref[...]            # max-pool over chars
        token = jnp.maximum(token, 0.0)                           # relu; lanes 64:128 == 0

        # ---- highway layers (padded lanes provably stay 0) ----
        for hw_i in range(N_HIGHWAY):
            hw = jnp.dot(token.astype(jnp.bfloat16), hww_ref[hw_i],
                         preferred_element_type=jnp.float32) + hwb_ref[hw_i]  # (M, 256)
            nonlinear = jnp.maximum(hw[:, 0:HW_K], 0.0)
            gate = jax.nn.sigmoid(hw[:, HW_K:HW_N])
            token = gate * token + (1.0 - gate) * nonlinear

        # ---- projection, duplicated into [proj | proj]: feeds both LSTM
        #      directions and is exactly the layer-0 ScalarMix representation.
        tok_dup = jnp.dot(token.astype(jnp.bfloat16), projw_ref[...],
                          preferred_element_type=jnp.float32) + projb_ref[...]  # (M, 64)

        # fwd/bwd column selector: each 64-lane gate group is [fwd(32) | bwd(32)]
        lane256 = jax.lax.broadcasted_iota(jnp.int32, (1, GATE_N), 1)
        fwd_cols = (lane256 % OUT_DIM) < PROJ_DIM

        def run_layer(wh_l, hp_ref_):
            """Stacked fwd+bwd recurrence; xg_ref holds the bias-included input
            gate contributions in processing order (rows s*BB : (s+1)*BB)."""
            def step(s, carry):
                h, c = carry
                xg = xg_ref[pl.ds(s * BB, BB), :]
                gates = xg + jnp.dot(h.astype(jnp.bfloat16), wh_l,
                                     preferred_element_type=jnp.float32)   # (BB, 256)
                ifo = jax.nn.sigmoid(gates[:, 0:SIG_N])      # one sigmoid: [i f o]
                g = jnp.tanh(gates[:, SIG_N:GATE_N])         # one tanh: [g]
                i_g = ifo[:, 0:OUT_DIM]
                f_g = ifo[:, OUT_DIM:2 * OUT_DIM]
                o_g = ifo[:, 2 * OUT_DIM:3 * OUT_DIM]
                c = f_g * c + i_g * g
                h = o_g * jnp.tanh(c)
                hp_ref_[pl.ds(s * BB, BB), :] = h            # one store per step
                return h, c

            zero = jnp.zeros((BB, OUT_DIM), jnp.float32)     # [h_fwd | h_bwd], f32
            jax.lax.fori_loop(0, T, step, (zero, zero), unroll=True)

        # layer 1: input projection + fwd/bwd time-mix hoisted out of the loop
        xg1 = jnp.dot(tok_dup.astype(jnp.bfloat16), wx_ref[0],
                      preferred_element_type=jnp.float32) + lstmb_ref[0]   # (M, 256)
        xg_ref[...] = jnp.where(fwd_cols, xg1, time_reverse(xg1))
        run_layer(wh_ref[0], hp1_ref)

        # layer 2: stacked [fwd|bwd] hidden store of layer 1 IS layer 2's input
        hp1 = hp1_ref[...]                                                 # (M, 64)
        xg_ref[...] = jnp.dot(hp1.astype(jnp.bfloat16), wx_ref[1],
                              preferred_element_type=jnp.float32) + lstmb_ref[1]
        run_layer(wh_ref[1], hp2_ref)

        # ---- ScalarMix over [dup token layer, biLSTM-1, biLSTM-2]
        #      (gamma already folded into mix weights host-side) ----
        lane64 = jax.lax.broadcasted_iota(jnp.int32, (1, OUT_DIM), 1)
        take_fwd = lane64 < PROJ_DIM
        layer1 = jnp.where(take_fwd, hp1, time_reverse(hp1))
        hp2 = hp2_ref[...]
        layer2 = jnp.where(take_fwd, hp2, time_reverse(hp2))
        mix = mix_ref[0] * tok_dup + mix_ref[1] * layer1 + mix_ref[2] * layer2

        # lane-dense (unmasked) store: pad 64 -> 128 lanes; wrapper slices back.
        out_ref[...] = jnp.concatenate([mix, jnp.zeros_like(mix)], axis=-1)

    return kernel


# ---------------------------------------------------------------------------
# Parameters (deterministic, synthetic) - "natural" layout
# ---------------------------------------------------------------------------
def init_params(key):
    keys = jax.random.split(key, 10)
    p = {}
    p['char_emb'] = 0.1 * jax.random.normal(keys[0], (CHAR_VOCAB, CHAR_DIM),
                                            jnp.float32)
    conv_w, conv_b = [], []
    for i, (width, nf) in enumerate(FILTERS):
        conv_w.append(0.1 * jax.random.normal(keys[1 + i], (width, CHAR_DIM, nf),
                                              jnp.float32))
        conv_b.append(jnp.zeros((1, nf), jnp.float32))
    p['conv_w'], p['conv_b'] = conv_w, conv_b
    p['hw_w'] = 0.1 * jax.random.normal(keys[5],
                                        (N_HIGHWAY, N_FILTERS, 2 * N_FILTERS),
                                        jnp.float32)
    p['hw_b'] = jnp.zeros((N_HIGHWAY, 2 * N_FILTERS), jnp.float32)
    p['proj_w'] = 0.1 * jax.random.normal(keys[6], (N_FILTERS, PROJ_DIM),
                                          jnp.float32)
    p['proj_b'] = jnp.zeros((1, PROJ_DIM), jnp.float32)
    # 4 LSTMs: [fwd layer1, fwd layer2, bwd layer1, bwd layer2], gate order [i f g o]
    p['lstm_wx'] = 0.1 * jax.random.normal(keys[7], (4, PROJ_DIM, 4 * PROJ_DIM),
                                           jnp.float32)
    p['lstm_wh'] = 0.1 * jax.random.normal(keys[8], (4, PROJ_DIM, 4 * PROJ_DIM),
                                           jnp.float32)
    p['lstm_b'] = jnp.zeros((4, 1, 4 * PROJ_DIM), jnp.float32)
    p['mix_scalars'] = jnp.zeros((3,), jnp.float32)     # ScalarMix scalars
    p['mix_gamma'] = jnp.array(1.0, jnp.float32)        # ScalarMix gamma
    return p


# ---------------------------------------------------------------------------
# Pack natural params into lane-dense / block-structured kernel weights
# ---------------------------------------------------------------------------
def _pack_params(p):
    f32, bf16 = jnp.float32, jnp.bfloat16

    # conv: stacked im2col weight (64, 128), bias (1, 128), validity mask (56, 128)
    convw = jnp.zeros((CONV_K, CONV_N), f32)
    convb = jnp.zeros((1, CONV_N), f32)
    mask = jnp.zeros((NPOS, CONV_N), f32)
    off = 0
    for (width, nf), w, b in zip(FILTERS, p['conv_w'], p['conv_b']):
        for k in range(width):
            convw = convw.at[k * CHAR_DIM:(k + 1) * CHAR_DIM, off:off + nf].set(w[k])
        convb = convb.at[:, off:off + nf].set(b)
        valid = MAX_CHARS - width + 1
        mask = mask.at[valid:, off:off + nf].set(NEG_INF)
        off += nf

    # highway: input padded 64->128, output [proj(64) 0(64) gate(64) 0(64)]
    hww = jnp.zeros((N_HIGHWAY, HW_K, HW_N), f32)
    hwb = jnp.zeros((N_HIGHWAY, 1, HW_N), f32)
    hww = hww.at[:, 0:N_FILTERS, 0:N_FILTERS].set(p['hw_w'][:, :, 0:N_FILTERS])
    hww = hww.at[:, 0:N_FILTERS, HW_K:HW_K + N_FILTERS].set(p['hw_w'][:, :, N_FILTERS:])
    hwb = hwb.at[:, 0, 0:N_FILTERS].set(p['hw_b'][:, 0:N_FILTERS])
    hwb = hwb.at[:, 0, HW_K:HW_K + N_FILTERS].set(p['hw_b'][:, N_FILTERS:])

    # final projection duplicated into [proj | proj]
    projw = jnp.zeros((HW_K, OUT_DIM), f32)
    projw = projw.at[0:N_FILTERS, 0:PROJ_DIM].set(p['proj_w'])
    projw = projw.at[0:N_FILTERS, PROJ_DIM:OUT_DIM].set(p['proj_w'])
    projb = jnp.concatenate([p['proj_b'], p['proj_b']], axis=-1)       # (1, 64)

    # bi-LSTM block weights: gate groups packed [i f o | g] (one sigmoid + one
    # tanh in-kernel), each group's columns interleaved [fwd(32) | bwd(32)].
    GATE_PERM = (0, 1, 3, 2)   # packed slot of natural gates [i, f, g, o]

    def block_w(wf, wb):                       # each (PROJ_DIM, 4*PROJ_DIM)
        blk = jnp.zeros((OUT_DIM, GATE_N), f32)
        for gn in range(4):
            gp = GATE_PERM[gn]
            blk = blk.at[0:PROJ_DIM, gp * OUT_DIM:gp * OUT_DIM + PROJ_DIM].set(
                wf[:, gn * PROJ_DIM:(gn + 1) * PROJ_DIM])
            blk = blk.at[PROJ_DIM:OUT_DIM, gp * OUT_DIM + PROJ_DIM:(gp + 1) * OUT_DIM].set(
                wb[:, gn * PROJ_DIM:(gn + 1) * PROJ_DIM])
        return blk

    def block_b(bf_, bb_):                     # each (1, 4*PROJ_DIM)
        blk = jnp.zeros((1, GATE_N), f32)
        for gn in range(4):
            gp = GATE_PERM[gn]
            blk = blk.at[:, gp * OUT_DIM:gp * OUT_DIM + PROJ_DIM].set(
                bf_[:, gn * PROJ_DIM:(gn + 1) * PROJ_DIM])
            blk = blk.at[:, gp * OUT_DIM + PROJ_DIM:(gp + 1) * OUT_DIM].set(
                bb_[:, gn * PROJ_DIM:(gn + 1) * PROJ_DIM])
        return blk

    # natural order: [fwd L1, fwd L2, bwd L1, bwd L2]
    wx = jnp.stack([block_w(p['lstm_wx'][0], p['lstm_wx'][2]),
                    block_w(p['lstm_wx'][1], p['lstm_wx'][3])])
    wh = jnp.stack([block_w(p['lstm_wh'][0], p['lstm_wh'][2]),
                    block_w(p['lstm_wh'][1], p['lstm_wh'][3])])
    lb = jnp.stack([block_b(p['lstm_b'][0], p['lstm_b'][2]),
                    block_b(p['lstm_b'][1], p['lstm_b'][3])])

    # ScalarMix: gamma folded into the softmax weights host-side.
    mix = (p['mix_gamma'] * jax.nn.softmax(p['mix_scalars'])).astype(f32)  # (3,)

    return dict(convw=convw.astype(bf16), convb=convb, mask=mask,
                hww=hww.astype(bf16), hwb=hwb,
                projw=projw.astype(bf16), projb=projb,
                wx=wx.astype(bf16), wh=wh.astype(bf16), lb=lb, mix=mix)


def _choose_block_batch(B, cap=BB_CAP):
    """Largest divisor of B <= cap, preferring >= 2 grid steps (v7x: 2 TCs)."""
    bb = 1
    for d in range(1, min(B, cap) + 1):
        if B % d == 0:
            bb = d
    if B // bb == 1 and B > 1:
        for d in range(bb - 1, 0, -1):
            if B % d == 0 and B // d >= 2:
                bb = d
                break
    return bb


# ---------------------------------------------------------------------------
# Forward wrapper (embedding gather + im2col layout plumbing, then one kernel)
# ---------------------------------------------------------------------------
def elmo_token_embedder_forward(char_ids, params):
    B, T, n_chars = char_ids.shape
    assert n_chars == MAX_CHARS
    pk = _pack_params(params)

    BB = _choose_block_batch(B)
    G = B // BB
    M = T * BB
    assert G * BB == B

    # Character embedding lookup + im2col window construction (layout plumbing).
    emb = params['char_emb'][char_ids]                                  # (B, T, 50, 16)
    emb = jnp.pad(emb, ((0, 0), (0, 0), (0, NPOS + MAX_WIDTH - 1 - MAX_CHARS), (0, 0)))
    windows = jnp.concatenate(
        [emb[:, :, k:k + NPOS, :] for k in range(MAX_WIDTH)], axis=-1)  # (B, T, 56, 64)
    # (t, b)-major row ordering inside each batch block so the per-step
    # recurrent input slice is a contiguous (BB, 256) tile in the kernel.
    windows = (windows.reshape(G, BB, T, NPOS, CONV_K)
                      .transpose(0, 2, 1, 3, 4)
                      .reshape(G, M * NPOS, CONV_K)
                      .astype(jnp.bfloat16))

    def pinned(shape):
        zeros = (0,) * len(shape)
        return pl.BlockSpec(shape, lambda g, _z=zeros: _z)

    flops = (2 * B * T * NPOS * CONV_K * CONV_N
             + 2 * B * T * HW_K * HW_N * N_HIGHWAY
             + 2 * B * T * HW_K * OUT_DIM
             + 2 * 2 * B * T * OUT_DIM * GATE_N            # hoisted input projections
             + 2 * 2 * B * T * OUT_DIM * GATE_N)           # recurrent matmuls
    transcendentals = B * T * (HW_K * N_HIGHWAY + 2 * 5 * OUT_DIM)
    ins = (windows, pk['mask'], pk['convw'], pk['convb'], pk['hww'], pk['hwb'],
           pk['projw'], pk['projb'], pk['wx'], pk['wh'], pk['lb'], pk['mix'])
    bytes_accessed = (sum(int(x.size) * x.dtype.itemsize for x in ins)
                      + B * T * OUT_PAD * 4)

    out = pl.pallas_call(
        _make_kernel(T, BB),
        out_shape=jax.ShapeDtypeStruct((G, M, OUT_PAD), jnp.float32),
        grid=(G,),
        in_specs=[
            pl.BlockSpec((None, M * NPOS, CONV_K), lambda g: (g, 0, 0)),  # im2col windows
            pinned((NPOS, CONV_N)),                                       # conv valid mask
            pinned((CONV_K, CONV_N)),                                     # stacked conv W
            pinned((1, CONV_N)),                                          # conv bias
            pinned((N_HIGHWAY, HW_K, HW_N)),                              # highway W
            pinned((N_HIGHWAY, 1, HW_N)),                                 # highway b
            pinned((HW_K, OUT_DIM)),                                      # proj W (dup)
            pinned((1, OUT_DIM)),                                         # proj b (dup)
            pinned((2, OUT_DIM, GATE_N)),                                 # LSTM Wx blocks
            pinned((2, OUT_DIM, GATE_N)),                                 # LSTM Wh blocks
            pinned((2, 1, GATE_N)),                                       # LSTM biases
            pl.BlockSpec(memory_space=pltpu.MemorySpace.SMEM),            # ScalarMix weights
        ],
        out_specs=pl.BlockSpec((None, M, OUT_PAD), lambda g: (g, 0, 0)),
        scratch_shapes=[pltpu.VMEM((M, GATE_N), jnp.float32),   # xg (shared by layers)
                        pltpu.VMEM((M, OUT_DIM), jnp.float32),  # layer-1 hidden store
                        pltpu.VMEM((M, OUT_DIM), jnp.float32)], # layer-2 hidden store
        compiler_params=pltpu.CompilerParams(
            dimension_semantics=("parallel",),
            vmem_limit_bytes=32 * 1024 * 1024),
        cost_estimate=pl.CostEstimate(flops=flops,
                                      transcendentals=transcendentals,
                                      bytes_accessed=bytes_accessed),
    )(*ins)

    # Undo the (t, b) block ordering; self._projection is None, dropout=0.0.
    out = (out.reshape(G, T, BB, OUT_PAD)
              .transpose(0, 2, 1, 3)
              .reshape(B, T, OUT_PAD))
    return out[:, :, :OUT_DIM]


if __name__ == "__main__":
    key = jax.random.PRNGKey(0)
    pkey, ikey = jax.random.split(key)
    params = init_params(pkey)

    B, T = 4, 8   # small, but exercises batch-blocking (BB=2) and 2 grid steps
    char_ids = jax.random.randint(ikey, (B, T, MAX_CHARS), 0, CHAR_VOCAB,
                                  dtype=jnp.int32)

    fwd = jax.jit(elmo_token_embedder_forward)
    out = fwd(char_ids, params)
    out = jax.block_until_ready(out)

    assert out.shape == (B, T, OUT_DIM), out.shape
    assert bool(jnp.isfinite(out).all())
    print("KERNEL_OK")
</pallas_src>

<mosaic_0001>
module attributes {stable_mosaic.version = 11 : i64} {
  func.func @kernel(%arg0: i32, %arg1: memref<1x896x64xbf16, #tpu.memory_space<vmem>>, %arg2: memref<56x128xf32, #tpu.memory_space<vmem>>, %arg3: memref<64x128xbf16, #tpu.memory_space<vmem>>, %arg4: memref<1x128xf32, #tpu.memory_space<vmem>>, %arg5: memref<1x128x256xbf16, #tpu.memory_space<vmem>>, %arg6: memref<1x1x256xf32, #tpu.memory_space<vmem>>, %arg7: memref<128x64xbf16, #tpu.memory_space<vmem>>, %arg8: memref<1x64xf32, #tpu.memory_space<vmem>>, %arg9: memref<2x64x256xbf16, #tpu.memory_space<vmem>>, %arg10: memref<2x64x256xbf16, #tpu.memory_space<vmem>>, %arg11: memref<2x1x256xf32, #tpu.memory_space<vmem>>, %arg12: memref<3xf32, #tpu.memory_space<smem>>, %arg13: memref<1x16x128xf32, #tpu.memory_space<vmem>>, %arg14: memref<16x256xf32, #tpu.memory_space<vmem>>, %arg15: memref<16x64xf32, #tpu.memory_space<vmem>>, %arg16: memref<16x64xf32, #tpu.memory_space<vmem>>) attributes {dimension_semantics = [#tpu.dimension_semantics<parallel>], iteration_bounds = array<i64: 2>, scalar_prefetch = 0 : i64, scratch_operands = 3 : i64, tpu.core_type = #tpu.core_type<tc>, window_params = [{transform_indices = @transform_0, window_bounds = array<i64: 1, 896, 64>}, {pipeline_mode = #tpu.pipeline_mode<synchronous>, transform_indices = @transform_1, window_bounds = array<i64: 56, 128>}, {pipeline_mode = #tpu.pipeline_mode<synchronous>, transform_indices = @transform_2, window_bounds = array<i64: 64, 128>}, {pipeline_mode = #tpu.pipeline_mode<synchronous>, transform_indices = @transform_3, window_bounds = array<i64: 1, 128>}, {pipeline_mode = #tpu.pipeline_mode<synchronous>, transform_indices = @transform_4, window_bounds = array<i64: 1, 128, 256>}, {pipeline_mode = #tpu.pipeline_mode<synchronous>, transform_indices = @transform_5, window_bounds = array<i64: 1, 1, 256>}, {pipeline_mode = #tpu.pipeline_mode<synchronous>, transform_indices = @transform_6, window_bounds = array<i64: 128, 64>}, {pipeline_mode = #tpu.pipeline_mode<synchronous>, transform_indices = @transform_7, window_bounds = array<i64: 1, 64>}, {pipeline_mode = #tpu.pipeline_mode<synchronous>, transform_indices = @transform_8, window_bounds = array<i64: 2, 64, 256>}, {pipeline_mode = #tpu.pipeline_mode<synchronous>, transform_indices = @transform_9, window_bounds = array<i64: 2, 64, 256>}, {pipeline_mode = #tpu.pipeline_mode<synchronous>, transform_indices = @transform_10, window_bounds = array<i64: 2, 1, 256>}, {transform_indices = @transform_11, window_bounds = array<i64: 3>}, {transform_indices = @transform_12, window_bounds = array<i64: 1, 16, 128>}]} {
    %c0 = arith.constant 0 : index
    %c0_0 = arith.constant 0 : index
    %c0_1 = arith.constant 0 : index
    %0 = vector.load %arg1[%c0, %c0_0, %c0_1] : memref<1x896x64xbf16, #tpu.memory_space<vmem>>, vector<1x896x64xbf16>
    %1 = vector.shape_cast %0 : vector<1x896x64xbf16> to vector<896x64xbf16>
    %c0_2 = arith.constant 0 : index
    %c0_3 = arith.constant 0 : index
    %2 = vector.load %arg3[%c0_2, %c0_3] : memref<64x128xbf16, #tpu.memory_space<vmem>>, vector<64x128xbf16>
    %cst = arith.constant dense<0.000000e+00> : vector<896x128xf32>
    %3 = tpu.matmul %1, %2, %cst {dimension_numbers = #tpu.dot_dimension_numbers<[1], [0], [0], [1], [0, 0, 1, 1], [], []>} : vector<896x64xbf16>, vector<64x128xbf16>, vector<896x128xf32> -> vector<896x128xf32>
    %4 = vector.shape_cast %3 : vector<896x128xf32> to vector<16x56x128xf32>
    %c0_4 = arith.constant 0 : index
    %c0_5 = arith.constant 0 : index
    %5 = vector.load %arg2[%c0_4, %c0_5] : memref<56x128xf32, #tpu.memory_space<vmem>>, vector<56x128xf32>
    %6 = vector.shape_cast %5 : vector<56x128xf32> to vector<1x56x128xf32>
    %7 = vector.broadcast %6 : vector<1x56x128xf32> to vector<16x56x128xf32>
    %8 = arith.addf %4, %7 : vector<16x56x128xf32>
    %cst_6 = arith.constant dense<0xFF800000> : vector<16x128xf32>
    %9 = vector.multi_reduction <maximumf>, %8, %cst_6 [1] : vector<16x56x128xf32> to vector<16x128xf32>
    %c0_7 = arith.constant 0 : index
    %c0_8 = arith.constant 0 : index
    %10 = vector.load %arg4[%c0_7, %c0_8] : memref<1x128xf32, #tpu.memory_space<vmem>>, vector<1x128xf32>
    %11 = vector.broadcast %10 : vector<1x128xf32> to vector<16x128xf32>
    %12 = arith.addf %9, %11 : vector<16x128xf32>
    %cst_9 = arith.constant 0.000000e+00 : f32
    %13 = vector.broadcast %cst_9 : f32 to vector<16x128xf32>
    %14 = arith.maximumf %12, %13 : vector<16x128xf32>
    %15 = arith.truncf %14 : vector<16x128xf32> to vector<16x128xbf16>
    %c0_10 = arith.constant 0 : index
    %c0_11 = arith.constant 0 : index
    %c0_12 = arith.constant 0 : index
    %16 = vector.load %arg5[%c0_10, %c0_11, %c0_12] : memref<1x128x256xbf16, #tpu.memory_space<vmem>>, vector<1x128x256xbf16>
    %17 = vector.shape_cast %16 : vector<1x128x256xbf16> to vector<128x256xbf16>
    %cst_13 = arith.constant dense<0.000000e+00> : vector<16x256xf32>
    %18 = tpu.matmul %15, %17, %cst_13 {dimension_numbers = #tpu.dot_dimension_numbers<[1], [0], [0], [1], [0, 0, 1, 1], [], []>} : vector<16x128xbf16>, vector<128x256xbf16>, vector<16x256xf32> -> vector<16x256xf32>
    %c0_14 = arith.constant 0 : index
    %c0_15 = arith.constant 0 : index
    %c0_16 = arith.constant 0 : index
    %19 = vector.load %arg6[%c0_14, %c0_15, %c0_16] : memref<1x1x256xf32, #tpu.memory_space<vmem>>, vector<1x1x256xf32>
    %20 = vector.shape_cast %19 : vector<1x1x256xf32> to vector<1x256xf32>
    %21 = vector.broadcast %20 : vector<1x256xf32> to vector<16x256xf32>
    %22 = arith.addf %18, %21 : vector<16x256xf32>
    %23 = vector.extract_strided_slice %22 {offsets = [0, 0], sizes = [16, 128], strides = [1, 1]} : vector<16x256xf32> to vector<16x128xf32>
    %cst_17 = arith.constant 0.000000e+00 : f32
    %24 = vector.broadcast %cst_17 : f32 to vector<16x128xf32>
    %25 = arith.maximumf %23, %24 : vector<16x128xf32>
    %26 = vector.extract_strided_slice %22 {offsets = [0, 128], sizes = [16, 128], strides = [1, 1]} : vector<16x256xf32> to vector<16x128xf32>
    %27 = arith.negf %26 : vector<16x128xf32>
    %28 = math.exp %27 : vector<16x128xf32>
    %cst_18 = arith.constant 1.000000e+00 : f32
    %29 = vector.broadcast %cst_18 : f32 to vector<16x128xf32>
    %30 = arith.addf %29, %28 : vector<16x128xf32>
    %31 = arith.divf %29, %30 : vector<16x128xf32>
    %32 = arith.mulf %31, %14 : vector<16x128xf32>
    %cst_19 = arith.constant 1.000000e+00 : f32
    %33 = vector.broadcast %cst_19 : f32 to vector<16x128xf32>
    %34 = arith.subf %33, %31 : vector<16x128xf32>
    %35 = arith.mulf %34, %25 : vector<16x128xf32>
    %36 = arith.addf %32, %35 : vector<16x128xf32>
    %37 = arith.truncf %36 : vector<16x128xf32> to vector<16x128xbf16>
    %c0_20 = arith.constant 0 : index
    %c0_21 = arith.constant 0 : index
    %38 = vector.load %arg7[%c0_20, %c0_21] : memref<128x64xbf16, #tpu.memory_space<vmem>>, vector<128x64xbf16>
    %cst_22 = arith.constant dense<0.000000e+00> : vector<16x64xf32>
    %39 = tpu.matmul %37, %38, %cst_22 {dimension_numbers = #tpu.dot_dimension_numbers<[1], [0], [0], [1], [0, 0, 1, 1], [], []>} : vector<16x128xbf16>, vector<128x64xbf16>, vector<16x64xf32> -> vector<16x64xf32>
    %c0_23 = arith.constant 0 : index
    %c0_24 = arith.constant 0 : index
    %40 = vector.load %arg8[%c0_23, %c0_24] : memref<1x64xf32, #tpu.memory_space<vmem>>, vector<1x64xf32>
    %41 = vector.broadcast %40 : vector<1x64xf32> to vector<16x64xf32>
    %42 = arith.addf %39, %41 : vector<16x64xf32>
    %43 = tpu.iota {dimensions = array<i32: 1>} : vector<1x256xi32>
    %c64_i32 = arith.constant 64 : i32
    %c0_i32 = arith.constant 0 : i32
    %44 = arith.cmpi eq, %c64_i32, %c0_i32 : i32
    %c1_i32 = arith.constant 1 : i32
    %45 = arith.select %44, %c1_i32, %c64_i32 : i32
    %46 = vector.broadcast %45 : i32 to vector<1x256xi32>
    %47 = arith.remsi %43, %46 : vector<1x256xi32>
    %c0_i32_25 = arith.constant 0 : i32
    %48 = vector.broadcast %c0_i32_25 : i32 to vector<1x256xi32>
    %49 = arith.cmpi ne, %47, %48 : vector<1x256xi32>
    %c0_i32_26 = arith.constant 0 : i32
    %50 = vector.broadcast %c0_i32_26 : i32 to vector<1x256xi32>
    %51 = arith.cmpi slt, %47, %50 : vector<1x256xi32>
    %c0_i32_27 = arith.constant 0 : i32
    %52 = arith.cmpi slt, %45, %c0_i32_27 : i32
    %53 = vector.broadcast %52 : i1 to vector<1x256xi1>
    %54 = vector.broadcast %53 : vector<1x256xi1> to vector<1x256xi1>
    %55 = arith.xori %51, %54 : vector<1x256xi1>
    %56 = arith.andi %55, %49 : vector<1x256xi1>
    %57 = vector.broadcast %45 : i32 to vector<1x256xi32>
    %58 = arith.addi %47, %57 : vector<1x256xi32>
    %59 = arith.select %56, %58, %47 : vector<1x256xi1>, vector<1x256xi32>
    %c32_i32 = arith.constant 32 : i32
    %60 = vector.broadcast %c32_i32 : i32 to vector<1x256xi32>
    %61 = arith.cmpi slt, %59, %60 : vector<1x256xi32>
    %62 = arith.truncf %42 : vector<16x64xf32> to vector<16x64xbf16>
    %c0_28 = arith.constant 0 : index
    %c0_29 = arith.constant 0 : index
    %c0_30 = arith.constant 0 : index
    %63 = vector.load %arg9[%c0_28, %c0_29, %c0_30] : memref<2x64x256xbf16, #tpu.memory_space<vmem>>, vector<1x64x256xbf16>
    %64 = vector.shape_cast %63 : vector<1x64x256xbf16> to vector<64x256xbf16>
    %cst_31 = arith.constant dense<0.000000e+00> : vector<16x256xf32>
    %65 = tpu.matmul %62, %64, %cst_31 {dimension_numbers = #tpu.dot_dimension_numbers<[1], [0], [0], [1], [0, 0, 1, 1], [], []>} : vector<16x64xbf16>, vector<64x256xbf16>, vector<16x256xf32> -> vector<16x256xf32>
    %c0_32 = arith.constant 0 : index
    %c0_33 = arith.constant 0 : index
    %c0_34 = arith.constant 0 : index
    %66 = vector.load %arg11[%c0_32, %c0_33, %c0_34] : memref<2x1x256xf32, #tpu.memory_space<vmem>>, vector<1x1x256xf32>
    %67 = vector.shape_cast %66 : vector<1x1x256xf32> to vector<1x256xf32>
    %68 = vector.broadcast %67 : vector<1x256xf32> to vector<16x256xf32>
    %69 = arith.addf %65, %68 : vector<16x256xf32>
    %70 = vector.extract_strided_slice %69 {offsets = [14, 0], sizes = [2, 256], strides = [1, 1]} : vector<16x256xf32> to vector<2x256xf32>
    %71 = vector.extract_strided_slice %69 {offsets = [12, 0], sizes = [2, 256], strides = [1, 1]} : vector<16x256xf32> to vector<2x256xf32>
    %72 = vector.extract_strided_slice %69 {offsets = [10, 0], sizes = [2, 256], strides = [1, 1]} : vector<16x256xf32> to vector<2x256xf32>
    %73 = vector.extract_strided_slice %69 {offsets = [8, 0], sizes = [2, 256], strides = [1, 1]} : vector<16x256xf32> to vector<2x256xf32>
    %74 = vector.extract_strided_slice %69 {offsets = [6, 0], sizes = [2, 256], strides = [1, 1]} : vector<16x256xf32> to vector<2x256xf32>
    %75 = vector.extract_strided_slice %69 {offsets = [4, 0], sizes = [2, 256], strides = [1, 1]} : vector<16x256xf32> to vector<2x256xf32>
    %76 = vector.extract_strided_slice %69 {offsets = [2, 0], sizes = [2, 256], strides = [1, 1]} : vector<16x256xf32> to vector<2x256xf32>
    %77 = vector.extract_strided_slice %69 {offsets = [0, 0], sizes = [2, 256], strides = [1, 1]} : vector<16x256xf32> to vector<2x256xf32>
    %78 = tpu.concatenate %70, %71, %72, %73, %74, %75, %76, %77 in 0 : vector<2x256xf32>, vector<2x256xf32>, vector<2x256xf32>, vector<2x256xf32>, vector<2x256xf32>, vector<2x256xf32>, vector<2x256xf32>, vector<2x256xf32> -> vector<16x256xf32>
    %79 = vector.shape_cast %61 : vector<1x256xi1> to vector<1x256xi1>
    %80 = vector.broadcast %79 : vector<1x256xi1> to vector<16x256xi1>
    %81 = arith.select %80, %69, %78 : vector<16x256xi1>, vector<16x256xf32>
    %c0_35 = arith.constant 0 : index
    %c0_36 = arith.constant 0 : index
    %82 = vector.load %arg14[%c0_35, %c0_36] : memref<16x256xf32, #tpu.memory_space<vmem>>, vector<16x256xf32>
    tpu.vector_store %arg14[%c0_35, %c0_36], %81 {strides = array<i32>} : memref<16x256xf32, #tpu.memory_space<vmem>>, vector<16x256xf32>,
    %c0_37 = arith.constant 0 : index
    %c0_38 = arith.constant 0 : index
    %c0_39 = arith.constant 0 : index
    %83 = vector.load %arg10[%c0_37, %c0_38, %c0_39] : memref<2x64x256xbf16, #tpu.memory_space<vmem>>, vector<1x64x256xbf16>
    %84 = vector.shape_cast %83 : vector<1x64x256xbf16> to vector<64x256xbf16>
    %cst_40 = arith.constant 0.000000e+00 : f32
    %85 = vector.broadcast %cst_40 : f32 to vector<2x64xf32>
    %c0_i32_41 = arith.constant 0 : i32
    %c2_i32 = arith.constant 2 : i32
    %86 = arith.muli %c0_i32_41, %c2_i32 : i32
    %87 = arith.index_cast %86 : i32 to index
    %c0_42 = arith.constant 0 : index
    %88 = vector.load %arg14[%87, %c0_42] : memref<16x256xf32, #tpu.memory_space<vmem>>, vector<2x256xf32>
    %89 = arith.truncf %85 : vector<2x64xf32> to vector<2x64xbf16>
    %cst_43 = arith.constant dense<0.000000e+00> : vector<2x256xf32>
    %90 = tpu.matmul %89, %84, %cst_43 {dimension_numbers = #tpu.dot_dimension_numbers<[1], [0], [0], [1], [0, 0, 1, 1], [], []>} : vector<2x64xbf16>, vector<64x256xbf16>, vector<2x256xf32> -> vector<2x256xf32>
    %91 = arith.addf %88, %90 : vector<2x256xf32>
    %92 = vector.extract_strided_slice %91 {offsets = [0, 0], sizes = [2, 192], strides = [1, 1]} : vector<2x256xf32> to vector<2x192xf32>
    %93 = arith.negf %92 : vector<2x192xf32>
    %94 = math.exp %93 : vector<2x192xf32>
    %cst_44 = arith.constant 1.000000e+00 : f32
    %95 = vector.broadcast %cst_44 : f32 to vector<2x192xf32>
    %96 = arith.addf %95, %94 : vector<2x192xf32>
    %97 = arith.divf %95, %96 : vector<2x192xf32>
    %98 = vector.extract_strided_slice %91 {offsets = [0, 192], sizes = [2, 64], strides = [1, 1]} : vector<2x256xf32> to vector<2x64xf32>
    %99 = math.tanh %98 : vector<2x64xf32>
    %100 = vector.extract_strided_slice %97 {offsets = [0, 0], sizes = [2, 64], strides = [1, 1]} : vector<2x192xf32> to vector<2x64xf32>
    %101 = vector.extract_strided_slice %97 {offsets = [0, 64], sizes = [2, 64], strides = [1, 1]} : vector<2x192xf32> to vector<2x64xf32>
    %102 = vector.extract_strided_slice %97 {offsets = [0, 128], sizes = [2, 64], strides = [1, 1]} : vector<2x192xf32> to vector<2x64xf32>
    %103 = arith.mulf %101, %85 : vector<2x64xf32>
    %104 = arith.mulf %100, %99 : vector<2x64xf32>
    %105 = arith.addf %103, %104 : vector<2x64xf32>
    %106 = math.tanh %105 : vector<2x64xf32>
    %107 = arith.mulf %102, %106 : vector<2x64xf32>
    %c2_i32_45 = arith.constant 2 : i32
    %108 = arith.muli %c0_i32_41, %c2_i32_45 : i32
    %109 = arith.index_cast %108 : i32 to index
    %c0_46 = arith.constant 0 : index
    %110 = vector.load %arg15[%109, %c0_46] : memref<16x64xf32, #tpu.memory_space<vmem>>, vector<2x64xf32>
    tpu.vector_store %arg15[%109, %c0_46], %107 {strides = array<i32>} : memref<16x64xf32, #tpu.memory_space<vmem>>, vector<2x64xf32>,
    %c1_i32_47 = arith.constant 1 : i32
    %c2_i32_48 = arith.constant 2 : i32
    %111 = arith.muli %c1_i32_47, %c2_i32_48 : i32
    %112 = arith.index_cast %111 : i32 to index
    %c0_49 = arith.constant 0 : index
    %113 = vector.load %arg14[%112, %c0_49] : memref<16x256xf32, #tpu.memory_space<vmem>>, vector<2x256xf32>
    %114 = arith.truncf %107 : vector<2x64xf32> to vector<2x64xbf16>
    %cst_50 = arith.constant dense<0.000000e+00> : vector<2x256xf32>
    %115 = tpu.matmul %114, %84, %cst_50 {dimension_numbers = #tpu.dot_dimension_numbers<[1], [0], [0], [1], [0, 0, 1, 1], [], []>} : vector<2x64xbf16>, vector<64x256xbf16>, vector<2x256xf32> -> vector<2x256xf32>
    %116 = arith.addf %113, %115 : vector<2x256xf32>
    %117 = vector.extract_strided_slice %116 {offsets = [0, 0], sizes = [2, 192], strides = [1, 1]} : vector<2x256xf32> to vector<2x192xf32>
    %118 = arith.negf %117 : vector<2x192xf32>
    %119 = math.exp %118 : vector<2x192xf32>
    %cst_51 = arith.constant 1.000000e+00 : f32
    %120 = vector.broadcast %cst_51 : f32 to vector<2x192xf32>
    %121 = arith.addf %120, %119 : vector<2x192xf32>
    %122 = arith.divf %120, %121 : vector<2x192xf32>
    %123 = vector.extract_strided_slice %116 {offsets = [0, 192], sizes = [2, 64], strides = [1, 1]} : vector<2x256xf32> to vector<2x64xf32>
    %124 = math.tanh %123 : vector<2x64xf32>
    %125 = vector.extract_strided_slice %122 {offsets = [0, 0], sizes = [2, 64], strides = [1, 1]} : vector<2x192xf32> to vector<2x64xf32>
    %126 = vector.extract_strided_slice %122 {offsets = [0, 64], sizes = [2, 64], strides = [1, 1]} : vector<2x192xf32> to vector<2x64xf32>
    %127 = vector.extract_strided_slice %122 {offsets = [0, 128], sizes = [2, 64], strides = [1, 1]} : vector<2x192xf32> to vector<2x64xf32>
    %128 = arith.mulf %126, %105 : vector<2x64xf32>
    %129 = arith.mulf %125, %124 : vector<2x64xf32>
    %130 = arith.addf %128, %129 : vector<2x64xf32>
    %131 = math.tanh %130 : vector<2x64xf32>
    %132 = arith.mulf %127, %131 : vector<2x64xf32>
    %c2_i32_52 = arith.constant 2 : i32
    %133 = arith.muli %c1_i32_47, %c2_i32_52 : i32
    %134 = arith.index_cast %133 : i32 to index
    %c0_53 = arith.constant 0 : index
    %135 = vector.load %arg15[%134, %c0_53] : memref<16x64xf32, #tpu.memory_space<vmem>>, vector<2x64xf32>
    tpu.vector_store %arg15[%134, %c0_53], %132 {strides = array<i32>} : memref<16x64xf32, #tpu.memory_space<vmem>>, vector<2x64xf32>,
    %c2_i32_54 = arith.constant 2 : i32
    %c2_i32_55 = arith.constant 2 : i32
    %136 = arith.muli %c2_i32_54, %c2_i32_55 : i32
    %137 = arith.index_cast %136 : i32 to index
    %c0_56 = arith.constant 0 : index
    %138 = vector.load %arg14[%137, %c0_56] : memref<16x256xf32, #tpu.memory_space<vmem>>, vector<2x256xf32>
    %139 = arith.truncf %132 : vector<2x64xf32> to vector<2x64xbf16>
    %cst_57 = arith.constant dense<0.000000e+00> : vector<2x256xf32>
    %140 = tpu.matmul %139, %84, %cst_57 {dimension_numbers = #tpu.dot_dimension_numbers<[1], [0], [0], [1], [0, 0, 1, 1], [], []>} : vector<2x64xbf16>, vector<64x256xbf16>, vector<2x256xf32> -> vector<2x256xf32>
    %141 = arith.addf %138, %140 : vector<2x256xf32>
    %142 = vector.extract_strided_slice %141 {offsets = [0, 0], sizes = [2, 192], strides = [1, 1]} : vector<2x256xf32> to vector<2x192xf32>
    %143 = arith.negf %142 : vector<2x192xf32>
    %144 = math.exp %143 : vector<2x192xf32>
    %cst_58 = arith.constant 1.000000e+00 : f32
    %145 = vector.broadcast %cst_58 : f32 to vector<2x192xf32>
    %146 = arith.addf %145, %144 : vector<2x192xf32>
    %147 = arith.divf %145, %146 : vector<2x192xf32>
    %148 = vector.extract_strided_slice %141 {offsets = [0, 192], sizes = [2, 64], strides = [1, 1]} : vector<2x256xf32> to vector<2x64xf32>
    %149 = math.tanh %148 : vector<2x64xf32>
    %150 = vector.extract_strided_slice %147 {offsets = [0, 0], sizes = [2, 64], strides = [1, 1]} : vector<2x192xf32> to vector<2x64xf32>
    %151 = vector.extract_strided_slice %147 {offsets = [0, 64], sizes = [2, 64], strides = [1, 1]} : vector<2x192xf32> to vector<2x64xf32>
    %152 = vector.extract_strided_slice %147 {offsets = [0, 128], sizes = [2, 64], strides = [1, 1]} : vector<2x192xf32> to vector<2x64xf32>
    %153 = arith.mulf %151, %130 : vector<2x64xf32>
    %154 = arith.mulf %150, %149 : vector<2x64xf32>
    %155 = arith.addf %153, %154 : vector<2x64xf32>
    %156 = math.tanh %155 : vector<2x64xf32>
    %157 = arith.mulf %152, %156 : vector<2x64xf32>
    %c2_i32_59 = arith.constant 2 : i32
    %158 = arith.muli %c2_i32_54, %c2_i32_59 : i32
    %159 = arith.index_cast %158 : i32 to index
    %c0_60 = arith.constant 0 : index
    %160 = vector.load %arg15[%159, %c0_60] : memref<16x64xf32, #tpu.memory_space<vmem>>, vector<2x64xf32>
    tpu.vector_store %arg15[%159, %c0_60], %157 {strides = array<i32>} : memref<16x64xf32, #tpu.memory_space<vmem>>, vector<2x64xf32>,
    %c3_i32 = arith.constant 3 : i32
    %c2_i32_61 = arith.constant 2 : i32
    %161 = arith.muli %c3_i32, %c2_i32_61 : i32
    %162 = arith.index_cast %161 : i32 to index
    %c0_62 = arith.constant 0 : index
    %163 = vector.load %arg14[%162, %c0_62] : memref<16x256xf32, #tpu.memory_space<vmem>>, vector<2x256xf32>
    %164 = arith.truncf %157 : vector<2x64xf32> to vector<2x64xbf16>
    %cst_63 = arith.constant dense<0.000000e+00> : vector<2x256xf32>
    %165 = tpu.matmul %164, %84, %cst_63 {dimension_numbers = #tpu.dot_dimension_numbers<[1], [0], [0], [1], [0, 0, 1, 1], [], []>} : vector<2x64xbf16>, vector<64x256xbf16>, vector<2x256xf32> -> vector<2x256xf32>
    %166 = arith.addf %163, %165 : vector<2x256xf32>
    %167 = vector.extract_strided_slice %166 {offsets = [0, 0], sizes = [2, 192], strides = [1, 1]} : vector<2x256xf32> to vector<2x192xf32>
    %168 = arith.negf %167 : vector<2x192xf32>
    %169 = math.exp %168 : vector<2x192xf32>
    %cst_64 = arith.constant 1.000000e+00 : f32
    %170 = vector.broadcast %cst_64 : f32 to vector<2x192xf32>
    %171 = arith.addf %170, %169 : vector<2x192xf32>
    %172 = arith.divf %170, %171 : vector<2x192xf32>
    %173 = vector.extract_strided_slice %166 {offsets = [0, 192], sizes = [2, 64], strides = [1, 1]} : vector<2x256xf32> to vector<2x64xf32>
    %174 = math.tanh %173 : vector<2x64xf32>
    %175 = vector.extract_strided_slice %172 {offsets = [0, 0], sizes = [2, 64], strides = [1, 1]} : vector<2x192xf32> to vector<2x64xf32>
    %176 = vector.extract_strided_slice %172 {offsets = [0, 64], sizes = [2, 64], strides = [1, 1]} : vector<2x192xf32> to vector<2x64xf32>
    %177 = vector.extract_strided_slice %172 {offsets = [0, 128], sizes = [2, 64], strides = [1, 1]} : vector<2x192xf32> to vector<2x64xf32>
    %178 = arith.mulf %176, %155 : vector<2x64xf32>
    %179 = arith.mulf %175, %174 : vector<2x64xf32>
    %180 = arith.addf %178, %179 : vector<2x64xf32>
    %181 = math.tanh %180 : vector<2x64xf32>
    %182 = arith.mulf %177, %181 : vector<2x64xf32>
    %c2_i32_65 = arith.constant 2 : i32
    %183 = arith.muli %c3_i32, %c2_i32_65 : i32
    %184 = arith.index_cast %183 : i32 to index
    %c0_66 = arith.constant 0 : index
    %185 = vector.load %arg15[%184, %c0_66] : memref<16x64xf32, #tpu.memory_space<vmem>>, vector<2x64xf32>
    tpu.vector_store %arg15[%184, %c0_66], %182 {strides = array<i32>} : memref<16x64xf32, #tpu.memory_space<vmem>>, vector<2x64xf32>,
    %c4_i32 = arith.constant 4 : i32
    %c2_i32_67 = arith.constant 2 : i32
    %186 = arith.muli %c4_i32, %c2_i32_67 : i32
    %187 = arith.index_cast %186 : i32 to index
    %c0_68 = arith.constant 0 : index
    %188 = vector.load %arg14[%187, %c0_68] : memref<16x256xf32, #tpu.memory_space<vmem>>, vector<2x256xf32>
    %189 = arith.truncf %182 : vector<2x64xf32> to vector<2x64xbf16>
    %cst_69 = arith.constant dense<0.000000e+00> : vector<2x256xf32>
    %190 = tpu.matmul %189, %84, %cst_69 {dimension_numbers = #tpu.dot_dimension_numbers<[1], [0], [0], [1], [0, 0, 1, 1], [], []>} : vector<2x64xbf16>, vector<64x256xbf16>, vector<2x256xf32> -> vector<2x256xf32>
    %191 = arith.addf %188, %190 : vector<2x256xf32>
    %192 = vector.extract_strided_slice %191 {offsets = [0, 0], sizes = [2, 192], strides = [1, 1]} : vector<2x256xf32> to vector<2x192xf32>
    %193 = arith.negf %192 : vector<2x192xf32>
    %194 = math.exp %193 : vector<2x192xf32>
    %cst_70 = arith.constant 1.000000e+00 : f32
    %195 = vector.broadcast %cst_70 : f32 to vector<2x192xf32>
    %196 = arith.addf %195, %194 : vector<2x192xf32>
    %197 = arith.divf %195, %196 : vector<2x192xf32>
    %198 = vector.extract_strided_slice %191 {offsets = [0, 192], sizes = [2, 64], strides = [1, 1]} : vector<2x256xf32> to vector<2x64xf32>
    %199 = math.tanh %198 : vector<2x64xf32>
    %200 = vector.extract_strided_slice %197 {offsets = [0, 0], sizes = [2, 64], strides = [1, 1]} : vector<2x192xf32> to vector<2x64xf32>
    %201 = vector.extract_strided_slice %197 {offsets = [0, 64], sizes = [2, 64], strides = [1, 1]} : vector<2x192xf32> to vector<2x64xf32>
    %202 = vector.extract_strided_slice %197 {offsets = [0, 128], sizes = [2, 64], strides = [1, 1]} : vector<2x192xf32> to vector<2x64xf32>
    %203 = arith.mulf %201, %180 : vector<2x64xf32>
    %204 = arith.mulf %200, %199 : vector<2x64xf32>
    %205 = arith.addf %203, %204 : vector<2x64xf32>
    %206 = math.tanh %205 : vector<2x64xf32>
    %207 = arith.mulf %202, %206 : vector<2x64xf32>
    %c2_i32_71 = arith.constant 2 : i32
    %208 = arith.muli %c4_i32, %c2_i32_71 : i32
    %209 = arith.index_cast %208 : i32 to index
    %c0_72 = arith.constant 0 : index
    %210 = vector.load %arg15[%209, %c0_72] : memref<16x64xf32, #tpu.memory_space<vmem>>, vector<2x64xf32>
    tpu.vector_store %arg15[%209, %c0_72], %207 {strides = array<i32>} : memref<16x64xf32, #tpu.memory_space<vmem>>, vector<2x64xf32>,
    %c5_i32 = arith.constant 5 : i32
    %c2_i32_73 = arith.constant 2 : i32
    %211 = arith.muli %c5_i32, %c2_i32_73 : i32
    %212 = arith.index_cast %211 : i32 to index
    %c0_74 = arith.constant 0 : index
    %213 = vector.load %arg14[%212, %c0_74] : memref<16x256xf32, #tpu.memory_space<vmem>>, vector<2x256xf32>
    %214 = arith.truncf %207 : vector<2x64xf32> to vector<2x64xbf16>
    %cst_75 = arith.constant dense<0.000000e+00> : vector<2x256xf32>
    %215 = tpu.matmul %214, %84, %cst_75 {dimension_numbers = #tpu.dot_dimension_numbers<[1], [0], [0], [1], [0, 0, 1, 1], [], []>} : vector<2x64xbf16>, vector<64x256xbf16>, vector<2x256xf32> -> vector<2x256xf32>
    %216 = arith.addf %213, %215 : vector<2x256xf32>
    %217 = vector.extract_strided_slice %216 {offsets = [0, 0], sizes = [2, 192], strides = [1, 1]} : vector<2x256xf32> to vector<2x192xf32>
    %218 = arith.negf %217 : vector<2x192xf32>
    %219 = math.exp %218 : vector<2x192xf32>
    %cst_76 = arith.constant 1.000000e+00 : f32
    %220 = vector.broadcast %cst_76 : f32 to vector<2x192xf32>
    %221 = arith.addf %220, %219 : vector<2x192xf32>
    %222 = arith.divf %220, %221 : vector<2x192xf32>
    %223 = vector.extract_strided_slice %216 {offsets = [0, 192], sizes = [2, 64], strides = [1, 1]} : vector<2x256xf32> to vector<2x64xf32>
    %224 = math.tanh %223 : vector<2x64xf32>
    %225 = vector.extract_strided_slice %222 {offsets = [0, 0], sizes = [2, 64], strides = [1, 1]} : vector<2x192xf32> to vector<2x64xf32>
    %226 = vector.extract_strided_slice %222 {offsets = [0, 64], sizes = [2, 64], strides = [1, 1]} : vector<2x192xf32> to vector<2x64xf32>
    %227 = vector.extract_strided_slice %222 {offsets = [0, 128], sizes = [2, 64], strides = [1, 1]} : vector<2x192xf32> to vector<2x64xf32>
    %228 = arith.mulf %226, %205 : vector<2x64xf32>
    %229 = arith.mulf %225, %224 : vector<2x64xf32>
    %230 = arith.addf %228, %229 : vector<2x64xf32>
    %231 = math.tanh %230 : vector<2x64xf32>
    %232 = arith.mulf %227, %231 : vector<2x64xf32>
    %c2_i32_77 = arith.constant 2 : i32
    %233 = arith.muli %c5_i32, %c2_i32_77 : i32
    %234 = arith.index_cast %233 : i32 to index
    %c0_78 = arith.constant 0 : index
    %235 = vector.load %arg15[%234, %c0_78] : memref<16x64xf32, #tpu.memory_space<vmem>>, vector<2x64xf32>
    tpu.vector_store %arg15[%234, %c0_78], %232 {strides = array<i32>} : memref<16x64xf32, #tpu.memory_space<vmem>>, vector<2x64xf32>,
    %c6_i32 = arith.constant 6 : i32
    %c2_i32_79 = arith.constant 2 : i32
    %236 = arith.muli %c6_i32, %c2_i32_79 : i32
    %237 = arith.index_cast %236 : i32 to index
    %c0_80 = arith.constant 0 : index
    %238 = vector.load %arg14[%237, %c0_80] : memref<16x256xf32, #tpu.memory_space<vmem>>, vector<2x256xf32>
    %239 = arith.truncf %232 : vector<2x64xf32> to vector<2x64xbf16>
    %cst_81 = arith.constant dense<0.000000e+00> : vector<2x256xf32>
    %240 = tpu.matmul %239, %84, %cst_81 {dimension_numbers = #tpu.dot_dimension_numbers<[1], [0], [0], [1], [0, 0, 1, 1], [], []>} : vector<2x64xbf16>, vector<64x256xbf16>, vector<2x256xf32> -> vector<2x256xf32>
    %241 = arith.addf %238, %240 : vector<2x256xf32>
    %242 = vector.extract_strided_slice %241 {offsets = [0, 0], sizes = [2, 192], strides = [1, 1]} : vector<2x256xf32> to vector<2x192xf32>
    %243 = arith.negf %242 : vector<2x192xf32>
    %244 = math.exp %243 : vector<2x192xf32>
    %cst_82 = arith.constant 1.000000e+00 : f32
    %245 = vector.broadcast %cst_82 : f32 to vector<2x192xf32>
    %246 = arith.addf %245, %244 : vector<2x192xf32>
    %247 = arith.divf %245, %246 : vector<2x192xf32>
    %248 = vector.extract_strided_slice %241 {offsets = [0, 192], sizes = [2, 64], strides = [1, 1]} : vector<2x256xf32> to vector<2x64xf32>
    %249 = math.tanh %248 : vector<2x64xf32>
    %250 = vector.extract_strided_slice %247 {offsets = [0, 0], sizes = [2, 64], strides = [1, 1]} : vector<2x192xf32> to vector<2x64xf32>
    %251 = vector.extract_strided_slice %247 {offsets = [0, 64], sizes = [2, 64], strides = [1, 1]} : vector<2x192xf32> to vector<2x64xf32>
    %252 = vector.extract_strided_slice %247 {offsets = [0, 128], sizes = [2, 64], strides = [1, 1]} : vector<2x192xf32> to vector<2x64xf32>
    %253 = arith.mulf %251, %230 : vector<2x64xf32>
    %254 = arith.mulf %250, %249 : vector<2x64xf32>
    %255 = arith.addf %253, %254 : vector<2x64xf32>
    %256 = math.tanh %255 : vector<2x64xf32>
    %257 = arith.mulf %252, %256 : vector<2x64xf32>
    %c2_i32_83 = arith.constant 2 : i32
    %258 = arith.muli %c6_i32, %c2_i32_83 : i32
    %259 = arith.index_cast %258 : i32 to index
    %c0_84 = arith.constant 0 : index
    %260 = vector.load %arg15[%259, %c0_84] : memref<16x64xf32, #tpu.memory_space<vmem>>, vector<2x64xf32>
    tpu.vector_store %arg15[%259, %c0_84], %257 {strides = array<i32>} : memref<16x64xf32, #tpu.memory_space<vmem>>, vector<2x64xf32>,
    %c7_i32 = arith.constant 7 : i32
    %c2_i32_85 = arith.constant 2 : i32
    %261 = arith.muli %c7_i32, %c2_i32_85 : i32
    %262 = arith.index_cast %261 : i32 to index
    %c0_86 = arith.constant 0 : index
    %263 = vector.load %arg14[%262, %c0_86] : memref<16x256xf32, #tpu.memory_space<vmem>>, vector<2x256xf32>
    %264 = arith.truncf %257 : vector<2x64xf32> to vector<2x64xbf16>
    %cst_87 = arith.constant dense<0.000000e+00> : vector<2x256xf32>
    %265 = tpu.matmul %264, %84, %cst_87 {dimension_numbers = #tpu.dot_dimension_numbers<[1], [0], [0], [1], [0, 0, 1, 1], [], []>} : vector<2x64xbf16>, vector<64x256xbf16>, vector<2x256xf32> -> vector<2x256xf32>
    %266 = arith.addf %263, %265 : vector<2x256xf32>
    %267 = vector.extract_strided_slice %266 {offsets = [0, 0], sizes = [2, 192], strides = [1, 1]} : vector<2x256xf32> to vector<2x192xf32>
    %268 = arith.negf %267 : vector<2x192xf32>
    %269 = math.exp %268 : vector<2x192xf32>
    %cst_88 = arith.constant 1.000000e+00 : f32
    %270 = vector.broadcast %cst_88 : f32 to vector<2x192xf32>
    %271 = arith.addf %270, %269 : vector<2x192xf32>
    %272 = arith.divf %270, %271 : vector<2x192xf32>
    %273 = vector.extract_strided_slice %266 {offsets = [0, 192], sizes = [2, 64], strides = [1, 1]} : vector<2x256xf32> to vector<2x64xf32>
    %274 = math.tanh %273 : vector<2x64xf32>
    %275 = vector.extract_strided_slice %272 {offsets = [0, 0], sizes = [2, 64], strides = [1, 1]} : vector<2x192xf32> to vector<2x64xf32>
    %276 = vector.extract_strided_slice %272 {offsets = [0, 64], sizes = [2, 64], strides = [1, 1]} : vector<2x192xf32> to vector<2x64xf32>
    %277 = vector.extract_strided_slice %272 {offsets = [0, 128], sizes = [2, 64], strides = [1, 1]} : vector<2x192xf32> to vector<2x64xf32>
    %278 = arith.mulf %276, %255 : vector<2x64xf32>
    %279 = arith.mulf %275, %274 : vector<2x64xf32>
    %280 = arith.addf %278, %279 : vector<2x64xf32>
    %281 = math.tanh %280 : vector<2x64xf32>
    %282 = arith.mulf %277, %281 : vector<2x64xf32>
    %c2_i32_89 = arith.constant 2 : i32
    %283 = arith.muli %c7_i32, %c2_i32_89 : i32
    %284 = arith.index_cast %283 : i32 to index
    %c0_90 = arith.constant 0 : index
    %285 = vector.load %arg15[%284, %c0_90] : memref<16x64xf32, #tpu.memory_space<vmem>>, vector<2x64xf32>
    tpu.vector_store %arg15[%284, %c0_90], %282 {strides = array<i32>} : memref<16x64xf32, #tpu.memory_space<vmem>>, vector<2x64xf32>,
    %c8_i32 = arith.constant 8 : i32
    %c0_91 = arith.constant 0 : index
    %c0_92 = arith.constant 0 : index
    %286 = vector.load %arg15[%c0_91, %c0_92] : memref<16x64xf32, #tpu.memory_space<vmem>>, vector<16x64xf32>
    %287 = arith.truncf %286 : vector<16x64xf32> to vector<16x64xbf16>
    %c1 = arith.constant 1 : index
    %c0_93 = arith.constant 0 : index
    %c0_94 = arith.constant 0 : index
    %288 = vector.load %arg9[%c1, %c0_93, %c0_94] : memref<2x64x256xbf16, #tpu.memory_space<vmem>>, vector<1x64x256xbf16>
    %289 = vector.shape_cast %288 : vector<1x64x256xbf16> to vector<64x256xbf16>
    %cst_95 = arith.constant dense<0.000000e+00> : vector<16x256xf32>
    %290 = tpu.matmul %287, %289, %cst_95 {dimension_numbers = #tpu.dot_dimension_numbers<[1], [0], [0], [1], [0, 0, 1, 1], [], []>} : vector<16x64xbf16>, vector<64x256xbf16>, vector<16x256xf32> -> vector<16x256xf32>
    %c1_96 = arith.constant 1 : index
    %c0_97 = arith.constant 0 : index
    %c0_98 = arith.constant 0 : index
    %291 = vector.load %arg11[%c1_96, %c0_97, %c0_98] : memref<2x1x256xf32, #tpu.memory_space<vmem>>, vector<1x1x256xf32>
    %292 = vector.shape_cast %291 : vector<1x1x256xf32> to vector<1x256xf32>
    %293 = vector.broadcast %292 : vector<1x256xf32> to vector<16x256xf32>
    %294 = arith.addf %290, %293 : vector<16x256xf32>
    %c0_99 = arith.constant 0 : index
    %c0_100 = arith.constant 0 : index
    %295 = vector.load %arg14[%c0_99, %c0_100] : memref<16x256xf32, #tpu.memory_space<vmem>>, vector<16x256xf32>
    tpu.vector_store %arg14[%c0_99, %c0_100], %294 {strides = array<i32>} : memref<16x256xf32, #tpu.memory_space<vmem>>, vector<16x256xf32>,
    %c1_101 = arith.constant 1 : index
    %c0_102 = arith.constant 0 : index
    %c0_103 = arith.constant 0 : index
    %296 = vector.load %arg10[%c1_101, %c0_102, %c0_103] : memref<2x64x256xbf16, #tpu.memory_space<vmem>>, vector<1x64x256xbf16>
    %297 = vector.shape_cast %296 : vector<1x64x256xbf16> to vector<64x256xbf16>
    %cst_104 = arith.constant 0.000000e+00 : f32
    %298 = vector.broadcast %cst_104 : f32 to vector<2x64xf32>
    %c0_i32_105 = arith.constant 0 : i32
    %c2_i32_106 = arith.constant 2 : i32
    %299 = arith.muli %c0_i32_105, %c2_i32_106 : i32
    %300 = arith.index_cast %299 : i32 to index
    %c0_107 = arith.constant 0 : index
    %301 = vector.load %arg14[%300, %c0_107] : memref<16x256xf32, #tpu.memory_space<vmem>>, vector<2x256xf32>
    %302 = arith.truncf %298 : vector<2x64xf32> to vector<2x64xbf16>
    %cst_108 = arith.constant dense<0.000000e+00> : vector<2x256xf32>
    %303 = tpu.matmul %302, %297, %cst_108 {dimension_numbers = #tpu.dot_dimension_numbers<[1], [0], [0], [1], [0, 0, 1, 1], [], []>} : vector<2x64xbf16>, vector<64x256xbf16>, vector<2x256xf32> -> vector<2x256xf32>
    %304 = arith.addf %301, %303 : vector<2x256xf32>
    %305 = vector.extract_strided_slice %304 {offsets = [0, 0], sizes = [2, 192], strides = [1, 1]} : vector<2x256xf32> to vector<2x192xf32>
    %306 = arith.negf %305 : vector<2x192xf32>
    %307 = math.exp %306 : vector<2x192xf32>
    %cst_109 = arith.constant 1.000000e+00 : f32
    %308 = vector.broadcast %cst_109 : f32 to vector<2x192xf32>
    %309 = arith.addf %308, %307 : vector<2x192xf32>
    %310 = arith.divf %308, %309 : vector<2x192xf32>
    %311 = vector.extract_strided_slice %304 {offsets = [0, 192], sizes = [2, 64], strides = [1, 1]} : vector<2x256xf32> to vector<2x64xf32>
    %312 = math.tanh %311 : vector<2x64xf32>
    %313 = vector.extract_strided_slice %310 {offsets = [0, 0], sizes = [2, 64], strides = [1, 1]} : vector<2x192xf32> to vector<2x64xf32>
    %314 = vector.extract_strided_slice %310 {offsets = [0, 64], sizes = [2, 64], strides = [1, 1]} : vector<2x192xf32> to vector<2x64xf32>
    %315 = vector.extract_strided_slice %310 {offsets = [0, 128], sizes = [2, 64], strides = [1, 1]} : vector<2x192xf32> to vector<2x64xf32>
    %316 = arith.mulf %314, %298 : vector<2x64xf32>
    %317 = arith.mulf %313, %312 : vector<2x64xf32>
    %318 = arith.addf %316, %317 : vector<2x64xf32>
    %319 = math.tanh %318 : vector<2x64xf32>
    %320 = arith.mulf %315, %319 : vector<2x64xf32>
    %c2_i32_110 = arith.constant 2 : i32
    %321 = arith.muli %c0_i32_105, %c2_i32_110 : i32
    %322 = arith.index_cast %321 : i32 to index
    %c0_111 = arith.constant 0 : index
    %323 = vector.load %arg16[%322, %c0_111] : memref<16x64xf32, #tpu.memory_space<vmem>>, vector<2x64xf32>
    tpu.vector_store %arg16[%322, %c0_111], %320 {strides = array<i32>} : memref<16x64xf32, #tpu.memory_space<vmem>>, vector<2x64xf32>,
    %c1_i32_112 = arith.constant 1 : i32
    %c2_i32_113 = arith.constant 2 : i32
    %324 = arith.muli %c1_i32_112, %c2_i32_113 : i32
    %325 = arith.index_cast %324 : i32 to index
    %c0_114 = arith.constant 0 : index
    %326 = vector.load %arg14[%325, %c0_114] : memref<16x256xf32, #tpu.memory_space<vmem>>, vector<2x256xf32>
    %327 = arith.truncf %320 : vector<2x64xf32> to vector<2x64xbf16>
    %cst_115 = arith.constant dense<0.000000e+00> : vector<2x256xf32>
    %328 = tpu.matmul %327, %297, %cst_115 {dimension_numbers = #tpu.dot_dimension_numbers<[1], [0], [0], [1], [0, 0, 1, 1], [], []>} : vector<2x64xbf16>, vector<64x256xbf16>, vector<2x256xf32> -> vector<2x256xf32>
    %329 = arith.addf %326, %328 : vector<2x256xf32>
    %330 = vector.extract_strided_slice %329 {offsets = [0, 0], sizes = [2, 192], strides = [1, 1]} : vector<2x256xf32> to vector<2x192xf32>
    %331 = arith.negf %330 : vector<2x192xf32>
    %332 = math.exp %331 : vector<2x192xf32>
    %cst_116 = arith.constant 1.000000e+00 : f32
    %333 = vector.broadcast %cst_116 : f32 to vector<2x192xf32>
    %334 = arith.addf %333, %332 : vector<2x192xf32>
    %335 = arith.divf %333, %334 : vector<2x192xf32>
    %336 = vector.extract_strided_slice %329 {offsets = [0, 192], sizes = [2, 64], strides = [1, 1]} : vector<2x256xf32> to vector<2x64xf32>
    %337 = math.tanh %336 : vector<2x64xf32>
    %338 = vector.extract_strided_slice %335 {offsets = [0, 0], sizes = [2, 64], strides = [1, 1]} : vector<2x192xf32> to vector<2x64xf32>
    %339 = vector.extract_strided_slice %335 {offsets = [0, 64], sizes = [2, 64], strides = [1, 1]} : vector<2x192xf32> to vector<2x64xf32>
    %340 = vector.extract_strided_slice %335 {offsets = [0, 128], sizes = [2, 64], strides = [1, 1]} : vector<2x192xf32> to vector<2x64xf32>
    %341 = arith.mulf %339, %318 : vector<2x64xf32>
    %342 = arith.mulf %338, %337 : vector<2x64xf32>
    %343 = arith.addf %341, %342 : vector<2x64xf32>
    %344 = math.tanh %343 : vector<2x64xf32>
    %345 = arith.mulf %340, %344 : vector<2x64xf32>
    %c2_i32_117 = arith.constant 2 : i32
    %346 = arith.muli %c1_i32_112, %c2_i32_117 : i32
    %347 = arith.index_cast %346 : i32 to index
    %c0_118 = arith.constant 0 : index
    %348 = vector.load %arg16[%347, %c0_118] : memref<16x64xf32, #tpu.memory_space<vmem>>, vector<2x64xf32>
    tpu.vector_store %arg16[%347, %c0_118], %345 {strides = array<i32>} : memref<16x64xf32, #tpu.memory_space<vmem>>, vector<2x64xf32>,
    %c2_i32_119 = arith.constant 2 : i32
    %c2_i32_120 = arith.constant 2 : i32
    %349 = arith.muli %c2_i32_119, %c2_i32_120 : i32
    %350 = arith.index_cast %349 : i32 to index
    %c0_121 = arith.constant 0 : index
    %351 = vector.load %arg14[%350, %c0_121] : memref<16x256xf32, #tpu.memory_space<vmem>>, vector<2x256xf32>
    %352 = arith.truncf %345 : vector<2x64xf32> to vector<2x64xbf16>
    %cst_122 = arith.constant dense<0.000000e+00> : vector<2x256xf32>
    %353 = tpu.matmul %352, %297, %cst_122 {dimension_numbers = #tpu.dot_dimension_numbers<[1], [0], [0], [1], [0, 0, 1, 1], [], []>} : vector<2x64xbf16>, vector<64x256xbf16>, vector<2x256xf32> -> vector<2x256xf32>
    %354 = arith.addf %351, %353 : vector<2x256xf32>
    %355 = vector.extract_strided_slice %354 {offsets = [0, 0], sizes = [2, 192], strides = [1, 1]} : vector<2x256xf32> to vector<2x192xf32>
    %356 = arith.negf %355 : vector<2x192xf32>
    %357 = math.exp %356 : vector<2x192xf32>
    %cst_123 = arith.constant 1.000000e+00 : f32
    %358 = vector.broadcast %cst_123 : f32 to vector<2x192xf32>
    %359 = arith.addf %358, %357 : vector<2x192xf32>
    %360 = arith.divf %358, %359 : vector<2x192xf32>
    %361 = vector.extract_strided_slice %354 {offsets = [0, 192], sizes = [2, 64], strides = [1, 1]} : vector<2x256xf32> to vector<2x64xf32>
    %362 = math.tanh %361 : vector<2x64xf32>
    %363 = vector.extract_strided_slice %360 {offsets = [0, 0], sizes = [2, 64], strides = [1, 1]} : vector<2x192xf32> to vector<2x64xf32>
    %364 = vector.extract_strided_slice %360 {offsets = [0, 64], sizes = [2, 64], strides = [1, 1]} : vector<2x192xf32> to vector<2x64xf32>
    %365 = vector.extract_strided_slice %360 {offsets = [0, 128], sizes = [2, 64], strides = [1, 1]} : vector<2x192xf32> to vector<2x64xf32>
    %366 = arith.mulf %364, %343 : vector<2x64xf32>
    %367 = arith.mulf %363, %362 : vector<2x64xf32>
    %368 = arith.addf %366, %367 : vector<2x64xf32>
    %369 = math.tanh %368 : vector<2x64xf32>
    %370 = arith.mulf %365, %369 : vector<2x64xf32>
    %c2_i32_124 = arith.constant 2 : i32
    %371 = arith.muli %c2_i32_119, %c2_i32_124 : i32
    %372 = arith.index_cast %371 : i32 to index
    %c0_125 = arith.constant 0 : index
    %373 = vector.load %arg16[%372, %c0_125] : memref<16x64xf32, #tpu.memory_space<vmem>>, vector<2x64xf32>
    tpu.vector_store %arg16[%372, %c0_125], %370 {strides = array<i32>} : memref<16x64xf32, #tpu.memory_space<vmem>>, vector<2x64xf32>,
    %c3_i32_126 = arith.constant 3 : i32
    %c2_i32_127 = arith.constant 2 : i32
    %374 = arith.muli %c3_i32_126, %c2_i32_127 : i32
    %375 = arith.index_cast %374 : i32 to index
    %c0_128 = arith.constant 0 : index
    %376 = vector.load %arg14[%375, %c0_128] : memref<16x256xf32, #tpu.memory_space<vmem>>, vector<2x256xf32>
    %377 = arith.truncf %370 : vector<2x64xf32> to vector<2x64xbf16>
    %cst_129 = arith.constant dense<0.000000e+00> : vector<2x256xf32>
    %378 = tpu.matmul %377, %297, %cst_129 {dimension_numbers = #tpu.dot_dimension_numbers<[1], [0], [0], [1], [0, 0, 1, 1], [], []>} : vector<2x64xbf16>, vector<64x256xbf16>, vector<2x256xf32> -> vector<2x256xf32>
    %379 = arith.addf %376, %378 : vector<2x256xf32>
    %380 = vector.extract_strided_slice %379 {offsets = [0, 0], sizes = [2, 192], strides = [1, 1]} : vector<2x256xf32> to vector<2x192xf32>
    %381 = arith.negf %380 : vector<2x192xf32>
    %382 = math.exp %381 : vector<2x192xf32>
    %cst_130 = arith.constant 1.000000e+00 : f32
    %383 = vector.broadcast %cst_130 : f32 to vector<2x192xf32>
    %384 = arith.addf %383, %382 : vector<2x192xf32>
    %385 = arith.divf %383, %384 : vector<2x192xf32>
    %386 = vector.extract_strided_slice %379 {offsets = [0, 192], sizes = [2, 64], strides = [1, 1]} : vector<2x256xf32> to vector<2x64xf32>
    %387 = math.tanh %386 : vector<2x64xf32>
    %388 = vector.extract_strided_slice %385 {offsets = [0, 0], sizes = [2, 64], strides = [1, 1]} : vector<2x192xf32> to vector<2x64xf32>
    %389 = vector.extract_strided_slice %385 {offsets = [0, 64], sizes = [2, 64], strides = [1, 1]} : vector<2x192xf32> to vector<2x64xf32>
    %390 = vector.extract_strided_slice %385 {offsets = [0, 128], sizes = [2, 64], strides = [1, 1]} : vector<2x192xf32> to vector<2x64xf32>
    %391 = arith.mulf %389, %368 : vector<2x64xf32>
    %392 = arith.mulf %388, %387 : vector<2x64xf32>
    %393 = arith.addf %391, %392 : vector<2x64xf32>
    %394 = math.tanh %393 : vector<2x64xf32>
    %395 = arith.mulf %390, %394 : vector<2x64xf32>
    %c2_i32_131 = arith.constant 2 : i32
    %396 = arith.muli %c3_i32_126, %c2_i32_131 : i32
    %397 = arith.index_cast %396 : i32 to index
    %c0_132 = arith.constant 0 : index
    %398 = vector.load %arg16[%397, %c0_132] : memref<16x64xf32, #tpu.memory_space<vmem>>, vector<2x64xf32>
    tpu.vector_store %arg16[%397, %c0_132], %395 {strides = array<i32>} : memref<16x64xf32, #tpu.memory_space<vmem>>, vector<2x64xf32>,
    %c4_i32_133 = arith.constant 4 : i32
    %c2_i32_134 = arith.constant 2 : i32
    %399 = arith.muli %c4_i32_133, %c2_i32_134 : i32
    %400 = arith.index_cast %399 : i32 to index
    %c0_135 = arith.constant 0 : index
    %401 = vector.load %arg14[%400, %c0_135] : memref<16x256xf32, #tpu.memory_space<vmem>>, vector<2x256xf32>
    %402 = arith.truncf %395 : vector<2x64xf32> to vector<2x64xbf16>
    %cst_136 = arith.constant dense<0.000000e+00> : vector<2x256xf32>
    %403 = tpu.matmul %402, %297, %cst_136 {dimension_numbers = #tpu.dot_dimension_numbers<[1], [0], [0], [1], [0, 0, 1, 1], [], []>} : vector<2x64xbf16>, vector<64x256xbf16>, vector<2x256xf32> -> vector<2x256xf32>
    %404 = arith.addf %401, %403 : vector<2x256xf32>
    %405 = vector.extract_strided_slice %404 {offsets = [0, 0], sizes = [2, 192], strides = [1, 1]} : vector<2x256xf32> to vector<2x192xf32>
    %406 = arith.negf %405 : vector<2x192xf32>
    %407 = math.exp %406 : vector<2x192xf32>
    %cst_137 = arith.constant 1.000000e+00 : f32
    %408 = vector.broadcast %cst_137 : f32 to vector<2x192xf32>
    %409 = arith.addf %408, %407 : vector<2x192xf32>
    %410 = arith.divf %408, %409 : vector<2x192xf32>
    %411 = vector.extract_strided_slice %404 {offsets = [0, 192], sizes = [2, 64], strides = [1, 1]} : vector<2x256xf32> to vector<2x64xf32>
    %412 = math.tanh %411 : vector<2x64xf32>
    %413 = vector.extract_strided_slice %410 {offsets = [0, 0], sizes = [2, 64], strides = [1, 1]} : vector<2x192xf32> to vector<2x64xf32>
    %414 = vector.extract_strided_slice %410 {offsets = [0, 64], sizes = [2, 64], strides = [1, 1]} : vector<2x192xf32> to vector<2x64xf32>
    %415 = vector.extract_strided_slice %410 {offsets = [0, 128], sizes = [2, 64], strides = [1, 1]} : vector<2x192xf32> to vector<2x64xf32>
    %416 = arith.mulf %414, %393 : vector<2x64xf32>
    %417 = arith.mulf %413, %412 : vector<2x64xf32>
    %418 = arith.addf %416, %417 : vector<2x64xf32>
    %419 = math.tanh %418 : vector<2x64xf32>
    %420 = arith.mulf %415, %419 : vector<2x64xf32>
    %c2_i32_138 = arith.constant 2 : i32
    %421 = arith.muli %c4_i32_133, %c2_i32_138 : i32
    %422 = arith.index_cast %421 : i32 to index
    %c0_139 = arith.constant 0 : index
    %423 = vector.load %arg16[%422, %c0_139] : memref<16x64xf32, #tpu.memory_space<vmem>>, vector<2x64xf32>
    tpu.vector_store %arg16[%422, %c0_139], %420 {strides = array<i32>} : memref<16x64xf32, #tpu.memory_space<vmem>>, vector<2x64xf32>,
    %c5_i32_140 = arith.constant 5 : i32
    %c2_i32_141 = arith.constant 2 : i32
    %424 = arith.muli %c5_i32_140, %c2_i32_141 : i32
    %425 = arith.index_cast %424 : i32 to index
    %c0_142 = arith.constant 0 : index
    %426 = vector.load %arg14[%425, %c0_142] : memref<16x256xf32, #tpu.memory_space<vmem>>, vector<2x256xf32>
    %427 = arith.truncf %420 : vector<2x64xf32> to vector<2x64xbf16>
    %cst_143 = arith.constant dense<0.000000e+00> : vector<2x256xf32>
    %428 = tpu.matmul %427, %297, %cst_143 {dimension_numbers = #tpu.dot_dimension_numbers<[1], [0], [0], [1], [0, 0, 1, 1], [], []>} : vector<2x64xbf16>, vector<64x256xbf16>, vector<2x256xf32> -> vector<2x256xf32>
    %429 = arith.addf %426, %428 : vector<2x256xf32>
    %430 = vector.extract_strided_slice %429 {offsets = [0, 0], sizes = [2, 192], strides = [1, 1]} : vector<2x256xf32> to vector<2x192xf32>
    %431 = arith.negf %430 : vector<2x192xf32>
    %432 = math.exp %431 : vector<2x192xf32>
    %cst_144 = arith.constant 1.000000e+00 : f32
    %433 = vector.broadcast %cst_144 : f32 to vector<2x192xf32>
    %434 = arith.addf %433, %432 : vector<2x192xf32>
    %435 = arith.divf %433, %434 : vector<2x192xf32>
    %436 = vector.extract_strided_slice %429 {offsets = [0, 192], sizes = [2, 64], strides = [1, 1]} : vector<2x256xf32> to vector<2x64xf32>
    %437 = math.tanh %436 : vector<2x64xf32>
    %438 = vector.extract_strided_slice %435 {offsets = [0, 0], sizes = [2, 64], strides = [1, 1]} : vector<2x192xf32> to vector<2x64xf32>
    %439 = vector.extract_strided_slice %435 {offsets = [0, 64], sizes = [2, 64], strides = [1, 1]} : vector<2x192xf32> to vector<2x64xf32>
    %440 = vector.extract_strided_slice %435 {offsets = [0, 128], sizes = [2, 64], strides = [1, 1]} : vector<2x192xf32> to vector<2x64xf32>
    %441 = arith.mulf %439, %418 : vector<2x64xf32>
    %442 = arith.mulf %438, %437 : vector<2x64xf32>
    %443 = arith.addf %441, %442 : vector<2x64xf32>
    %444 = math.tanh %443 : vector<2x64xf32>
    %445 = arith.mulf %440, %444 : vector<2x64xf32>
    %c2_i32_145 = arith.constant 2 : i32
    %446 = arith.muli %c5_i32_140, %c2_i32_145 : i32
    %447 = arith.index_cast %446 : i32 to index
    %c0_146 = arith.constant 0 : index
    %448 = vector.load %arg16[%447, %c0_146] : memref<16x64xf32, #tpu.memory_space<vmem>>, vector<2x64xf32>
    tpu.vector_store %arg16[%447, %c0_146], %445 {strides = array<i32>} : memref<16x64xf32, #tpu.memory_space<vmem>>, vector<2x64xf32>,
    %c6_i32_147 = arith.constant 6 : i32
    %c2_i32_148 = arith.constant 2 : i32
    %449 = arith.muli %c6_i32_147, %c2_i32_148 : i32
    %450 = arith.index_cast %449 : i32 to index
    %c0_149 = arith.constant 0 : index
    %451 = vector.load %arg14[%450, %c0_149] : memref<16x256xf32, #tpu.memory_space<vmem>>, vector<2x256xf32>
    %452 = arith.truncf %445 : vector<2x64xf32> to vector<2x64xbf16>
    %cst_150 = arith.constant dense<0.000000e+00> : vector<2x256xf32>
    %453 = tpu.matmul %452, %297, %cst_150 {dimension_numbers = #tpu.dot_dimension_numbers<[1], [0], [0], [1], [0, 0, 1, 1], [], []>} : vector<2x64xbf16>, vector<64x256xbf16>, vector<2x256xf32> -> vector<2x256xf32>
    %454 = arith.addf %451, %453 : vector<2x256xf32>
    %455 = vector.extract_strided_slice %454 {offsets = [0, 0], sizes = [2, 192], strides = [1, 1]} : vector<2x256xf32> to vector<2x192xf32>
    %456 = arith.negf %455 : vector<2x192xf32>
    %457 = math.exp %456 : vector<2x192xf32>
    %cst_151 = arith.constant 1.000000e+00 : f32
    %458 = vector.broadcast %cst_151 : f32 to vector<2x192xf32>
    %459 = arith.addf %458, %457 : vector<2x192xf32>
    %460 = arith.divf %458, %459 : vector<2x192xf32>
    %461 = vector.extract_strided_slice %454 {offsets = [0, 192], sizes = [2, 64], strides = [1, 1]} : vector<2x256xf32> to vector<2x64xf32>
    %462 = math.tanh %461 : vector<2x64xf32>
    %463 = vector.extract_strided_slice %460 {offsets = [0, 0], sizes = [2, 64], strides = [1, 1]} : vector<2x192xf32> to vector<2x64xf32>
    %464 = vector.extract_strided_slice %460 {offsets = [0, 64], sizes = [2, 64], strides = [1, 1]} : vector<2x192xf32> to vector<2x64xf32>
    %465 = vector.extract_strided_slice %460 {offsets = [0, 128], sizes = [2, 64], strides = [1, 1]} : vector<2x192xf32> to vector<2x64xf32>
    %466 = arith.mulf %464, %443 : vector<2x64xf32>
    %467 = arith.mulf %463, %462 : vector<2x64xf32>
    %468 = arith.addf %466, %467 : vector<2x64xf32>
    %469 = math.tanh %468 : vector<2x64xf32>
    %470 = arith.mulf %465, %469 : vector<2x64xf32>
    %c2_i32_152 = arith.constant 2 : i32
    %471 = arith.muli %c6_i32_147, %c2_i32_152 : i32
    %472 = arith.index_cast %471 : i32 to index
    %c0_153 = arith.constant 0 : index
    %473 = vector.load %arg16[%472, %c0_153] : memref<16x64xf32, #tpu.memory_space<vmem>>, vector<2x64xf32>
    tpu.vector_store %arg16[%472, %c0_153], %470 {strides = array<i32>} : memref<16x64xf32, #tpu.memory_space<vmem>>, vector<2x64xf32>,
    %c7_i32_154 = arith.constant 7 : i32
    %c2_i32_155 = arith.constant 2 : i32
    %474 = arith.muli %c7_i32_154, %c2_i32_155 : i32
    %475 = arith.index_cast %474 : i32 to index
    %c0_156 = arith.constant 0 : index
    %476 = vector.load %arg14[%475, %c0_156] : memref<16x256xf32, #tpu.memory_space<vmem>>, vector<2x256xf32>
    %477 = arith.truncf %470 : vector<2x64xf32> to vector<2x64xbf16>
    %cst_157 = arith.constant dense<0.000000e+00> : vector<2x256xf32>
    %478 = tpu.matmul %477, %297, %cst_157 {dimension_numbers = #tpu.dot_dimension_numbers<[1], [0], [0], [1], [0, 0, 1, 1], [], []>} : vector<2x64xbf16>, vector<64x256xbf16>, vector<2x256xf32> -> vector<2x256xf32>
    %479 = arith.addf %476, %478 : vector<2x256xf32>
    %480 = vector.extract_strided_slice %479 {offsets = [0, 0], sizes = [2, 192], strides = [1, 1]} : vector<2x256xf32> to vector<2x192xf32>
    %481 = arith.negf %480 : vector<2x192xf32>
    %482 = math.exp %481 : vector<2x192xf32>
    %cst_158 = arith.constant 1.000000e+00 : f32
    %483 = vector.broadcast %cst_158 : f32 to vector<2x192xf32>
    %484 = arith.addf %483, %482 : vector<2x192xf32>
    %485 = arith.divf %483, %484 : vector<2x192xf32>
    %486 = vector.extract_strided_slice %479 {offsets = [0, 192], sizes = [2, 64], strides = [1, 1]} : vector<2x256xf32> to vector<2x64xf32>
    %487 = math.tanh %486 : vector<2x64xf32>
    %488 = vector.extract_strided_slice %485 {offsets = [0, 0], sizes = [2, 64], strides = [1, 1]} : vector<2x192xf32> to vector<2x64xf32>
    %489 = vector.extract_strided_slice %485 {offsets = [0, 64], sizes = [2, 64], strides = [1, 1]} : vector<2x192xf32> to vector<2x64xf32>
    %490 = vector.extract_strided_slice %485 {offsets = [0, 128], sizes = [2, 64], strides = [1, 1]} : vector<2x192xf32> to vector<2x64xf32>
    %491 = arith.mulf %489, %468 : vector<2x64xf32>
    %492 = arith.mulf %488, %487 : vector<2x64xf32>
    %493 = arith.addf %491, %492 : vector<2x64xf32>
    %494 = math.tanh %493 : vector<2x64xf32>
    %495 = arith.mulf %490, %494 : vector<2x64xf32>
    %c2_i32_159 = arith.constant 2 : i32
    %496 = arith.muli %c7_i32_154, %c2_i32_159 : i32
    %497 = arith.index_cast %496 : i32 to index
    %c0_160 = arith.constant 0 : index
    %498 = vector.load %arg16[%497, %c0_160] : memref<16x64xf32, #tpu.memory_space<vmem>>, vector<2x64xf32>
    tpu.vector_store %arg16[%497, %c0_160], %495 {strides = array<i32>} : memref<16x64xf32, #tpu.memory_space<vmem>>, vector<2x64xf32>,
    %c8_i32_161 = arith.constant 8 : i32
    %499 = tpu.iota {dimensions = array<i32: 1>} : vector<1x64xi32>
    %c32_i32_162 = arith.constant 32 : i32
    %500 = vector.broadcast %c32_i32_162 : i32 to vector<1x64xi32>
    %501 = arith.cmpi slt, %499, %500 : vector<1x64xi32>
    %502 = vector.extract_strided_slice %286 {offsets = [14, 0], sizes = [2, 64], strides = [1, 1]} : vector<16x64xf32> to vector<2x64xf32>
    %503 = vector.extract_strided_slice %286 {offsets = [12, 0], sizes = [2, 64], strides = [1, 1]} : vector<16x64xf32> to vector<2x64xf32>
    %504 = vector.extract_strided_slice %286 {offsets = [10, 0], sizes = [2, 64], strides = [1, 1]} : vector<16x64xf32> to vector<2x64xf32>
    %505 = vector.extract_strided_slice %286 {offsets = [8, 0], sizes = [2, 64], strides = [1, 1]} : vector<16x64xf32> to vector<2x64xf32>
    %506 = vector.extract_strided_slice %286 {offsets = [6, 0], sizes = [2, 64], strides = [1, 1]} : vector<16x64xf32> to vector<2x64xf32>
    %507 = vector.extract_strided_slice %286 {offsets = [4, 0], sizes = [2, 64], strides = [1, 1]} : vector<16x64xf32> to vector<2x64xf32>
    %508 = vector.extract_strided_slice %286 {offsets = [2, 0], sizes = [2, 64], strides = [1, 1]} : vector<16x64xf32> to vector<2x64xf32>
    %509 = vector.extract_strided_slice %286 {offsets = [0, 0], sizes = [2, 64], strides = [1, 1]} : vector<16x64xf32> to vector<2x64xf32>
    %510 = tpu.concatenate %502, %503, %504, %505, %506, %507, %508, %509 in 0 : vector<2x64xf32>, vector<2x64xf32>, vector<2x64xf32>, vector<2x64xf32>, vector<2x64xf32>, vector<2x64xf32>, vector<2x64xf32>, vector<2x64xf32> -> vector<16x64xf32>
    %511 = vector.shape_cast %501 : vector<1x64xi1> to vector<1x64xi1>
    %512 = vector.broadcast %511 : vector<1x64xi1> to vector<16x64xi1>
    %513 = arith.select %512, %286, %510 : vector<16x64xi1>, vector<16x64xf32>
    %c0_163 = arith.constant 0 : index
    %c0_164 = arith.constant 0 : index
    %514 = vector.load %arg16[%c0_163, %c0_164] : memref<16x64xf32, #tpu.memory_space<vmem>>, vector<16x64xf32>
    %515 = vector.extract_strided_slice %514 {offsets = [14, 0], sizes = [2, 64], strides = [1, 1]} : vector<16x64xf32> to vector<2x64xf32>
    %516 = vector.extract_strided_slice %514 {offsets = [12, 0], sizes = [2, 64], strides = [1, 1]} : vector<16x64xf32> to vector<2x64xf32>
    %517 = vector.extract_strided_slice %514 {offsets = [10, 0], sizes = [2, 64], strides = [1, 1]} : vector<16x64xf32> to vector<2x64xf32>
    %518 = vector.extract_strided_slice %514 {offsets = [8, 0], sizes = [2, 64], strides = [1, 1]} : vector<16x64xf32> to vector<2x64xf32>
    %519 = vector.extract_strided_slice %514 {offsets = [6, 0], sizes = [2, 64], strides = [1, 1]} : vector<16x64xf32> to vector<2x64xf32>
    %520 = vector.extract_strided_slice %514 {offsets = [4, 0], sizes = [2, 64], strides = [1, 1]} : vector<16x64xf32> to vector<2x64xf32>
    %521 = vector.extract_strided_slice %514 {offsets = [2, 0], sizes = [2, 64], strides = [1, 1]} : vector<16x64xf32> to vector<2x64xf32>
    %522 = vector.extract_strided_slice %514 {offsets = [0, 0], sizes = [2, 64], strides = [1, 1]} : vector<16x64xf32> to vector<2x64xf32>
    %523 = tpu.concatenate %515, %516, %517, %518, %519, %520, %521, %522 in 0 : vector<2x64xf32>, vector<2x64xf32>, vector<2x64xf32>, vector<2x64xf32>, vector<2x64xf32>, vector<2x64xf32>, vector<2x64xf32>, vector<2x64xf32> -> vector<16x64xf32>
    %524 = vector.shape_cast %501 : vector<1x64xi1> to vector<1x64xi1>
    %525 = vector.broadcast %524 : vector<1x64xi1> to vector<16x64xi1>
    %526 = arith.select %525, %514, %523 : vector<16x64xi1>, vector<16x64xf32>
    %c0_165 = arith.constant 0 : index
    %527 = memref.load %arg12[%c0_165] : memref<3xf32, #tpu.memory_space<smem>>
    %528 = vector.broadcast %527 : f32 to vector<16x64xf32>
    %529 = arith.mulf %528, %42 : vector<16x64xf32>
    %c1_166 = arith.constant 1 : index
    %530 = memref.load %arg12[%c1_166] : memref<3xf32, #tpu.memory_space<smem>>
    %531 = vector.broadcast %530 : f32 to vector<16x64xf32>
    %532 = arith.mulf %531, %513 : vector<16x64xf32>
    %533 = arith.addf %529, %532 : vector<16x64xf32>
    %c2 = arith.constant 2 : index
    %534 = memref.load %arg12[%c2] : memref<3xf32, #tpu.memory_space<smem>>
    %535 = vector.broadcast %534 : f32 to vector<16x64xf32>
    %536 = arith.mulf %535, %526 : vector<16x64xf32>
    %537 = arith.addf %533, %536 : vector<16x64xf32>
    %cst_167 = arith.constant 0.000000e+00 : f32
    %538 = vector.broadcast %cst_167 : f32 to vector<16x64xf32>
    %539 = tpu.concatenate %537, %538 in 1 : vector<16x64xf32>, vector<16x64xf32> -> vector<16x128xf32>
    %c0_168 = arith.constant 0 : index
    %c0_169 = arith.constant 0 : index
    %c0_170 = arith.constant 0 : index
    %540 = vector.load %arg13[%c0_168, %c0_169, %c0_170] : memref<1x16x128xf32, #tpu.memory_space<vmem>>, vector<1x16x128xf32>
    %541 = vector.shape_cast %540 : vector<1x16x128xf32> to vector<16x128xf32>
    %542 = vector.shape_cast %539 : vector<16x128xf32> to vector<1x16x128xf32>
    tpu.vector_store %arg13[%c0_168, %c0_169, %c0_170], %542 {strides = array<i32>} : memref<1x16x128xf32, #tpu.memory_space<vmem>>, vector<1x16x128xf32>,
    return
  }
  func.func @transform_0(%arg0: i32) -> (i32, i32, i32) {
    %c0_i32 = arith.constant 0 : i32
    %c0_i32_0 = arith.constant 0 : i32
    %c0_i32_1 = arith.constant 0 : i32
    return %arg0, %c0_i32, %c0_i32_0 : i32, i32, i32
  }
  func.func @transform_1(%arg0: i32) -> (i32, i32) {
    %c0_i32 = arith.constant 0 : i32
    %c0_i32_0 = arith.constant 0 : i32
    %c0_i32_1 = arith.constant 0 : i32
    return %c0_i32, %c0_i32_0 : i32, i32
  }
  func.func @transform_2(%arg0: i32) -> (i32, i32) {
    %c0_i32 = arith.constant 0 : i32
    %c0_i32_0 = arith.constant 0 : i32
    %c0_i32_1 = arith.constant 0 : i32
    return %c0_i32, %c0_i32_0 : i32, i32
  }
  func.func @transform_3(%arg0: i32) -> (i32, i32) {
    %c0_i32 = arith.constant 0 : i32
    %c0_i32_0 = arith.constant 0 : i32
    %c0_i32_1 = arith.constant 0 : i32
    return %c0_i32, %c0_i32_0 : i32, i32
  }
  func.func @transform_4(%arg0: i32) -> (i32, i32, i32) {
    %c0_i32 = arith.constant 0 : i32
    %c0_i32_0 = arith.constant 0 : i32
    %c0_i32_1 = arith.constant 0 : i32
    %c0_i32_2 = arith.constant 0 : i32
    return %c0_i32, %c0_i32_0, %c0_i32_1 : i32, i32, i32
  }
  func.func @transform_5(%arg0: i32) -> (i32, i32, i32) {
    %c0_i32 = arith.constant 0 : i32
    %c0_i32_0 = arith.constant 0 : i32
    %c0_i32_1 = arith.constant 0 : i32
    %c0_i32_2 = arith.constant 0 : i32
    return %c0_i32, %c0_i32_0, %c0_i32_1 : i32, i32, i32
  }
  func.func @transform_6(%arg0: i32) -> (i32, i32) {
    %c0_i32 = arith.constant 0 : i32
    %c0_i32_0 = arith.constant 0 : i32
    %c0_i32_1 = arith.constant 0 : i32
    return %c0_i32, %c0_i32_0 : i32, i32
  }
  func.func @transform_7(%arg0: i32) -> (i32, i32) {
    %c0_i32 = arith.constant 0 : i32
    %c0_i32_0 = arith.constant 0 : i32
    %c0_i32_1 = arith.constant 0 : i32
    return %c0_i32, %c0_i32_0 : i32, i32
  }
  func.func @transform_8(%arg0: i32) -> (i32, i32, i32) {
    %c0_i32 = arith.constant 0 : i32
    %c0_i32_0 = arith.constant 0 : i32
    %c0_i32_1 = arith.constant 0 : i32
    %c0_i32_2 = arith.constant 0 : i32
    return %c0_i32, %c0_i32_0, %c0_i32_1 : i32, i32, i32
  }
  func.func @transform_9(%arg0: i32) -> (i32, i32, i32) {
    %c0_i32 = arith.constant 0 : i32
    %c0_i32_0 = arith.constant 0 : i32
    %c0_i32_1 = arith.constant 0 : i32
    %c0_i32_2 = arith.constant 0 : i32
    return %c0_i32, %c0_i32_0, %c0_i32_1 : i32, i32, i32
  }
  func.func @transform_10(%arg0: i32) -> (i32, i32, i32) {
    %c0_i32 = arith.constant 0 : i32
    %c0_i32_0 = arith.constant 0 : i32
    %c0_i32_1 = arith.constant 0 : i32
    %c0_i32_2 = arith.constant 0 : i32
    return %c0_i32, %c0_i32_0, %c0_i32_1 : i32, i32, i32
  }
  func.func @transform_11(%arg0: i32) -> i32 {
    %c0_i32 = arith.constant 0 : i32
    %c0_i32_0 = arith.constant 0 : i32
    return %c0_i32 : i32
  }
  func.func @transform_12(%arg0: i32) -> (i32, i32, i32) {
    %c0_i32 = arith.constant 0 : i32
    %c0_i32_0 = arith.constant 0 : i32
    %c0_i32_1 = arith.constant 0 : i32
    return %arg0, %c0_i32, %c0_i32_0 : i32, i32, i32
  }
}

</mosaic_0001>

<llo_original>
// kernel: elmo_token_embedder_forward.1
$region0: #{elmo_token_embedder_forward.1}
  #allocation0 [shape = 'u32[]', space=smem, size = 0x4, offset = 0x4, fixed_abs, tag = 'smem constant byte address 0x4 - core index']
  #allocation1 [shape = 'u32[144,128]{1,0:T(1,128)}', space=vmem, size = 0x12000, scoped, tag = 'internal scratch']
  #allocation2 [shape = 'f32[16,256]{1,0:T(8,128)}', space=vmem, size = 0x4000, scoped, tag = 'scratch operand']
  #allocation3 [shape = 'f32[16,64]{1,0:T(8,128)}', space=vmem, size = 0x2000, scoped, tag = 'scratch operand']
  #allocation4 [shape = 'f32[16,64]{1,0:T(8,128)}', space=vmem, size = 0x2000, scoped, tag = 'scratch operand']
  %s0 = inlined_call_operand.vmem [shape: bf16[2,896,64], index: 0, kind: input, shape index: {}]
  %s1 = inlined_call_operand.vmem [shape: f32[56,128], index: 1, kind: input, shape index: {}]
  %s2 = inlined_call_operand.vmem [shape: bf16[64,128], index: 2, kind: input, shape index: {}]
  %s3 = inlined_call_operand.vmem [shape: f32[1,128], index: 3, kind: input, shape index: {}]
  %s4 = inlined_call_operand.vmem [shape: bf16[1,128,256], index: 4, kind: input, shape index: {}]
  %s5 = inlined_call_operand.vmem [shape: f32[1,1,256], index: 5, kind: input, shape index: {}]
  %s6 = inlined_call_operand.vmem [shape: bf16[128,64], index: 6, kind: input, shape index: {}]
  %s7 = inlined_call_operand.vmem [shape: f32[1,64], index: 7, kind: input, shape index: {}]
  %s8 = inlined_call_operand.vmem [shape: bf16[2,64,256], index: 8, kind: input, shape index: {}]
  %s9 = inlined_call_operand.vmem [shape: bf16[2,64,256], index: 9, kind: input, shape index: {}]
  %s10 = inlined_call_operand.vmem [shape: f32[2,1,256], index: 10, kind: input, shape index: {}]
  %s11 = inlined_call_operand.vmem [shape: f32[3], index: 11, kind: input, shape index: {}]
  %s12 = inlined_call_operand.vmem [shape: f32[2,16,128], index: 12, kind: output, shape index: {}]
  %s13 = sld [smem:[#allocation0]]
  $region85: #{elmo_token_embedder_forward.1} parent=0
    _
  %s15 = ssub.s32 1, %s13
  %s16 = scalar_select 0, %s15, %s13
  $region1: #{elmo_token_embedder_forward.1} parent=0
    #allocation5 [shape = 'u8[512]{0}', space=smem, size = 0x200, scoped, tag = 'input window, operand 11, single buffered']
    #allocation6 [shape = 's32[2]{0}', space=sflag, size = 0x8, scoped, tag = 'scoped memory for elmo_token_embedder_forward.1']
    %17 = vsyncpa [#allocation6], 0
    loop: start=0, step=1, limit=4
    $region2: #{elmo_token_embedder_forward.1} parent=1 // loop_pre_header
      _
    $region3: #{elmo_token_embedder_forward.1} parent=1 // loop_header
      %s19 = sphi 0, %s23
      %p20 = scmp.ge.s32.totalorder %s19, 4
      %s29 = sphi 0, %s31
      %s32 = sphi 0, %s29
      %s33 = sphi 0, %s32
      %s49 = sphi 0, %s33
      %s53 = sphi 0, %s53
      %s55 = sphi 0, %s53
      %s56 = sphi 0, %s55
      %s70 = sphi 0, %s56
      %s74 = sphi 0, %s74
      %s76 = sphi 0, %s74
      %s77 = sphi 0, %s76
      %s91 = sphi 0, %s77
      %s95 = sphi 0, %s95
      %s97 = sphi 0, %s95
      %s98 = sphi 0, %s97
      %s112 = sphi 0, %s98
      %s116 = sphi 0, %s116
      %s118 = sphi 0, %s116
      %s119 = sphi 0, %s118
      %s133 = sphi 0, %s119
      %s137 = sphi 0, %s137
      %s139 = sphi 0, %s137
      %s140 = sphi 0, %s139
      %s154 = sphi 0, %s140
      %s158 = sphi 0, %s158
      %s160 = sphi 0, %s158
      %s161 = sphi 0, %s160
      %s175 = sphi 0, %s161
      %s179 = sphi 0, %s179
      %s181 = sphi 0, %s179
      %s182 = sphi 0, %s181
      %s196 = sphi 0, %s182
      %s200 = sphi 0, %s200
      %s202 = sphi 0, %s200
      %s203 = sphi 0, %s202
      %s217 = sphi 0, %s203
      %s221 = sphi 0, %s221
      %s223 = sphi 0, %s221
      %s224 = sphi 0, %s223
      %s238 = sphi 0, %s224
      %s242 = sphi 0, %s242
      %s244 = sphi 0, %s242
      %s245 = sphi 0, %s244
      %s259 = sphi 0, %s245
      %s263 = sphi 0, %s263
      %s265 = sphi 0, %s263
      %s266 = sphi 0, %s265
      %s280 = sphi 0, %s266
      %s286 = sphi 0, %s288
      %s289 = sphi 0, %s286
      %s290 = sphi 0, %s289
      %s306 = sphi 0, %s290
    $region4: #{elmo_token_embedder_forward.1} parent=1 // loop_header_branch
      %22 = sbr.rel (%p20) target = $region8
    $region5: #{elmo_token_embedder_forward.1} parent=1 // loop_body
      %s24 = ssub.s32 %s19, 1
      %s25 = ssub.s32 %s19, 2
      %s26 = sadd.s32 %s19, 1
      %s27 = ssub.s32 %s19, %s26
      %p28 = scmp.eq.s32.totalorder %s27, 0
      %s30 = sadd.s32 %s29, 1
      %s31 = scalar_select %p28, %s29, %s30
      %p34 = pneg %p28
      %p35 = scmp.eq.s32.totalorder %s19, 1
      %p36 = por %p34, %p35
      %p37 = scmp.ne.s32.totalorder %s29, %s32
      %p38 = scmp.eq.s32.totalorder %s19, 0
      %p39 = por %p37, %p38
      %p40 = scmp.ne.s32.totalorder %s29, %s32
      %p41 = scmp.eq.s32.totalorder %s24, 1
      %p42 = por %p40, %p41
      %p43 = scmp.ne.s32.totalorder %s32, %s33
      %p44 = scmp.eq.s32.totalorder %s24, 0
      %p45 = por %p43, %p44
      %p46 = scmp.ne.s32.totalorder %s32, %s33
      %p47 = scmp.eq.s32.totalorder %s25, 1
      %p48 = por %p46, %p47
      %p50 = scmp.ne.s32.totalorder %s33, %s49
      %p51 = scmp.eq.s32.totalorder %s25, 0
      %p52 = por %p50, %p51
      %s54 = sadd.s32 %s53, 1
      %p57 = scmp.eq.s32.totalorder %s19, 1
      %p58 = scmp.ne.s32.totalorder %s53, %s55
      %p59 = scmp.eq.s32.totalorder %s19, 0
      %p60 = por %p58, %p59
      %p61 = scmp.ne.s32.totalorder %s53, %s55
      %p62 = scmp.eq.s32.totalorder %s24, 1
      %p63 = por %p61, %p62
      %p64 = scmp.ne.s32.totalorder %s55, %s56
      %p65 = scmp.eq.s32.totalorder %s24, 0
      %p66 = por %p64, %p65
      %p67 = scmp.ne.s32.totalorder %s55, %s56
      %p68 = scmp.eq.s32.totalorder %s25, 1
      %p69 = por %p67, %p68
      %p71 = scmp.ne.s32.totalorder %s56, %s70
      %p72 = scmp.eq.s32.totalorder %s25, 0
      %p73 = por %p71, %p72
      %s75 = sadd.s32 %s74, 1
      %p78 = scmp.eq.s32.totalorder %s19, 1
      %p79 = scmp.ne.s32.totalorder %s74, %s76
      %p80 = scmp.eq.s32.totalorder %s19, 0
      %p81 = por %p79, %p80
      %p82 = scmp.ne.s32.totalorder %s74, %s76
      %p83 = scmp.eq.s32.totalorder %s24, 1
      %p84 = por %p82, %p83
      %p85 = scmp.ne.s32.totalorder %s76, %s77
      %p86 = scmp.eq.s32.totalorder %s24, 0
      %p87 = por %p85, %p86
      %p88 = scmp.ne.s32.totalorder %s76, %s77
      %p89 = scmp.eq.s32.totalorder %s25, 1
      %p90 = por %p88, %p89
      %p92 = scmp.ne.s32.totalorder %s77, %s91
      %p93 = scmp.eq.s32.totalorder %s25, 0
      %p94 = por %p92, %p93
      %s96 = sadd.s32 %s95, 1
      %p99 = scmp.eq.s32.totalorder %s19, 1
      %p100 = scmp.ne.s32.totalorder %s95, %s97
      %p101 = scmp.eq.s32.totalorder %s19, 0
      %p102 = por %p100, %p101
      %p103 = scmp.ne.s32.totalorder %s95, %s97
      %p104 = scmp.eq.s32.totalorder %s24, 1
      %p105 = por %p103, %p104
      %p106 = scmp.ne.s32.totalorder %s97, %s98
      %p107 = scmp.eq.s32.totalorder %s24, 0
      %p108 = por %p106, %p107
      %p109 = scmp.ne.s32.totalorder %s97, %s98
      %p110 = scmp.eq.s32.totalorder %s25, 1
      %p111 = por %p109, %p110
      %p113 = scmp.ne.s32.totalorder %s98, %s112
      %p114 = scmp.eq.s32.totalorder %s25, 0
      %p115 = por %p113, %p114
      %s117 = sadd.s32 %s116, 1
      %p120 = scmp.eq.s32.totalorder %s19, 1
      %p121 = scmp.ne.s32.totalorder %s116, %s118
      %p122 = scmp.eq.s32.totalorder %s19, 0
      %p123 = por %p121, %p122
      %p124 = scmp.ne.s32.totalorder %s116, %s118
      %p125 = scmp.eq.s32.totalorder %s24, 1
      %p126 = por %p124, %p125
      %p127 = scmp.ne.s32.totalorder %s118, %s119
      %p128 = scmp.eq.s32.totalorder %s24, 0
      %p129 = por %p127, %p128
      %p130 = scmp.ne.s32.totalorder %s118, %s119
      %p131 = scmp.eq.s32.totalorder %s25, 1
      %p132 = por %p130, %p131
      %p134 = scmp.ne.s32.totalorder %s119, %s133
      %p135 = scmp.eq.s32.totalorder %s25, 0
      %p136 = por %p134, %p135
      %s138 = sadd.s32 %s137, 1
      %p141 = scmp.eq.s32.totalorder %s19, 1
      %p142 = scmp.ne.s32.totalorder %s137, %s139
      %p143 = scmp.eq.s32.totalorder %s19, 0
      %p144 = por %p142, %p143
      %p145 = scmp.ne.s32.totalorder %s137, %s139
      %p146 = scmp.eq.s32.totalorder %s24, 1
      %p147 = por %p145, %p146
      %p148 = scmp.ne.s32.totalorder %s139, %s140
      %p149 = scmp.eq.s32.totalorder %s24, 0
      %p150 = por %p148, %p149
      %p151 = scmp.ne.s32.totalorder %s139, %s140
      %p152 = scmp.eq.s32.totalorder %s25, 1
      %p153 = por %p151, %p152
      %p155 = scmp.ne.s32.totalorder %s140, %s154
      %p156 = scmp.eq.s32.totalorder %s25, 0
      %p157 = por %p155, %p156
      %s159 = sadd.s32 %s158, 1
      %p162 = scmp.eq.s32.totalorder %s19, 1
      %p163 = scmp.ne.s32.totalorder %s158, %s160
      %p164 = scmp.eq.s32.totalorder %s19, 0
      %p165 = por %p163, %p164
      %p166 = scmp.ne.s32.totalorder %s158, %s160
      %p167 = scmp.eq.s32.totalorder %s24, 1
      %p168 = por %p166, %p167
      %p169 = scmp.ne.s32.totalorder %s160, %s161
      %p170 = scmp.eq.s32.totalorder %s24, 0
      %p171 = por %p169, %p170
      %p172 = scmp.ne.s32.totalorder %s160, %s161
      %p173 = scmp.eq.s32.totalorder %s25, 1
      %p174 = por %p172, %p173
      %p176 = scmp.ne.s32.totalorder %s161, %s175
      %p177 = scmp.eq.s32.totalorder %s25, 0
      %p178 = por %p176, %p177
      %s180 = sadd.s32 %s179, 1
      %p183 = scmp.eq.s32.totalorder %s19, 1
      %p184 = scmp.ne.s32.totalorder %s179, %s181
      %p185 = scmp.eq.s32.totalorder %s19, 0
      %p186 = por %p184, %p185
      %p187 = scmp.ne.s32.totalorder %s179, %s181
      %p188 = scmp.eq.s32.totalorder %s24, 1
      %p189 = por %p187, %p188
      %p190 = scmp.ne.s32.totalorder %s181, %s182
      %p191 = scmp.eq.s32.totalorder %s24, 0
      %p192 = por %p190, %p191
      %p193 = scmp.ne.s32.totalorder %s181, %s182
      %p194 = scmp.eq.s32.totalorder %s25, 1
      %p195 = por %p193, %p194
      %p197 = scmp.ne.s32.totalorder %s182, %s196
      %p198 = scmp.eq.s32.totalorder %s25, 0
      %p199 = por %p197, %p198
      %s201 = sadd.s32 %s200, 1
      %p204 = scmp.eq.s32.totalorder %s19, 1
      %p205 = scmp.ne.s32.totalorder %s200, %s202
      %p206 = scmp.eq.s32.totalorder %s19, 0
      %p207 = por %p205, %p206
      %p208 = scmp.ne.s32.totalorder %s200, %s202
      %p209 = scmp.eq.s32.totalorder %s24, 1
      %p210 = por %p208, %p209
      %p211 = scmp.ne.s32.totalorder %s202, %s203
      %p212 = scmp.eq.s32.totalorder %s24, 0
      %p213 = por %p211, %p212
      %p214 = scmp.ne.s32.totalorder %s202, %s203
      %p215 = scmp.eq.s32.totalorder %s25, 1
      %p216 = por %p214, %p215
      %p218 = scmp.ne.s32.totalorder %s203, %s217
      %p219 = scmp.eq.s32.totalorder %s25, 0
      %p220 = por %p218, %p219
      %s222 = sadd.s32 %s221, 1
      %p225 = scmp.eq.s32.totalorder %s19, 1
      %p226 = scmp.ne.s32.totalorder %s221, %s223
      %p227 = scmp.eq.s32.totalorder %s19, 0
      %p228 = por %p226, %p227
      %p229 = scmp.ne.s32.totalorder %s221, %s223
      %p230 = scmp.eq.s32.totalorder %s24, 1
      %p231 = por %p229, %p230
      %p232 = scmp.ne.s32.totalorder %s223, %s224
      %p233 = scmp.eq.s32.totalorder %s24, 0
      %p234 = por %p232, %p233
      %p235 = scmp.ne.s32.totalorder %s223, %s224
      %p236 = scmp.eq.s32.totalorder %s25, 1
      %p237 = por %p235, %p236
      %p239 = scmp.ne.s32.totalorder %s224, %s238
      %p240 = scmp.eq.s32.totalorder %s25, 0
      %p241 = por %p239, %p240
      %s243 = sadd.s32 %s242, 1
      %p246 = scmp.eq.s32.totalorder %s19, 1
      %p247 = scmp.ne.s32.totalorder %s242, %s244
      %p248 = scmp.eq.s32.totalorder %s19, 0
      %p249 = por %p247, %p248
      %p250 = scmp.ne.s32.totalorder %s242, %s244
      %p251 = scmp.eq.s32.totalorder %s24, 1
      %p252 = por %p250, %p251
      %p253 = scmp.ne.s32.totalorder %s244, %s245
      %p254 = scmp.eq.s32.totalorder %s24, 0
      %p255 = por %p253, %p254
      %p256 = scmp.ne.s32.totalorder %s244, %s245
      %p257 = scmp.eq.s32.totalorder %s25, 1
      %p258 = por %p256, %p257
      %p260 = scmp.ne.s32.totalorder %s245, %s259
      %p261 = scmp.eq.s32.totalorder %s25, 0
      %p262 = por %p260, %p261
      %s264 = sadd.s32 %s263, 1
      %p267 = scmp.eq.s32.totalorder %s19, 1
      %p268 = scmp.ne.s32.totalorder %s263, %s265
      %p269 = scmp.eq.s32.totalorder %s19, 0
      %p270 = por %p268, %p269
      %p271 = scmp.ne.s32.totalorder %s263, %s265
      %p272 = scmp.eq.s32.totalorder %s24, 1
      %p273 = por %p271, %p272
      %p274 = scmp.ne.s32.totalorder %s265, %s266
      %p275 = scmp.eq.s32.totalorder %s24, 0
      %p276 = por %p274, %p275
      %p277 = scmp.ne.s32.totalorder %s265, %s266
      %p278 = scmp.eq.s32.totalorder %s25, 1
      %p279 = por %p277, %p278
      %p281 = scmp.ne.s32.totalorder %s266, %s280
      %p282 = scmp.eq.s32.totalorder %s25, 0
      %p283 = por %p281, %p282
      %s284 = ssub.s32 %s19, %s26
      %p285 = scmp.eq.s32.totalorder %s284, 0
      %s287 = sadd.s32 %s286, 1
      %s288 = scalar_select %p285, %s286, %s287
      %p291 = pneg %p285
      %p292 = scmp.eq.s32.totalorder %s19, 1
      %p293 = por %p291, %p292
      %p294 = scmp.ne.s32.totalorder %s286, %s289
      %p295 = scmp.eq.s32.totalorder %s19, 0
      %p296 = por %p294, %p295
      %p297 = scmp.ne.s32.totalorder %s286, %s289
      %p298 = scmp.eq.s32.totalorder %s24, 1
      %p299 = por %p297, %p298
      %p300 = scmp.ne.s32.totalorder %s289, %s290
      %p301 = scmp.eq.s32.totalorder %s24, 0
      %p302 = por %p300, %p301
      %p303 = scmp.ne.s32.totalorder %s289, %s290
      %p304 = scmp.eq.s32.totalorder %s25, 1
      %p305 = por %p303, %p304
      %p307 = scmp.ne.s32.totalorder %s290, %s306
      %p308 = scmp.eq.s32.totalorder %s25, 0
      %p309 = por %p307, %p308
      %p310 = scmp.le.s32.totalorder 1, %s19
      %p311 = scmp.lt.s32.totalorder %s19, 3
      %p312 = pnand %p310, %p311
      %p313 = pneg %p312
      // Predicated region
      $region9: #{elmo_token_embedder_forward.1} parent=5 // pred_check
        _
      $region10: #{elmo_token_embedder_forward.1} parent=5 // pred_check_branch
        %315 = sbr.rel (%p312) target = $region12
      $region11: #{elmo_token_embedder_forward.1} parent=5 // pred_region
        %s316 = ssub.s32 %s19, 1
        // Predicated region
        $region13: #{elmo_token_embedder_forward.1} parent=11 // pred_check
          %p317 = pneg %p66
        $region14: #{elmo_token_embedder_forward.1} parent=11 // pred_check_branch
          %319 = sbr.rel (%p317) target = $region16
        $region15: #{elmo_token_embedder_forward.1} parent=11 // pred_region
          _
        $region16: #{elmo_token_embedder_forward.1} parent=11 // pred_fallthru
          _
        // Predicated region
        $region17: #{elmo_token_embedder_forward.1} parent=11 // pred_check
          %p320 = pneg %p87
        $region18: #{elmo_token_embedder_forward.1} parent=11 // pred_check_branch
          %322 = sbr.rel (%p320) target = $region20
        $region19: #{elmo_token_embedder_forward.1} parent=11 // pred_region
          _
        $region20: #{elmo_token_embedder_forward.1} parent=11 // pred_fallthru
          _
        // Predicated region
        $region21: #{elmo_token_embedder_forward.1} parent=11 // pred_check
          %p323 = pneg %p108
        $region22: #{elmo_token_embedder_forward.1} parent=11 // pred_check_branch
          %325 = sbr.rel (%p323) target = $region24
        $region23: #{elmo_token_embedder_forward.1} parent=11 // pred_region
          _
        $region24: #{elmo_token_embedder_forward.1} parent=11 // pred_fallthru
          _
        // Predicated region
        $region25: #{elmo_token_embedder_forward.1} parent=11 // pred_check
          %p326 = pneg %p129
        $region26: #{elmo_token_embedder_forward.1} parent=11 // pred_check_branch
          %328 = sbr.rel (%p326) target = $region28
        $region27: #{elmo_token_embedder_forward.1} parent=11 // pred_region
          _
        $region28: #{elmo_token_embedder_forward.1} parent=11 // pred_fallthru
          _
        // Predicated region
        $region29: #{elmo_token_embedder_forward.1} parent=11 // pred_check
          %p329 = pneg %p150
        $region30: #{elmo_token_embedder_forward.1} parent=11 // pred_check_branch
          %331 = sbr.rel (%p329) target = $region32
        $region31: #{elmo_token_embedder_forward.1} parent=11 // pred_region
          _
        $region32: #{elmo_token_embedder_forward.1} parent=11 // pred_fallthru
          _
        // Predicated region
        $region33: #{elmo_token_embedder_forward.1} parent=11 // pred_check
          %p332 = pneg %p171
        $region34: #{elmo_token_embedder_forward.1} parent=11 // pred_check_branch
          %334 = sbr.rel (%p332) target = $region36
        $region35: #{elmo_token_embedder_forward.1} parent=11 // pred_region
          _
        $region36: #{elmo_token_embedder_forward.1} parent=11 // pred_fallthru
          _
        // Predicated region
        $region37: #{elmo_token_embedder_forward.1} parent=11 // pred_check
          %p335 = pneg %p192
        $region38: #{elmo_token_embedder_forward.1} parent=11 // pred_check_branch
          %337 = sbr.rel (%p335) target = $region40
        $region39: #{elmo_token_embedder_forward.1} parent=11 // pred_region
          _
        $region40: #{elmo_token_embedder_forward.1} parent=11 // pred_fallthru
          _
        // Predicated region
        $region41: #{elmo_token_embedder_forward.1} parent=11 // pred_check
          %p338 = pneg %p213
        $region42: #{elmo_token_embedder_forward.1} parent=11 // pred_check_branch
          %340 = sbr.rel (%p338) target = $region44
        $region43: #{elmo_token_embedder_forward.1} parent=11 // pred_region
          _
        $region44: #{elmo_token_embedder_forward.1} parent=11 // pred_fallthru
          _
        // Predicated region
        $region45: #{elmo_token_embedder_forward.1} parent=11 // pred_check
          %p341 = pneg %p234
        $region46: #{elmo_token_embedder_forward.1} parent=11 // pred_check_branch
          %343 = sbr.rel (%p341) target = $region48
        $region47: #{elmo_token_embedder_forward.1} parent=11 // pred_region
          _
        $region48: #{elmo_token_embedder_forward.1} parent=11 // pred_fallthru
          _
        // Predicated region
        $region49: #{elmo_token_embedder_forward.1} parent=11 // pred_check
          %p344 = pneg %p255
        $region50: #{elmo_token_embedder_forward.1} parent=11 // pred_check_branch
          %346 = sbr.rel (%p344) target = $region52
        $region51: #{elmo_token_embedder_forward.1} parent=11 // pred_region
          _
        $region52: #{elmo_token_embedder_forward.1} parent=11 // pred_fallthru
          _
        // Predicated region
        $region53: #{elmo_token_embedder_forward.1} parent=11 // pred_check
          %p347 = pneg %p276
        $region54: #{elmo_token_embedder_forward.1} parent=11 // pred_check_branch
          %349 = sbr.rel (%p347) target = $region56
        $region55: #{elmo_token_embedder_forward.1} parent=11 // pred_region
          %s351 = ssub.s32 16, 16
          %352 = vsyncadd [#allocation6], %s351
          %s354 = sshll.u32 %s11, 4
          %s355 = int_to_ptr.vmem [resolvable:$true] %s354
          %357 = dma.vmem_to_smem %s355, 16, [#allocation5], [#allocation6]
        $region56: #{elmo_token_embedder_forward.1} parent=11 // pred_fallthru
          _
      $region12: #{elmo_token_embedder_forward.1} parent=5 // pred_fallthru
        _
      %p358 = scmp.lt.s32.totalorder %s19, 2
      // Predicated region
      $region57: #{elmo_token_embedder_forward.1} parent=5 // pred_check
        %p359 = pneg %p358
      $region58: #{elmo_token_embedder_forward.1} parent=5 // pred_check_branch
        %361 = sbr.rel (%p359) target = $region60
      $region59: #{elmo_token_embedder_forward.1} parent=5 // pred_region
        // Predicated region
        $region61: #{elmo_token_embedder_forward.1} parent=59 // pred_check
          %p362 = pneg %p39
        $region62: #{elmo_token_embedder_forward.1} parent=59 // pred_check_branch
          %364 = sbr.rel (%p362) target = $region64
        $region63: #{elmo_token_embedder_forward.1} parent=59 // pred_region
          %p365 = scmp.lt.s32.totalorder %s19, 1
          %s366 = scalar_select %p365, %s19, 1
          %s367 = smul.addr %s366, 112
          %s368 = smul.addr %s367, 4
          %s369 = scalar_lea.vmem %s0, %s368
        $region64: #{elmo_token_embedder_forward.1} parent=59 // pred_fallthru
          _
      $region60: #{elmo_token_embedder_forward.1} parent=5 // pred_fallthru
        _
      %p370 = scmp.le.s32.totalorder 1, %s19
      %p371 = scmp.lt.s32.totalorder %s19, 3
      %p372 = pnand %p370, %p371
      %p373 = pneg %p372
      // Predicated region
      $region65: #{elmo_token_embedder_forward.1} parent=5 // pred_check
        _
      $region66: #{elmo_token_embedder_forward.1} parent=5 // pred_check_branch
        %375 = sbr.rel (%p372) target = $region68
      $region67: #{elmo_token_embedder_forward.1} parent=5 // pred_region
        %s376 = ssub.s32 %s19, 1
        // Predicated region
        $region69: #{elmo_token_embedder_forward.1} parent=67 // pred_check
          %p377 = pneg %p276
        $region70: #{elmo_token_embedder_forward.1} parent=67 // pred_check_branch
          %379 = sbr.rel (%p377) target = $region72
        $region71: #{elmo_token_embedder_forward.1} parent=67 // pred_region
          %380 = dma.done [#allocation6], 16
        $region72: #{elmo_token_embedder_forward.1} parent=67 // pred_fallthru
          _
        %381 = sfence
        %p382 = scmp.lt.s32.totalorder %s24, 1
        %s383 = scalar_select %p382, %s24, 1
        %s384 = smul.addr %s383, 112
        %s385 = smul.addr %s384, 4
        %s386 = scalar_lea.vmem %s0, %s385
        %p387 = pneg %p45
        %p388 = pneg %p42
        %p389 = pneg %p66
        %p390 = pneg %p63
        %p391 = pneg %p87
        %p392 = pneg %p84
        %p393 = pneg %p108
        %p394 = pneg %p105
        %p395 = pneg %p129
        %p396 = pneg %p126
        %p397 = pneg %p150
        %p398 = pneg %p147
        %p399 = pneg %p171
        %p400 = pneg %p168
        %p401 = pneg %p192
        %p402 = pneg %p189
        %p403 = pneg %p213
        %p404 = pneg %p210
        %p405 = pneg %p234
        %p406 = pneg %p231
        %p407 = pneg %p255
        %p408 = pneg %p252
        %p409 = pneg %p276
        %p410 = pneg %p273
        %p411 = pneg %p302
        %p412 = pneg %p299
        %p413 = scmp.lt.s32.totalorder %s24, 1
        %s414 = scalar_select %p413, %s24, 1
        %s415 = smul.addr %s414, 2
        %s416 = smul.addr %s415, 8
        %s417 = scalar_lea.vmem %s12, %s416
        %p418 = scmp.lt.s32.totalorder %s24, 1
        %s419 = scalar_select %p418, %s24, 1
        %s420 = smul.addr %s419, 112
        %s421 = smul.addr %s420, 4
        %s422 = scalar_lea.vmem %s0, %s421
        %p423 = scmp.lt.s32.totalorder %s24, 1
        %s424 = scalar_select %p423, %s24, 1
        %s425 = smul.addr %s424, 2
        %s426 = smul.addr %s425, 8
        %s427 = scalar_lea.vmem %s12, %s426
        %v429 = vld [vmem:[%s422] sm:$0xf]
        %v430 = vld [vmem:[%s422 + $0x4] sm:$0xf]
        %v431 = vld [vmem:[%s422 + $0x8] sm:$0xf]
        %v432 = vld [vmem:[%s422 + $0xc] sm:$0xf]
        %v433 = vld [vmem:[%s422 + $0x10] sm:$0xf]
        %v434 = vld [vmem:[%s422 + $0x14] sm:$0xf]
        %v435 = vld [vmem:[%s422 + $0x18] sm:$0xf]
        %v436 = vld [vmem:[%s422 + $0x1c] sm:$0xf]
        %v437 = vld [vmem:[%s422 + $0x20] sm:$0xf]
        %v438 = vld [vmem:[%s422 + $0x24] sm:$0xf]
        %v439 = vld [vmem:[%s422 + $0x28] sm:$0xf]
        %v440 = vld [vmem:[%s422 + $0x2c] sm:$0xf]
        %v441 = vld [vmem:[%s422 + $0x30] sm:$0xf]
        %v442 = vld [vmem:[%s422 + $0x34] sm:$0xf]
        %v443 = vld [vmem:[%s422 + $0x38] sm:$0xf]
        %v444 = vld [vmem:[%s422 + $0x3c] sm:$0xf]
        %v445 = vld [vmem:[%s422 + $0x40] sm:$0xf]
        %v446 = vld [vmem:[%s422 + $0x44] sm:$0xf]
        %v447 = vld [vmem:[%s422 + $0x48] sm:$0xf]
        %v448 = vld [vmem:[%s422 + $0x4c] sm:$0xf]
        %v449 = vld [vmem:[%s422 + $0x50] sm:$0xf]
        %v450 = vld [vmem:[%s422 + $0x54] sm:$0xf]
        %v451 = vld [vmem:[%s422 + $0x58] sm:$0xf]
        %v452 = vld [vmem:[%s422 + $0x5c] sm:$0xf]
        %v453 = vld [vmem:[%s422 + $0x60] sm:$0xf]
        %v454 = vld [vmem:[%s422 + $0x64] sm:$0xf]
        %v455 = vld [vmem:[%s422 + $0x68] sm:$0xf]
        %v456 = vld [vmem:[%s422 + $0x6c] sm:$0xf]
        %v457 = vld [vmem:[%s422 + $0x70] sm:$0xf]
        %v458 = vld [vmem:[%s422 + $0x74] sm:$0xf]
        %v459 = vld [vmem:[%s422 + $0x78] sm:$0xf]
        %v460 = vld [vmem:[%s422 + $0x7c] sm:$0xf]
        %v461 = vld [vmem:[%s422 + $0x80] sm:$0xf]
        %v462 = vld [vmem:[%s422 + $0x84] sm:$0xf]
        %v463 = vld [vmem:[%s422 + $0x88] sm:$0xf]
        %v464 = vld [vmem:[%s422 + $0x8c] sm:$0xf]
        %v465 = vld [vmem:[%s422 + $0x90] sm:$0xf]
        %v466 = vld [vmem:[%s422 + $0x94] sm:$0xf]
        %v467 = vld [vmem:[%s422 + $0x98] sm:$0xf]
        %v468 = vld [vmem:[%s422 + $0x9c] sm:$0xf]
        %v469 = vld [vmem:[%s422 + $0xa0] sm:$0xf]
        %v470 = vld [vmem:[%s422 + $0xa4] sm:$0xf]
        %v471 = vld [vmem:[%s422 + $0xa8] sm:$0xf]
        %v472 = vld [vmem:[%s422 + $0xac] sm:$0xf]
        %v473 = vld [vmem:[%s422 + $0xb0] sm:$0xf]
        %v474 = vld [vmem:[%s422 + $0xb4] sm:$0xf]
        %v475 = vld [vmem:[%s422 + $0xb8] sm:$0xf]
        %v476 = vld [vmem:[%s422 + $0xbc] sm:$0xf]
        %v477 = vld [vmem:[%s422 + $0xc0] sm:$0xf]
        %v478 = vld [vmem:[%s422 + $0xc4] sm:$0xf]
        %v479 = vld [vmem:[%s422 + $0xc8] sm:$0xf]
        %v480 = vld [vmem:[%s422 + $0xcc] sm:$0xf]
        %v481 = vld [vmem:[%s422 + $0xd0] sm:$0xf]
        %v482 = vld [vmem:[%s422 + $0xd4] sm:$0xf]
        %v483 = vld [vmem:[%s422 + $0xd8] sm:$0xf]
        %v484 = vld [vmem:[%s422 + $0xdc] sm:$0xf]
        %v485 = vld [vmem:[%s422 + $0xe0] sm:$0xf]
        %v486 = vld [vmem:[%s422 + $0xe4] sm:$0xf]
        %v487 = vld [vmem:[%s422 + $0xe8] sm:$0xf]
        %v488 = vld [vmem:[%s422 + $0xec] sm:$0xf]
        %v489 = vld [vmem:[%s422 + $0xf0] sm:$0xf]
        %v490 = vld [vmem:[%s422 + $0xf4] sm:$0xf]
        %v491 = vld [vmem:[%s422 + $0xf8] sm:$0xf]
        %v492 = vld [vmem:[%s422 + $0xfc] sm:$0xf]
        %v493 = vld [vmem:[%s422 + $0x100] sm:$0xf]
        %v494 = vld [vmem:[%s422 + $0x104] sm:$0xf]
        %v495 = vld [vmem:[%s422 + $0x108] sm:$0xf]
        %v496 = vld [vmem:[%s422 + $0x10c] sm:$0xf]
        %v497 = vld [vmem:[%s422 + $0x110] sm:$0xf]
        %v498 = vld [vmem:[%s422 + $0x114] sm:$0xf]
        %v499 = vld [vmem:[%s422 + $0x118] sm:$0xf]
        %v500 = vld [vmem:[%s422 + $0x11c] sm:$0xf]
        %v501 = vld [vmem:[%s422 + $0x120] sm:$0xf]
        %v502 = vld [vmem:[%s422 + $0x124] sm:$0xf]
        %v503 = vld [vmem:[%s422 + $0x128] sm:$0xf]
        %v504 = vld [vmem:[%s422 + $0x12c] sm:$0xf]
        %v505 = vld [vmem:[%s422 + $0x130] sm:$0xf]
        %v506 = vld [vmem:[%s422 + $0x134] sm:$0xf]
        %v507 = vld [vmem:[%s422 + $0x138] sm:$0xf]
        %v508 = vld [vmem:[%s422 + $0x13c] sm:$0xf]
        %v509 = vld [vmem:[%s422 + $0x140] sm:$0xf]
        %v510 = vld [vmem:[%s422 + $0x144] sm:$0xf]
        %v511 = vld [vmem:[%s422 + $0x148] sm:$0xf]
        %v512 = vld [vmem:[%s422 + $0x14c] sm:$0xf]
        %v513 = vld [vmem:[%s422 + $0x150] sm:$0xf]
        %v514 = vld [vmem:[%s422 + $0x154] sm:$0xf]
        %v515 = vld [vmem:[%s422 + $0x158] sm:$0xf]
        %v516 = vld [vmem:[%s422 + $0x15c] sm:$0xf]
        %v517 = vld [vmem:[%s422 + $0x160] sm:$0xf]
        %v518 = vld [vmem:[%s422 + $0x164] sm:$0xf]
        %v519 = vld [vmem:[%s422 + $0x168] sm:$0xf]
        %v520 = vld [vmem:[%s422 + $0x16c] sm:$0xf]
        %v521 = vld [vmem:[%s422 + $0x170] sm:$0xf]
        %v522 = vld [vmem:[%s422 + $0x174] sm:$0xf]
        %v523 = vld [vmem:[%s422 + $0x178] sm:$0xf]
        %v524 = vld [vmem:[%s422 + $0x17c] sm:$0xf]
        %v525 = vld [vmem:[%s422 + $0x180] sm:$0xf]
        %v526 = vld [vmem:[%s422 + $0x184] sm:$0xf]
        %v527 = vld [vmem:[%s422 + $0x188] sm:$0xf]
        %v528 = vld [vmem:[%s422 + $0x18c] sm:$0xf]
        %v529 = vld [vmem:[%s422 + $0x190] sm:$0xf]
        %v530 = vld [vmem:[%s422 + $0x194] sm:$0xf]
        %v531 = vld [vmem:[%s422 + $0x198] sm:$0xf]
        %v532 = vld [vmem:[%s422 + $0x19c] sm:$0xf]
        %v533 = vld [vmem:[%s422 + $0x1a0] sm:$0xf]
        %v534 = vld [vmem:[%s422 + $0x1a4] sm:$0xf]
        %v535 = vld [vmem:[%s422 + $0x1a8] sm:$0xf]
        %v536 = vld [vmem:[%s422 + $0x1ac] sm:$0xf]
        %v537 = vld [vmem:[%s422 + $0x1b0] sm:$0xf]
        %v538 = vld [vmem:[%s422 + $0x1b4] sm:$0xf]
        %v539 = vld [vmem:[%s422 + $0x1b8] sm:$0xf]
        %v540 = vld [vmem:[%s422 + $0x1bc] sm:$0xf]
        %v541 = vld [vmem:[%s2] sm:$0xf]
        %v542 = vld [vmem:[%s2 + $0x4] sm:$0xf]
        %v543 = vld [vmem:[%s2 + $0x8] sm:$0xf]
        %v544 = vld [vmem:[%s2 + $0xc] sm:$0xf]
        %v545 = vld [vmem:[%s2 + $0x10] sm:$0xf]
        %v546 = vld [vmem:[%s2 + $0x14] sm:$0xf]
        %v547 = vld [vmem:[%s2 + $0x18] sm:$0xf]
        %v548 = vld [vmem:[%s2 + $0x1c] sm:$0xf]
        %v661 = vunpack.c.l.b16 %v429
        %v662 = vunpack.c.l.b16 %v430
        %v663 = vunpack.c.l.b16 %v431
        %v664 = vunpack.c.l.b16 %v432
        %v665 = vunpack.c.l.b16 %v433
        %v666 = vunpack.c.l.b16 %v434
        %v667 = vunpack.c.l.b16 %v435
        %v668 = vunpack.c.l.b16 %v436
        %v669 = vunpack.c.l.b16 %v437
        %v670 = vunpack.c.l.b16 %v438
        %v671 = vunpack.c.l.b16 %v439
        %v672 = vunpack.c.l.b16 %v440
        %v673 = vunpack.c.l.b16 %v441
        %v674 = vunpack.c.l.b16 %v442
        %v675 = vunpack.c.l.b16 %v443
        %v676 = vunpack.c.l.b16 %v444
        %v677 = vunpack.c.l.b16 %v445
        %v678 = vunpack.c.l.b16 %v446
        %v679 = vunpack.c.l.b16 %v447
        %v680 = vunpack.c.l.b16 %v448
        %v681 = vunpack.c.l.b16 %v449
        %v682 = vunpack.c.l.b16 %v450
        %v683 = vunpack.c.l.b16 %v451
        %v684 = vunpack.c.l.b16 %v452
        %v685 = vunpack.c.l.b16 %v453
        %v686 = vunpack.c.l.b16 %v454
        %v687 = vunpack.c.l.b16 %v455
        %v688 = vunpack.c.l.b16 %v456
        %v689 = vunpack.c.l.b16 %v457
        %v690 = vunpack.c.l.b16 %v458
        %v691 = vunpack.c.l.b16 %v459
        %v692 = vunpack.c.l.b16 %v460
        %v693 = vunpack.c.l.b16 %v461
        %v694 = vunpack.c.l.b16 %v462
        %v695 = vunpack.c.l.b16 %v463
        %v696 = vunpack.c.l.b16 %v464
        %v697 = vunpack.c.l.b16 %v465
        %v698 = vunpack.c.l.b16 %v466
        %v699 = vunpack.c.l.b16 %v467
        %v700 = vunpack.c.l.b16 %v468
        %v701 = vunpack.c.l.b16 %v469
        %v702 = vunpack.c.l.b16 %v470
        %v703 = vunpack.c.l.b16 %v471
        %v704 = vunpack.c.l.b16 %v472
        %v705 = vunpack.c.l.b16 %v473
        %v706 = vunpack.c.l.b16 %v474
        %v707 = vunpack.c.l.b16 %v475
        %v708 = vunpack.c.l.b16 %v476
        %v709 = vunpack.c.l.b16 %v477
        %v710 = vunpack.c.l.b16 %v478
        %v711 = vunpack.c.l.b16 %v479
        %v712 = vunpack.c.l.b16 %v480
        %v713 = vunpack.c.l.b16 %v481
        %v714 = vunpack.c.l.b16 %v482
        %v715 = vunpack.c.l.b16 %v483
        %v716 = vunpack.c.l.b16 %v484
        %v717 = vunpack.c.l.b16 %v485
        %v718 = vunpack.c.l.b16 %v486
        %v719 = vunpack.c.l.b16 %v487
        %v720 = vunpack.c.l.b16 %v488
        %v721 = vunpack.c.l.b16 %v489
        %v722 = vunpack.c.l.b16 %v490
        %v723 = vunpack.c.l.b16 %v491
        %v724 = vunpack.c.l.b16 %v492
        %v725 = vunpack.c.l.b16 %v493
        %v726 = vunpack.c.l.b16 %v494
        %v727 = vunpack.c.l.b16 %v495
        %v728 = vunpack.c.l.b16 %v496
        %v729 = vunpack.c.l.b16 %v497
        %v730 = vunpack.c.l.b16 %v498
        %v731 = vunpack.c.l.b16 %v499
        %v732 = vunpack.c.l.b16 %v500
        %v733 = vunpack.c.l.b16 %v501
        %v734 = vunpack.c.l.b16 %v502
        %v735 = vunpack.c.l.b16 %v503
        %v736 = vunpack.c.l.b16 %v504
        %v737 = vunpack.c.l.b16 %v505
        %v738 = vunpack.c.l.b16 %v506
        %v739 = vunpack.c.l.b16 %v507
        %v740 = vunpack.c.l.b16 %v508
        %v741 = vunpack.c.l.b16 %v509
        %v742 = vunpack.c.l.b16 %v510
        %v743 = vunpack.c.l.b16 %v511
        %v744 = vunpack.c.l.b16 %v512
        %v745 = vunpack.c.l.b16 %v513
        %v746 = vunpack.c.l.b16 %v514
        %v747 = vunpack.c.l.b16 %v515
        %v748 = vunpack.c.l.b16 %v516
        %v749 = vunpack.c.l.b16 %v517
        %v750 = vunpack.c.l.b16 %v518
        %v751 = vunpack.c.l.b16 %v519
        %v752 = vunpack.c.l.b16 %v520
        %v753 = vunpack.c.l.b16 %v521
        %v754 = vunpack.c.l.b16 %v522
        %v755 = vunpack.c.l.b16 %v523
        %v756 = vunpack.c.l.b16 %v524
        %v757 = vunpack.c.l.b16 %v525
        %v758 = vunpack.c.l.b16 %v526
        %v759 = vunpack.c.l.b16 %v527
        %v760 = vunpack.c.l.b16 %v528
        %v761 = vunpack.c.l.b16 %v529
        %v762 = vunpack.c.l.b16 %v530
        %v763 = vunpack.c.l.b16 %v531
        %v764 = vunpack.c.l.b16 %v532
        %v765 = vunpack.c.l.b16 %v533
        %v766 = vunpack.c.l.b16 %v534
        %v767 = vunpack.c.l.b16 %v535
        %v768 = vunpack.c.l.b16 %v536
        %v769 = vunpack.c.l.b16 %v537
        %v770 = vunpack.c.l.b16 %v538
        %v771 = vunpack.c.l.b16 %v539
        %v772 = vunpack.c.l.b16 %v540
        %v773 = vpack.c.b16 %v662, %v661
        %v774 = vpack.c.b16 %v664, %v663
        %v775 = vpack.c.b16 %v666, %v665
        %v776 = vpack.c.b16 %v668, %v667
        %v777 = vpack.c.b16 %v670, %v669
        %v778 = vpack.c.b16 %v672, %v671
        %v779 = vpack.c.b16 %v674, %v673
        %v780 = vpack.c.b16 %v676, %v675
        %v781 = vpack.c.b16 %v678, %v677
        %v782 = vpack.c.b16 %v680, %v679
        %v783 = vpack.c.b16 %v682, %v681
        %v784 = vpack.c.b16 %v684, %v683
        %v785 = vpack.c.b16 %v686, %v685
        %v786 = vpack.c.b16 %v688, %v687
        %v787 = vpack.c.b16 %v690, %v689
        %v788 = vpack.c.b16 %v692, %v691
        %v789 = vpack.c.b16 %v694, %v693
        %v790 = vpack.c.b16 %v696, %v695
        %v791 = vpack.c.b16 %v698, %v697
        %v792 = vpack.c.b16 %v700, %v699
        %v793 = vpack.c.b16 %v702, %v701
        %v794 = vpack.c.b16 %v704, %v703
        %v795 = vpack.c.b16 %v706, %v705
        %v796 = vpack.c.b16 %v708, %v707
        %v797 = vpack.c.b16 %v710, %v709
        %v798 = vpack.c.b16 %v712, %v711
        %v799 = vpack.c.b16 %v714, %v713
        %v800 = vpack.c.b16 %v716, %v715
        %v801 = vpack.c.b16 %v718, %v717
        %v802 = vpack.c.b16 %v720, %v719
        %v803 = vpack.c.b16 %v722, %v721
        %v804 = vpack.c.b16 %v724, %v723
        %v805 = vpack.c.b16 %v726, %v725
        %v806 = vpack.c.b16 %v728, %v727
        %v807 = vpack.c.b16 %v730, %v729
        %v808 = vpack.c.b16 %v732, %v731
        %v809 = vpack.c.b16 %v734, %v733
        %v810 = vpack.c.b16 %v736, %v735
        %v811 = vpack.c.b16 %v738, %v737
        %v812 = vpack.c.b16 %v740, %v739
        %v813 = vpack.c.b16 %v742, %v741
        %v814 = vpack.c.b16 %v744, %v743
        %v815 = vpack.c.b16 %v746, %v745
        %v816 = vpack.c.b16 %v748, %v747
        %v817 = vpack.c.b16 %v750, %v749
        %v818 = vpack.c.b16 %v752, %v751
        %v819 = vpack.c.b16 %v754, %v753
        %v820 = vpack.c.b16 %v756, %v755
        %v821 = vpack.c.b16 %v758, %v757
        %v822 = vpack.c.b16 %v760, %v759
        %v823 = vpack.c.b16 %v762, %v761
        %v824 = vpack.c.b16 %v764, %v763
        %v825 = vpack.c.b16 %v766, %v765
        %v826 = vpack.c.b16 %v768, %v767
        %v827 = vpack.c.b16 %v770, %v769
        %v828 = vpack.c.b16 %v772, %v771
        %v837 = vunpack.c.l.b16 %v541
        %v838 = vunpack.c.l.b16 %v542
        %v839 = vunpack.c.l.b16 %v543
        %v840 = vunpack.c.l.b16 %v544
        %v841 = vunpack.c.l.b16 %v545
        %v842 = vunpack.c.l.b16 %v546
        %v843 = vunpack.c.l.b16 %v547
        %v844 = vunpack.c.l.b16 %v548
        %v845 = vpack.c.b16 %v838, %v837
        %v846 = vpack.c.b16 %v840, %v839
        %v847 = vpack.c.b16 %v842, %v841
        %v848 = vpack.c.b16 %v844, %v843
        %vm853 = vcmask 523264
        %v855 = vsel %vm853, %v773, 0
        %v858 = vsel %vm853, %v774, 0
        %v861 = vsel %vm853, %v775, 0
        %v864 = vsel %vm853, %v776, 0
        %v867 = vsel %vm853, %v777, 0
        %v870 = vsel %vm853, %v778, 0
        %v873 = vsel %vm853, %v779, 0
        %v876 = vsel %vm853, %v780, 0
        %v879 = vsel %vm853, %v781, 0
        %v882 = vsel %vm853, %v782, 0
        %v885 = vsel %vm853, %v783, 0
        %v888 = vsel %vm853, %v784, 0
        %v891 = vsel %vm853, %v785, 0
        %v894 = vsel %vm853, %v786, 0
        %v897 = vsel %vm853, %v787, 0
        %v900 = vsel %vm853, %v788, 0
        %v903 = vsel %vm853, %v789, 0
        %v906 = vsel %vm853, %v790, 0
        %v909 = vsel %vm853, %v791, 0
        %v912 = vsel %vm853, %v792, 0
        %v915 = vsel %vm853, %v793, 0
        %v918 = vsel %vm853, %v794, 0
        %v921 = vsel %vm853, %v795, 0
        %v924 = vsel %vm853, %v796, 0
        %v927 = vsel %vm853, %v797, 0
        %v930 = vsel %vm853, %v798, 0
        %v933 = vsel %vm853, %v799, 0
        %v936 = vsel %vm853, %v800, 0
        %v939 = vsel %vm853, %v801, 0
        %v942 = vsel %vm853, %v802, 0
        %v945 = vsel %vm853, %v803, 0
        %v948 = vsel %vm853, %v804, 0
        %v951 = vsel %vm853, %v805, 0
        %v954 = vsel %vm853, %v806, 0
        %v957 = vsel %vm853, %v807, 0
        %v960 = vsel %vm853, %v808, 0
        %v963 = vsel %vm853, %v809, 0
        %v966 = vsel %vm853, %v810, 0
        %v969 = vsel %vm853, %v811, 0
        %v972 = vsel %vm853, %v812, 0
        %v975 = vsel %vm853, %v813, 0
        %v978 = vsel %vm853, %v814, 0
        %v981 = vsel %vm853, %v815, 0
        %v984 = vsel %vm853, %v816, 0
        %v987 = vsel %vm853, %v817, 0
        %v990 = vsel %vm853, %v818, 0
        %v993 = vsel %vm853, %v819, 0
        %v996 = vsel %vm853, %v820, 0
        %v999 = vsel %vm853, %v821, 0
        %v1002 = vsel %vm853, %v822, 0
        %v1005 = vsel %vm853, %v823, 0
        %v1008 = vsel %vm853, %v824, 0
        %v1011 = vsel %vm853, %v825, 0
        %v1014 = vsel %vm853, %v826, 0
        %v1017 = vsel %vm853, %v827, 0
        %v1020 = vsel %vm853, %v828, 0
        %1022 = vmatprep.subr.bf16.mxu0 0
        %1023 = vmatpush1.bf16.msra.mxu0 %v845
        %1024 = vmatprep.subr.bf16.mxu0 0
        %1025 = vmatpush1.bf16.msra.mxu0 %v846
        %1026 = vmatprep.subr.bf16.mxu0 0
        %1027 = vmatpush1.bf16.msra.mxu0 %v847
        %1028 = vmatprep.subr.bf16.mxu0 0
        %1029 = vmatpush1.bf16.msra.mxu0 %v848
        %1030 = vmatprep.subr.bf16.mxu0 0
        %1031 = vmatpush1.bf16.msra.mxu0 0
        %1032 = vmatprep.subr.bf16.mxu0 0
        %1033 = vmatpush1.bf16.msra.mxu0 0
        %1034 = vmatprep.subr.bf16.mxu0 0
        %1035 = vmatpush1.bf16.msra.mxu0 0
        %1036 = vmatprep.subr.bf16.mxu0 0
        %1037 = vmatpush1.bf16.msra.mxu0 0
        %1038 = vmatprep.subr.bf16.mxu0 0
        %1039 = vmatpush1.bf16.msra.mxu0 0
        %1040 = vmatprep.subr.bf16.mxu0 0
        %1041 = vmatpush1.bf16.msra.mxu0 0
        %1042 = vmatprep.subr.bf16.mxu0 0
        %1043 = vmatpush1.bf16.msra.mxu0 0
        %1044 = vmatprep.subr.bf16.mxu0 0
        %1045 = vmatpush1.bf16.msra.mxu0 0
        %1046 = vmatprep.subr.bf16.mxu0 0
        %1047 = vmatpush1.bf16.msra.mxu0 0
        %1048 = vmatprep.subr.bf16.mxu0 0
        %1049 = vmatpush1.bf16.msra.mxu0 0
        %1050 = vmatprep.subr.bf16.mxu0 0
        %1051 = vmatpush1.bf16.msra.mxu0 0
        %1052 = vmatprep.subr.bf16.mxu0 0
        %1053 = vmatpush1.bf16.msra.mxu0 0
        %1054 = vmatprep.mubr.bf16.mxu0 0
        %1055 = vmatmul.mubr.bf16.gmra.mrb[0].mxu0 %v855
        %v1056 = vpop.f32.mrb[0].mxu0
        %v1057 = vadd.f32 0.0, %v1056
        %v1058 = vpop.f32.mrb[0].mxu0
        %v1059 = vpop.f32.mrb[0].mxu0
        %v1060 = vadd.f32 0.0, %v1059
        %v1061 = vpop.f32.mrb[0].mxu0
        %1062 = vmatprep.mubr.bf16.mxu0 0
        %1063 = vmatmul.mubr.bf16.gmra.mrb[0].mxu0 %v858
        %v1064 = vpop.f32.mrb[0].mxu0
        %v1065 = vadd.f32 0.0, %v1064
        %v1066 = vpop.f32.mrb[0].mxu0
        %v1067 = vpop.f32.mrb[0].mxu0
        %v1068 = vadd.f32 0.0, %v1067
        %v1069 = vpop.f32.mrb[0].mxu0
        %1070 = vmatprep.mubr.bf16.mxu0 0
        %1071 = vmatmul.mubr.bf16.gmra.mrb[0].mxu0 %v861
        %v1072 = vpop.f32.mrb[0].mxu0
        %v1073 = vadd.f32 0.0, %v1072
        %v1074 = vpop.f32.mrb[0].mxu0
        %v1075 = vpop.f32.mrb[0].mxu0
        %v1076 = vadd.f32 0.0, %v1075
        %v1077 = vpop.f32.mrb[0].mxu0
        %1078 = vmatprep.mubr.bf16.mxu0 0
        %1079 = vmatmul.mubr.bf16.gmra.mrb[0].mxu0 %v864
        %v1080 = vpop.f32.mrb[0].mxu0
        %v1081 = vadd.f32 0.0, %v1080
        %v1082 = vpop.f32.mrb[0].mxu0
        %v1083 = vpop.f32.mrb[0].mxu0
        %v1084 = vadd.f32 0.0, %v1083
        %v1085 = vpop.f32.mrb[0].mxu0
        %1086 = vmatprep.mubr.bf16.mxu0 0
        %1087 = vmatmul.mubr.bf16.gmra.mrb[0].mxu0 %v867
        %v1088 = vpop.f32.mrb[0].mxu0
        %v1089 = vadd.f32 0.0, %v1088
        %v1090 = vpop.f32.mrb[0].mxu0
        %v1091 = vpop.f32.mrb[0].mxu0
        %v1092 = vadd.f32 0.0, %v1091
        %v1093 = vpop.f32.mrb[0].mxu0
        %1094 = vmatprep.mubr.bf16.mxu0 0
        %1095 = vmatmul.mubr.bf16.gmra.mrb[0].mxu0 %v870
        %v1096 = vpop.f32.mrb[0].mxu0
        %v1097 = vadd.f32 0.0, %v1096
        %v1098 = vpop.f32.mrb[0].mxu0
        %v1099 = vpop.f32.mrb[0].mxu0
        %v1100 = vadd.f32 0.0, %v1099
        %v1101 = vpop.f32.mrb[0].mxu0
        %1102 = vmatprep.mubr.bf16.mxu0 0
        %1103 = vmatmul.mubr.bf16.gmra.mrb[0].mxu0 %v873
        %v1104 = vpop.f32.mrb[0].mxu0
        %v1105 = vadd.f32 0.0, %v1104
        %v1106 = vpop.f32.mrb[0].mxu0
        %v1107 = vpop.f32.mrb[0].mxu0
        %v1108 = vadd.f32 0.0, %v1107
        %v1109 = vpop.f32.mrb[0].mxu0
        %1110 = vmatprep.mubr.bf16.mxu0 0
        %1111 = vmatmul.mubr.bf16.gmra.mrb[0].mxu0 %v876
        %v1112 = vpop.f32.mrb[0].mxu0
        %v1113 = vadd.f32 0.0, %v1112
        %v1114 = vpop.f32.mrb[0].mxu0
        %v1115 = vpop.f32.mrb[0].mxu0
        %v1116 = vadd.f32 0.0, %v1115
        %v1117 = vpop.f32.mrb[0].mxu0
        %1118 = vmatprep.mubr.bf16.mxu0 0
        %1119 = vmatmul.mubr.bf16.gmra.mrb[0].mxu0 %v879
        %v1120 = vpop.f32.mrb[0].mxu0
        %v1121 = vadd.f32 0.0, %v1120
        %v1122 = vpop.f32.mrb[0].mxu0
        %v1123 = vpop.f32.mrb[0].mxu0
        %v1124 = vadd.f32 0.0, %v1123
        %v1125 = vpop.f32.mrb[0].mxu0
        %1126 = vmatprep.mubr.bf16.mxu0 0
        %1127 = vmatmul.mubr.bf16.gmra.mrb[0].mxu0 %v882
        %v1128 = vpop.f32.mrb[0].mxu0
        %v1129 = vadd.f32 0.0, %v1128
        %v1130 = vpop.f32.mrb[0].mxu0
        %v1131 = vpop.f32.mrb[0].mxu0
        %v1132 = vadd.f32 0.0, %v1131
        %v1133 = vpop.f32.mrb[0].mxu0
        %1134 = vmatprep.mubr.bf16.mxu0 0
        %1135 = vmatmul.mubr.bf16.gmra.mrb[0].mxu0 %v885
        %v1136 = vpop.f32.mrb[0].mxu0
        %v1137 = vadd.f32 0.0, %v1136
        %v1138 = vpop.f32.mrb[0].mxu0
        %v1139 = vpop.f32.mrb[0].mxu0
        %v1140 = vadd.f32 0.0, %v1139
        %v1141 = vpop.f32.mrb[0].mxu0
        %1142 = vmatprep.mubr.bf16.mxu0 0
        %1143 = vmatmul.mubr.bf16.gmra.mrb[0].mxu0 %v888
        %v1144 = vpop.f32.mrb[0].mxu0
        %v1145 = vadd.f32 0.0, %v1144
        %v1146 = vpop.f32.mrb[0].mxu0
        %v1147 = vpop.f32.mrb[0].mxu0
        %v1148 = vadd.f32 0.0, %v1147
        %v1149 = vpop.f32.mrb[0].mxu0
        %1150 = vmatprep.mubr.bf16.mxu0 0
        %1151 = vmatmul.mubr.bf16.gmra.mrb[0].mxu0 %v891
        %v1152 = vpop.f32.mrb[0].mxu0
        %v1153 = vadd.f32 0.0, %v1152
        %v1154 = vpop.f32.mrb[0].mxu0
        %v1155 = vpop.f32.mrb[0].mxu0
        %v1156 = vadd.f32 0.0, %v1155
        %v1157 = vpop.f32.mrb[0].mxu0
        %1158 = vmatprep.mubr.bf16.mxu0 0
        %1159 = vmatmul.mubr.bf16.gmra.mrb[0].mxu0 %v894
        %v1160 = vpop.f32.mrb[0].mxu0
        %v1161 = vadd.f32 0.0, %v1160
        %v1162 = vpop.f32.mrb[0].mxu0
        %v1163 = vpop.f32.mrb[0].mxu0
        %v1164 = vadd.f32 0.0, %v1163
        %v1165 = vpop.f32.mrb[0].mxu0
        %1166 = vmatprep.mubr.bf16.mxu0 0
        %1167 = vmatmul.mubr.bf16.gmra.mrb[0].mxu0 %v897
        %v1168 = vpop.f32.mrb[0].mxu0
        %v1169 = vadd.f32 0.0, %v1168
        %v1170 = vpop.f32.mrb[0].mxu0
        %v1171 = vpop.f32.mrb[0].mxu0
        %v1172 = vadd.f32 0.0, %v1171
        %v1173 = vpop.f32.mrb[0].mxu0
        %1174 = vmatprep.mubr.bf16.mxu0 0
        %1175 = vmatmul.mubr.bf16.gmra.mrb[0].mxu0 %v900
        %v1176 = vpop.f32.mrb[0].mxu0
        %v1177 = vadd.f32 0.0, %v1176
        %v1178 = vpop.f32.mrb[0].mxu0
        %v1179 = vpop.f32.mrb[0].mxu0
        %v1180 = vadd.f32 0.0, %v1179
        %v1181 = vpop.f32.mrb[0].mxu0
        %1182 = vmatprep.mubr.bf16.mxu0 0
        %1183 = vmatmul.mubr.bf16.gmra.mrb[0].mxu0 %v903
        %v1184 = vpop.f32.mrb[0].mxu0
        %v1185 = vadd.f32 0.0, %v1184
        %v1186 = vpop.f32.mrb[0].mxu0
        %v1187 = vpop.f32.mrb[0].mxu0
        %v1188 = vadd.f32 0.0, %v1187
        %v1189 = vpop.f32.mrb[0].mxu0
        %1190 = vmatprep.mubr.bf16.mxu0 0
        %1191 = vmatmul.mubr.bf16.gmra.mrb[0].mxu0 %v906
        %v1192 = vpop.f32.mrb[0].mxu0
        %v1193 = vadd.f32 0.0, %v1192
        %v1194 = vpop.f32.mrb[0].mxu0
        %v1195 = vpop.f32.mrb[0].mxu0
        %v1196 = vadd.f32 0.0, %v1195
        %v1197 = vpop.f32.mrb[0].mxu0
        %1198 = vmatprep.mubr.bf16.mxu0 0
        %1199 = vmatmul.mubr.bf16.gmra.mrb[0].mxu0 %v909
        %v1200 = vpop.f32.mrb[0].mxu0
        %v1201 = vadd.f32 0.0, %v1200
        %v1202 = vpop.f32.mrb[0].mxu0
        %v1203 = vpop.f32.mrb[0].mxu0
        %v1204 = vadd.f32 0.0, %v1203
        %v1205 = vpop.f32.mrb[0].mxu0
        %1206 = vmatprep.mubr.bf16.mxu0 0
        %1207 = vmatmul.mubr.bf16.gmra.mrb[0].mxu0 %v912
        %v1208 = vpop.f32.mrb[0].mxu0
        %v1209 = vadd.f32 0.0, %v1208
        %v1210 = vpop.f32.mrb[0].mxu0
        %v1211 = vpop.f32.mrb[0].mxu0
        %v1212 = vadd.f32 0.0, %v1211
        %v1213 = vpop.f32.mrb[0].mxu0
        %1214 = vmatprep.mubr.bf16.mxu0 0
        %1215 = vmatmul.mubr.bf16.gmra.mrb[0].mxu0 %v915
        %v1216 = vpop.f32.mrb[0].mxu0
        %v1217 = vadd.f32 0.0, %v1216
        %v1218 = vpop.f32.mrb[0].mxu0
        %v1219 = vpop.f32.mrb[0].mxu0
        %v1220 = vadd.f32 0.0, %v1219
        %v1221 = vpop.f32.mrb[0].mxu0
        %1222 = vmatprep.mubr.bf16.mxu0 0
        %1223 = vmatmul.mubr.bf16.gmra.mrb[0].mxu0 %v918
        %v1224 = vpop.f32.mrb[0].mxu0
        %v1225 = vadd.f32 0.0, %v1224
        %v1226 = vpop.f32.mrb[0].mxu0
        %v1227 = vpop.f32.mrb[0].mxu0
        %v1228 = vadd.f32 0.0, %v1227
        %v1229 = vpop.f32.mrb[0].mxu0
        %1230 = vmatprep.mubr.bf16.mxu0 0
        %1231 = vmatmul.mubr.bf16.gmra.mrb[0].mxu0 %v921
        %v1232 = vpop.f32.mrb[0].mxu0
        %v1233 = vadd.f32 0.0, %v1232
        %v1234 = vpop.f32.mrb[0].mxu0
        %v1235 = vpop.f32.mrb[0].mxu0
        %v1236 = vadd.f32 0.0, %v1235
        %v1237 = vpop.f32.mrb[0].mxu0
        %1238 = vmatprep.mubr.bf16.mxu0 0
        %1239 = vmatmul.mubr.bf16.gmra.mrb[0].mxu0 %v924
        %v1240 = vpop.f32.mrb[0].mxu0
        %v1241 = vadd.f32 0.0, %v1240
        %v1242 = vpop.f32.mrb[0].mxu0
        %v1243 = vpop.f32.mrb[0].mxu0
        %v1244 = vadd.f32 0.0, %v1243
        %v1245 = vpop.f32.mrb[0].mxu0
        %1246 = vmatprep.mubr.bf16.mxu0 0
        %1247 = vmatmul.mubr.bf16.gmra.mrb[0].mxu0 %v927
        %v1248 = vpop.f32.mrb[0].mxu0
        %v1249 = vadd.f32 0.0, %v1248
        %v1250 = vpop.f32.mrb[0].mxu0
        %v1251 = vpop.f32.mrb[0].mxu0
        %v1252 = vadd.f32 0.0, %v1251
        %v1253 = vpop.f32.mrb[0].mxu0
        %1254 = vmatprep.mubr.bf16.mxu0 0
        %1255 = vmatmul.mubr.bf16.gmra.mrb[0].mxu0 %v930
        %v1256 = vpop.f32.mrb[0].mxu0
        %v1257 = vadd.f32 0.0, %v1256
        %v1258 = vpop.f32.mrb[0].mxu0
        %v1259 = vpop.f32.mrb[0].mxu0
        %v1260 = vadd.f32 0.0, %v1259
        %v1261 = vpop.f32.mrb[0].mxu0
        %1262 = vmatprep.mubr.bf16.mxu0 0
        %1263 = vmatmul.mubr.bf16.gmra.mrb[0].mxu0 %v933
        %v1264 = vpop.f32.mrb[0].mxu0
        %v1265 = vadd.f32 0.0, %v1264
        %v1266 = vpop.f32.mrb[0].mxu0
        %v1267 = vpop.f32.mrb[0].mxu0
        %v1268 = vadd.f32 0.0, %v1267
        %v1269 = vpop.f32.mrb[0].mxu0
        %1270 = vmatprep.mubr.bf16.mxu0 0
        %1271 = vmatmul.mubr.bf16.gmra.mrb[0].mxu0 %v936
        %v1272 = vpop.f32.mrb[0].mxu0
        %v1273 = vadd.f32 0.0, %v1272
        %v1274 = vpop.f32.mrb[0].mxu0
        %v1275 = vpop.f32.mrb[0].mxu0
        %v1276 = vadd.f32 0.0, %v1275
        %v1277 = vpop.f32.mrb[0].mxu0
        %1278 = vmatprep.mubr.bf16.mxu0 0
        %1279 = vmatmul.mubr.bf16.gmra.mrb[0].mxu0 %v939
        %v1280 = vpop.f32.mrb[0].mxu0
        %v1281 = vadd.f32 0.0, %v1280
        %v1282 = vpop.f32.mrb[0].mxu0
        %v1283 = vpop.f32.mrb[0].mxu0
        %v1284 = vadd.f32 0.0, %v1283
        %v1285 = vpop.f32.mrb[0].mxu0
        %1286 = vmatprep.mubr.bf16.mxu0 0
        %1287 = vmatmul.mubr.bf16.gmra.mrb[0].mxu0 %v942
        %v1288 = vpop.f32.mrb[0].mxu0
        %v1289 = vadd.f32 0.0, %v1288
        %v1290 = vpop.f32.mrb[0].mxu0
        %v1291 = vpop.f32.mrb[0].mxu0
        %v1292 = vadd.f32 0.0, %v1291
        %v1293 = vpop.f32.mrb[0].mxu0
        %1294 = vmatprep.mubr.bf16.mxu0 0
        %1295 = vmatmul.mubr.bf16.gmra.mrb[0].mxu0 %v945
        %v1296 = vpop.f32.mrb[0].mxu0
        %v1297 = vadd.f32 0.0, %v1296
        %v1298 = vpop.f32.mrb[0].mxu0
        %v1299 = vpop.f32.mrb[0].mxu0
        %v1300 = vadd.f32 0.0, %v1299
        %v1301 = vpop.f32.mrb[0].mxu0
        %1302 = vmatprep.mubr.bf16.mxu0 0
        %1303 = vmatmul.mubr.bf16.gmra.mrb[0].mxu0 %v948
        %v1304 = vpop.f32.mrb[0].mxu0
        %v1305 = vadd.f32 0.0, %v1304
        %v1306 = vpop.f32.mrb[0].mxu0
        %v1307 = vpop.f32.mrb[0].mxu0
        %v1308 = vadd.f32 0.0, %v1307
        %v1309 = vpop.f32.mrb[0].mxu0
        %1310 = vmatprep.mubr.bf16.mxu0 0
        %1311 = vmatmul.mubr.bf16.gmra.mrb[0].mxu0 %v951
        %v1312 = vpop.f32.mrb[0].mxu0
        %v1313 = vadd.f32 0.0, %v1312
        %v1314 = vpop.f32.mrb[0].mxu0
        %v1315 = vpop.f32.mrb[0].mxu0
        %v1316 = vadd.f32 0.0, %v1315
        %v1317 = vpop.f32.mrb[0].mxu0
        %1318 = vmatprep.mubr.bf16.mxu0 0
        %1319 = vmatmul.mubr.bf16.gmra.mrb[0].mxu0 %v954
        %v1320 = vpop.f32.mrb[0].mxu0
        %v1321 = vadd.f32 0.0, %v1320
        %v1322 = vpop.f32.mrb[0].mxu0
        %v1323 = vpop.f32.mrb[0].mxu0
        %v1324 = vadd.f32 0.0, %v1323
        %v1325 = vpop.f32.mrb[0].mxu0
        %1326 = vmatprep.mubr.bf16.mxu0 0
        %1327 = vmatmul.mubr.bf16.gmra.mrb[0].mxu0 %v957
        %v1328 = vpop.f32.mrb[0].mxu0
        %v1329 = vadd.f32 0.0, %v1328
        %v1330 = vpop.f32.mrb[0].mxu0
        %v1331 = vpop.f32.mrb[0].mxu0
        %v1332 = vadd.f32 0.0, %v1331
        %v1333 = vpop.f32.mrb[0].mxu0
        %1334 = vmatprep.mubr.bf16.mxu0 0
        %1335 = vmatmul.mubr.bf16.gmra.mrb[0].mxu0 %v960
        %v1336 = vpop.f32.mrb[0].mxu0
        %v1337 = vadd.f32 0.0, %v1336
        %v1338 = vpop.f32.mrb[0].mxu0
        %v1339 = vpop.f32.mrb[0].mxu0
        %v1340 = vadd.f32 0.0, %v1339
        %v1341 = vpop.f32.mrb[0].mxu0
        %1342 = vmatprep.mubr.bf16.mxu0 0
        %1343 = vmatmul.mubr.bf16.gmra.mrb[0].mxu0 %v963
        %v1344 = vpop.f32.mrb[0].mxu0
        %v1345 = vadd.f32 0.0, %v1344
        %v1346 = vpop.f32.mrb[0].mxu0
        %v1347 = vpop.f32.mrb[0].mxu0
        %v1348 = vadd.f32 0.0, %v1347
        %v1349 = vpop.f32.mrb[0].mxu0
        %1350 = vmatprep.mubr.bf16.mxu0 0
        %1351 = vmatmul.mubr.bf16.gmra.mrb[0].mxu0 %v966
        %v1352 = vpop.f32.mrb[0].mxu0
        %v1353 = vadd.f32 0.0, %v1352
        %v1354 = vpop.f32.mrb[0].mxu0
        %v1355 = vpop.f32.mrb[0].mxu0
        %v1356 = vadd.f32 0.0, %v1355
        %v1357 = vpop.f32.mrb[0].mxu0
        %1358 = vmatprep.mubr.bf16.mxu0 0
        %1359 = vmatmul.mubr.bf16.gmra.mrb[0].mxu0 %v969
        %v1360 = vpop.f32.mrb[0].mxu0
        %v1361 = vadd.f32 0.0, %v1360
        %v1362 = vpop.f32.mrb[0].mxu0
        %v1363 = vpop.f32.mrb[0].mxu0
        %v1364 = vadd.f32 0.0, %v1363
        %v1365 = vpop.f32.mrb[0].mxu0
        %1366 = vmatprep.mubr.bf16.mxu0 0
        %1367 = vmatmul.mubr.bf16.gmra.mrb[0].mxu0 %v972
        %v1368 = vpop.f32.mrb[0].mxu0
        %v1369 = vadd.f32 0.0, %v1368
        %v1370 = vpop.f32.mrb[0].mxu0
        %v1371 = vpop.f32.mrb[0].mxu0
        %v1372 = vadd.f32 0.0, %v1371
        %v1373 = vpop.f32.mrb[0].mxu0
        %1374 = vmatprep.mubr.bf16.mxu0 0
        %1375 = vmatmul.mubr.bf16.gmra.mrb[0].mxu0 %v975
        %v1376 = vpop.f32.mrb[0].mxu0
        %v1377 = vadd.f32 0.0, %v1376
        %v1378 = vpop.f32.mrb[0].mxu0
        %v1379 = vpop.f32.mrb[0].mxu0
        %v1380 = vadd.f32 0.0, %v1379
        %v1381 = vpop.f32.mrb[0].mxu0
        %1382 = vmatprep.mubr.bf16.mxu0 0
        %1383 = vmatmul.mubr.bf16.gmra.mrb[0].mxu0 %v978
        %v1384 = vpop.f32.mrb[0].mxu0
        %v1385 = vadd.f32 0.0, %v1384
        %v1386 = vpop.f32.mrb[0].mxu0
        %v1387 = vpop.f32.mrb[0].mxu0
        %v1388 = vadd.f32 0.0, %v1387
        %v1389 = vpop.f32.mrb[0].mxu0
        %1390 = vmatprep.mubr.bf16.mxu0 0
        %1391 = vmatmul.mubr.bf16.gmra.mrb[0].mxu0 %v981
        %v1392 = vpop.f32.mrb[0].mxu0
        %v1393 = vadd.f32 0.0, %v1392
        %v1394 = vpop.f32.mrb[0].mxu0
        %v1395 = vpop.f32.mrb[0].mxu0
        %v1396 = vadd.f32 0.0, %v1395
        %v1397 = vpop.f32.mrb[0].mxu0
        %1398 = vmatprep.mubr.bf16.mxu0 0
        %1399 = vmatmul.mubr.bf16.gmra.mrb[0].mxu0 %v984
        %v1400 = vpop.f32.mrb[0].mxu0
        %v1401 = vadd.f32 0.0, %v1400
        %v1402 = vpop.f32.mrb[0].mxu0
        %v1403 = vpop.f32.mrb[0].mxu0
        %v1404 = vadd.f32 0.0, %v1403
        %v1405 = vpop.f32.mrb[0].mxu0
        %1406 = vmatprep.mubr.bf16.mxu0 0
        %1407 = vmatmul.mubr.bf16.gmra.mrb[0].mxu0 %v987
        %v1408 = vpop.f32.mrb[0].mxu0
        %v1409 = vadd.f32 0.0, %v1408
        %v1410 = vpop.f32.mrb[0].mxu0
        %v1411 = vpop.f32.mrb[0].mxu0
        %v1412 = vadd.f32 0.0, %v1411
        %v1413 = vpop.f32.mrb[0].mxu0
        %1414 = vmatprep.mubr.bf16.mxu0 0
        %1415 = vmatmul.mubr.bf16.gmra.mrb[0].mxu0 %v990
        %v1416 = vpop.f32.mrb[0].mxu0
        %v1417 = vadd.f32 0.0, %v1416
        %v1418 = vpop.f32.mrb[0].mxu0
        %v1419 = vpop.f32.mrb[0].mxu0
        %v1420 = vadd.f32 0.0, %v1419
        %v1421 = vpop.f32.mrb[0].mxu0
        %1422 = vmatprep.mubr.bf16.mxu0 0
        %1423 = vmatmul.mubr.bf16.gmra.mrb[0].mxu0 %v993
        %v1424 = vpop.f32.mrb[0].mxu0
        %v1425 = vadd.f32 0.0, %v1424
        %v1426 = vpop.f32.mrb[0].mxu0
        %v1427 = vpop.f32.mrb[0].mxu0
        %v1428 = vadd.f32 0.0, %v1427
        %v1429 = vpop.f32.mrb[0].mxu0
        %1430 = vmatprep.mubr.bf16.mxu0 0
        %1431 = vmatmul.mubr.bf16.gmra.mrb[0].mxu0 %v996
        %v1432 = vpop.f32.mrb[0].mxu0
        %v1433 = vadd.f32 0.0, %v1432
        %v1434 = vpop.f32.mrb[0].mxu0
        %v1435 = vpop.f32.mrb[0].mxu0
        %v1436 = vadd.f32 0.0, %v1435
        %v1437 = vpop.f32.mrb[0].mxu0
        %1438 = vmatprep.mubr.bf16.mxu0 0
        %1439 = vmatmul.mubr.bf16.gmra.mrb[0].mxu0 %v999
        %v1440 = vpop.f32.mrb[0].mxu0
        %v1441 = vadd.f32 0.0, %v1440
        %v1442 = vpop.f32.mrb[0].mxu0
        %v1443 = vpop.f32.mrb[0].mxu0
        %v1444 = vadd.f32 0.0, %v1443
        %v1445 = vpop.f32.mrb[0].mxu0
        %1446 = vmatprep.mubr.bf16.mxu0 0
        %1447 = vmatmul.mubr.bf16.gmra.mrb[0].mxu0 %v1002
        %v1448 = vpop.f32.mrb[0].mxu0
        %v1449 = vadd.f32 0.0, %v1448
        %v1450 = vpop.f32.mrb[0].mxu0
        %v1451 = vpop.f32.mrb[0].mxu0
        %v1452 = vadd.f32 0.0, %v1451
        %v1453 = vpop.f32.mrb[0].mxu0
        %1454 = vmatprep.mubr.bf16.mxu0 0
        %1455 = vmatmul.mubr.bf16.gmra.mrb[0].mxu0 %v1005
        %v1456 = vpop.f32.mrb[0].mxu0
        %v1457 = vadd.f32 0.0, %v1456
        %v1458 = vpop.f32.mrb[0].mxu0
        %v1459 = vpop.f32.mrb[0].mxu0
        %v1460 = vadd.f32 0.0, %v1459
        %v1461 = vpop.f32.mrb[0].mxu0
        %1462 = vmatprep.mubr.bf16.mxu0 0
        %1463 = vmatmul.mubr.bf16.gmra.mrb[0].mxu0 %v1008
        %v1464 = vpop.f32.mrb[0].mxu0
        %v1465 = vadd.f32 0.0, %v1464
        %v1466 = vpop.f32.mrb[0].mxu0
        %v1467 = vpop.f32.mrb[0].mxu0
        %v1468 = vadd.f32 0.0, %v1467
        %v1469 = vpop.f32.mrb[0].mxu0
        %1470 = vmatprep.mubr.bf16.mxu0 0
        %1471 = vmatmul.mubr.bf16.gmra.mrb[0].mxu0 %v1011
        %v1472 = vpop.f32.mrb[0].mxu0
        %v1473 = vadd.f32 0.0, %v1472
        %v1474 = vpop.f32.mrb[0].mxu0
        %v1475 = vpop.f32.mrb[0].mxu0
        %v1476 = vadd.f32 0.0, %v1475
        %v1477 = vpop.f32.mrb[0].mxu0
        %1478 = vmatprep.mubr.bf16.mxu0 0
        %1479 = vmatmul.mubr.bf16.gmra.mrb[0].mxu0 %v1014
        %v1480 = vpop.f32.mrb[0].mxu0
        %v1481 = vadd.f32 0.0, %v1480
        %v1482 = vpop.f32.mrb[0].mxu0
        %v1483 = vpop.f32.mrb[0].mxu0
        %v1484 = vadd.f32 0.0, %v1483
        %v1485 = vpop.f32.mrb[0].mxu0
        %1486 = vmatprep.mubr.bf16.mxu0 0
        %1487 = vmatmul.mubr.bf16.gmra.mrb[0].mxu0 %v1017
        %v1488 = vpop.f32.mrb[0].mxu0
        %v1489 = vadd.f32 0.0, %v1488
        %v1490 = vpop.f32.mrb[0].mxu0
        %v1491 = vpop.f32.mrb[0].mxu0
        %v1492 = vadd.f32 0.0, %v1491
        %v1493 = vpop.f32.mrb[0].mxu0
        %1494 = vmatprep.mubr.bf16.mxu0 0
        %1495 = vmatmul.mubr.bf16.gmra.mrb[0].mxu0 %v1020
        %v1496 = vpop.f32.mrb[0].mxu0
        %v1497 = vadd.f32 0.0, %v1496
        %v1498 = vpop.f32.mrb[0].mxu0
        %v1499 = vpop.f32.mrb[0].mxu0
        %v1500 = vadd.f32 0.0, %v1499
        %v1501 = vpop.f32.mrb[0].mxu0
        %1502 = vdwg.mxu0
        %v1503 = vld [vmem:[%s1] sm:$0xff]
        %v1504 = vld [vmem:[%s1 + $0x8] sm:$0xff]
        %v1505 = vld [vmem:[%s1 + $0x10] sm:$0xff]
        %v1506 = vld [vmem:[%s1 + $0x18] sm:$0xff]
        %v1507 = vld [vmem:[%s1 + $0x20] sm:$0xff]
        %v1508 = vld [vmem:[%s1 + $0x28] sm:$0xff]
        %v1509 = vld [vmem:[%s1 + $0x30] sm:$0xff]
        %v1510 = vadd.f32 %v1057, %v1503
        %v1511 = vadd.f32 %v1060, %v1504
        %v1512 = vadd.f32 %v1065, %v1505
        %v1513 = vadd.f32 %v1068, %v1506
        %v1514 = vadd.f32 %v1073, %v1507
        %v1515 = vadd.f32 %v1076, %v1508
        %v1516 = vadd.f32 %v1081, %v1509
        %v1517 = vadd.f32 %v1084, %v1503
        %v1518 = vadd.f32 %v1089, %v1504
        %v1519 = vadd.f32 %v1092, %v1505
        %v1520 = vadd.f32 %v1097, %v1506
        %v1521 = vadd.f32 %v1100, %v1507
        %v1522 = vadd.f32 %v1105, %v1508
        %v1523 = vadd.f32 %v1108, %v1509
        %v1524 = vadd.f32 %v1113, %v1503
        %v1525 = vadd.f32 %v1116, %v1504
        %v1526 = vadd.f32 %v1121, %v1505
        %v1527 = vadd.f32 %v1124, %v1506
        %v1528 = vadd.f32 %v1129, %v1507
        %v1529 = vadd.f32 %v1132, %v1508
        %v1530 = vadd.f32 %v1137, %v1509
        %v1531 = vadd.f32 %v1140, %v1503
        %v1532 = vadd.f32 %v1145, %v1504
        %v1533 = vadd.f32 %v1148, %v1505
        %v1534 = vadd.f32 %v1153, %v1506
        %v1535 = vadd.f32 %v1156, %v1507
        %v1536 = vadd.f32 %v1161, %v1508
        %v1537 = vadd.f32 %v1164, %v1509
        %v1538 = vadd.f32 %v1169, %v1503
        %v1539 = vadd.f32 %v1172, %v1504
        %v1540 = vadd.f32 %v1177, %v1505
        %v1541 = vadd.f32 %v1180, %v1506
        %v1542 = vadd.f32 %v1185, %v1507
        %v1543 = vadd.f32 %v1188, %v1508
        %v1544 = vadd.f32 %v1193, %v1509
        %v1545 = vadd.f32 %v1196, %v1503
        %v1546 = vadd.f32 %v1201, %v1504
        %v1547 = vadd.f32 %v1204, %v1505
        %v1548 = vadd.f32 %v1209, %v1506
        %v1549 = vadd.f32 %v1212, %v1507
        %v1550 = vadd.f32 %v1217, %v1508
        %v1551 = vadd.f32 %v1220, %v1509
        %v1552 = vadd.f32 %v1225, %v1503
        %v1553 = vadd.f32 %v1228, %v1504
        %v1554 = vadd.f32 %v1233, %v1505
        %v1555 = vadd.f32 %v1236, %v1506
        %v1556 = vadd.f32 %v1241, %v1507
        %v1557 = vadd.f32 %v1244, %v1508
        %v1558 = vadd.f32 %v1249, %v1509
        %v1559 = vadd.f32 %v1252, %v1503
        %v1560 = vadd.f32 %v1257, %v1504
        %v1561 = vadd.f32 %v1260, %v1505
        %v1562 = vadd.f32 %v1265, %v1506
        %v1563 = vadd.f32 %v1268, %v1507
        %v1564 = vadd.f32 %v1273, %v1508
        %v1565 = vadd.f32 %v1276, %v1509
        %v1566 = vadd.f32 %v1281, %v1503
        %v1567 = vadd.f32 %v1284, %v1504
        %v1568 = vadd.f32 %v1289, %v1505
        %v1569 = vadd.f32 %v1292, %v1506
        %v1570 = vadd.f32 %v1297, %v1507
        %v1571 = vadd.f32 %v1300, %v1508
        %v1572 = vadd.f32 %v1305, %v1509
        %v1573 = vadd.f32 %v1308, %v1503
        %v1574 = vadd.f32 %v1313, %v1504
        %v1575 = vadd.f32 %v1316, %v1505
        %v1576 = vadd.f32 %v1321, %v1506
        %v1577 = vadd.f32 %v1324, %v1507
        %v1578 = vadd.f32 %v1329, %v1508
        %v1579 = vadd.f32 %v1332, %v1509
        %v1580 = vadd.f32 %v1337, %v1503
        %v1581 = vadd.f32 %v1340, %v1504
        %v1582 = vadd.f32 %v1345, %v1505
        %v1583 = vadd.f32 %v1348, %v1506
        %v1584 = vadd.f32 %v1353, %v1507
        %v1585 = vadd.f32 %v1356, %v1508
        %v1586 = vadd.f32 %v1361, %v1509
        %v1587 = vadd.f32 %v1364, %v1503
        %v1588 = vadd.f32 %v1369, %v1504
        %v1589 = vadd.f32 %v1372, %v1505
        %v1590 = vadd.f32 %v1377, %v1506
        %v1591 = vadd.f32 %v1380, %v1507
        %v1592 = vadd.f32 %v1385, %v1508
        %v1593 = vadd.f32 %v1388, %v1509
        %v1594 = vadd.f32 %v1393, %v1503
        %v1595 = vadd.f32 %v1396, %v1504
        %v1596 = vadd.f32 %v1401, %v1505
        %v1597 = vadd.f32 %v1404, %v1506
        %v1598 = vadd.f32 %v1409, %v1507
        %v1599 = vadd.f32 %v1412, %v1508
        %v1600 = vadd.f32 %v1417, %v1509
        %v1601 = vadd.f32 %v1420, %v1503
        %v1602 = vadd.f32 %v1425, %v1504
        %v1603 = vadd.f32 %v1428, %v1505
        %v1604 = vadd.f32 %v1433, %v1506
        %v1605 = vadd.f32 %v1436, %v1507
        %v1606 = vadd.f32 %v1441, %v1508
        %v1607 = vadd.f32 %v1444, %v1509
        %v1608 = vadd.f32 %v1449, %v1503
        %v1609 = vadd.f32 %v1452, %v1504
        %v1610 = vadd.f32 %v1457, %v1505
        %v1611 = vadd.f32 %v1460, %v1506
        %v1612 = vadd.f32 %v1465, %v1507
        %v1613 = vadd.f32 %v1468, %v1508
        %v1614 = vadd.f32 %v1473, %v1509
        %v1615 = vadd.f32 %v1476, %v1503
        %v1616 = vadd.f32 %v1481, %v1504
        %v1617 = vadd.f32 %v1484, %v1505
        %v1618 = vadd.f32 %v1489, %v1506
        %v1619 = vadd.f32 %v1492, %v1507
        %v1620 = vadd.f32 %v1497, %v1508
        %v1621 = vadd.f32 %v1500, %v1509
        %v1622 = vmax.f32 %v1510, %v1511
        %v1623 = vmax.f32 %v1622, %v1512
        %v1624 = vmax.f32 %v1623, %v1513
        %v1625 = vmax.f32 %v1624, %v1514
        %v1626 = vmax.f32 %v1625, %v1515
        %v1627 = vmax.f32 %v1626, %v1516
        %v1628 = vrot.slane %v1627, 4
        %v1629 = vmax.f32 %v1627, %v1628
        %v1630 = vrot.slane %v1629, 2
        %v1631 = vmax.f32 %v1629, %v1630
        %v1632 = vrot.slane %v1631, 1
        %v1633 = vmax.f32 %v1631, %v1632
        %v1634 = vmax.f32 %v1517, %v1518
        %v1635 = vmax.f32 %v1634, %v1519
        %v1636 = vmax.f32 %v1635, %v1520
        %v1637 = vmax.f32 %v1636, %v1521
        %v1638 = vmax.f32 %v1637, %v1522
        %v1639 = vmax.f32 %v1638, %v1523
        %v1640 = vrot.slane %v1639, 4
        %v1641 = vmax.f32 %v1639, %v1640
        %v1642 = vrot.slane %v1641, 2
        %v1643 = vmax.f32 %v1641, %v1642
        %v1644 = vrot.slane %v1643, 1
        %v1645 = vmax.f32 %v1643, %v1644
        %v1646 = vmax.f32 %v1524, %v1525
        %v1647 = vmax.f32 %v1646, %v1526
        %v1648 = vmax.f32 %v1647, %v1527
        %v1649 = vmax.f32 %v1648, %v1528
        %v1650 = vmax.f32 %v1649, %v1529
        %v1651 = vmax.f32 %v1650, %v1530
        %v1652 = vrot.slane %v1651, 4
        %v1653 = vmax.f32 %v1651, %v1652
        %v1654 = vrot.slane %v1653, 2
        %v1655 = vmax.f32 %v1653, %v1654
        %v1656 = vrot.slane %v1655, 1
        %v1657 = vmax.f32 %v1655, %v1656
        %v1658 = vmax.f32 %v1531, %v1532
        %v1659 = vmax.f32 %v1658, %v1533
        %v1660 = vmax.f32 %v1659, %v1534
        %v1661 = vmax.f32 %v1660, %v1535
        %v1662 = vmax.f32 %v1661, %v1536
        %v1663 = vmax.f32 %v1662, %v1537
        %v1664 = vrot.slane %v1663, 4
        %v1665 = vmax.f32 %v1663, %v1664
        %v1666 = vrot.slane %v1665, 2
        %v1667 = vmax.f32 %v1665, %v1666
        %v1668 = vrot.slane %v1667, 1
        %v1669 = vmax.f32 %v1667, %v1668
        %v1670 = vmax.f32 %v1538, %v1539
        %v1671 = vmax.f32 %v1670, %v1540
        %v1672 = vmax.f32 %v1671, %v1541
        %v1673 = vmax.f32 %v1672, %v1542
        %v1674 = vmax.f32 %v1673, %v1543
        %v1675 = vmax.f32 %v1674, %v1544
        %v1676 = vrot.slane %v1675, 4
        %v1677 = vmax.f32 %v1675, %v1676
        %v1678 = vrot.slane %v1677, 2
        %v1679 = vmax.f32 %v1677, %v1678
        %v1680 = vrot.slane %v1679, 1
        %v1681 = vmax.f32 %v1679, %v1680
        %v1682 = vmax.f32 %v1545, %v1546
        %v1683 = vmax.f32 %v1682, %v1547
        %v1684 = vmax.f32 %v1683, %v1548
        %v1685 = vmax.f32 %v1684, %v1549
        %v1686 = vmax.f32 %v1685, %v1550
        %v1687 = vmax.f32 %v1686, %v1551
        %v1688 = vrot.slane %v1687, 4
        %v1689 = vmax.f32 %v1687, %v1688
        %v1690 = vrot.slane %v1689, 2
        %v1691 = vmax.f32 %v1689, %v1690
        %v1692 = vrot.slane %v1691, 1
        %v1693 = vmax.f32 %v1691, %v1692
        %v1694 = vmax.f32 %v1552, %v1553
        %v1695 = vmax.f32 %v1694, %v1554
        %v1696 = vmax.f32 %v1695, %v1555
        %v1697 = vmax.f32 %v1696, %v1556
        %v1698 = vmax.f32 %v1697, %v1557
        %v1699 = vmax.f32 %v1698, %v1558
        %v1700 = vrot.slane %v1699, 4
        %v1701 = vmax.f32 %v1699, %v1700
        %v1702 = vrot.slane %v1701, 2
        %v1703 = vmax.f32 %v1701, %v1702
        %v1704 = vrot.slane %v1703, 1
        %v1705 = vmax.f32 %v1703, %v1704
        %v1706 = vmax.f32 %v1559, %v1560
        %v1707 = vmax.f32 %v1706, %v1561
        %v1708 = vmax.f32 %v1707, %v1562
        %v1709 = vmax.f32 %v1708, %v1563
        %v1710 = vmax.f32 %v1709, %v1564
        %v1711 = vmax.f32 %v1710, %v1565
        %v1712 = vrot.slane %v1711, 4
        %v1713 = vmax.f32 %v1711, %v1712
        %v1714 = vrot.slane %v1713, 2
        %v1715 = vmax.f32 %v1713, %v1714
        %v1716 = vrot.slane %v1715, 1
        %v1717 = vmax.f32 %v1715, %v1716
        %v1718 = vmax.f32 %v1566, %v1567
        %v1719 = vmax.f32 %v1718, %v1568
        %v1720 = vmax.f32 %v1719, %v1569
        %v1721 = vmax.f32 %v1720, %v1570
        %v1722 = vmax.f32 %v1721, %v1571
        %v1723 = vmax.f32 %v1722, %v1572
        %v1724 = vrot.slane %v1723, 4
        %v1725 = vmax.f32 %v1723, %v1724
        %v1726 = vrot.slane %v1725, 2
        %v1727 = vmax.f32 %v1725, %v1726
        %v1728 = vrot.slane %v1727, 1
        %v1729 = vmax.f32 %v1727, %v1728
        %v1730 = vmax.f32 %v1573, %v1574
        %v1731 = vmax.f32 %v1730, %v1575
        %v1732 = vmax.f32 %v1731, %v1576
        %v1733 = vmax.f32 %v1732, %v1577
        %v1734 = vmax.f32 %v1733, %v1578
        %v1735 = vmax.f32 %v1734, %v1579
        %v1736 = vrot.slane %v1735, 4
        %v1737 = vmax.f32 %v1735, %v1736
        %v1738 = vrot.slane %v1737, 2
        %v1739 = vmax.f32 %v1737, %v1738
        %v1740 = vrot.slane %v1739, 1
        %v1741 = vmax.f32 %v1739, %v1740
        %v1742 = vmax.f32 %v1580, %v1581
        %v1743 = vmax.f32 %v1742, %v1582
        %v1744 = vmax.f32 %v1743, %v1583
        %v1745 = vmax.f32 %v1744, %v1584
        %v1746 = vmax.f32 %v1745, %v1585
        %v1747 = vmax.f32 %v1746, %v1586
        %v1748 = vrot.slane %v1747, 4
        %v1749 = vmax.f32 %v1747, %v1748
        %v1750 = vrot.slane %v1749, 2
        %v1751 = vmax.f32 %v1749, %v1750
        %v1752 = vrot.slane %v1751, 1
        %v1753 = vmax.f32 %v1751, %v1752
        %v1754 = vmax.f32 %v1587, %v1588
        %v1755 = vmax.f32 %v1754, %v1589
        %v1756 = vmax.f32 %v1755, %v1590
        %v1757 = vmax.f32 %v1756, %v1591
        %v1758 = vmax.f32 %v1757, %v1592
        %v1759 = vmax.f32 %v1758, %v1593
        %v1760 = vrot.slane %v1759, 4
        %v1761 = vmax.f32 %v1759, %v1760
        %v1762 = vrot.slane %v1761, 2
        %v1763 = vmax.f32 %v1761, %v1762
        %v1764 = vrot.slane %v1763, 1
        %v1765 = vmax.f32 %v1763, %v1764
        %v1766 = vmax.f32 %v1594, %v1595
        %v1767 = vmax.f32 %v1766, %v1596
        %v1768 = vmax.f32 %v1767, %v1597
        %v1769 = vmax.f32 %v1768, %v1598
        %v1770 = vmax.f32 %v1769, %v1599
        %v1771 = vmax.f32 %v1770, %v1600
        %v1772 = vrot.slane %v1771, 4
        %v1773 = vmax.f32 %v1771, %v1772
        %v1774 = vrot.slane %v1773, 2
        %v1775 = vmax.f32 %v1773, %v1774
        %v1776 = vrot.slane %v1775, 1
        %v1777 = vmax.f32 %v1775, %v1776
        %v1778 = vmax.f32 %v1601, %v1602
        %v1779 = vmax.f32 %v1778, %v1603
        %v1780 = vmax.f32 %v1779, %v1604
        %v1781 = vmax.f32 %v1780, %v1605
        %v1782 = vmax.f32 %v1781, %v1606
        %v1783 = vmax.f32 %v1782, %v1607
        %v1784 = vrot.slane %v1783, 4
        %v1785 = vmax.f32 %v1783, %v1784
        %v1786 = vrot.slane %v1785, 2
        %v1787 = vmax.f32 %v1785, %v1786
        %v1788 = vrot.slane %v1787, 1
        %v1789 = vmax.f32 %v1787, %v1788
        %v1790 = vmax.f32 %v1608, %v1609
        %v1791 = vmax.f32 %v1790, %v1610
        %v1792 = vmax.f32 %v1791, %v1611
        %v1793 = vmax.f32 %v1792, %v1612
        %v1794 = vmax.f32 %v1793, %v1613
        %v1795 = vmax.f32 %v1794, %v1614
        %v1796 = vrot.slane %v1795, 4
        %v1797 = vmax.f32 %v1795, %v1796
        %v1798 = vrot.slane %v1797, 2
        %v1799 = vmax.f32 %v1797, %v1798
        %v1800 = vrot.slane %v1799, 1
        %v1801 = vmax.f32 %v1799, %v1800
        %v1802 = vmax.f32 %v1615, %v1616
        %v1803 = vmax.f32 %v1802, %v1617
        %v1804 = vmax.f32 %v1803, %v1618
        %v1805 = vmax.f32 %v1804, %v1619
        %v1806 = vmax.f32 %v1805, %v1620
        %v1807 = vmax.f32 %v1806, %v1621
        %v1808 = vrot.slane %v1807, 4
        %v1809 = vmax.f32 %v1807, %v1808
        %v1810 = vrot.slane %v1809, 2
        %v1811 = vmax.f32 %v1809, %v1810
        %v1812 = vrot.slane %v1811, 1
        %v1813 = vmax.f32 %v1811, %v1812
        %v1814 = vld [vmem:[%s3] sm:$0x1]
        %v1816 = vlaneseq
        %v1817 = vshrl.u32 %v1816, 7
        %v1818 = vsub.s32 0, %v1817
        %v1819 = vrot.slane %v1814, %v1818
        %v1821 = vadd.f32 %v1633, %v1819
        %v1822 = vadd.f32 %v1645, %v1819
        %v1823 = vadd.f32 %v1657, %v1819
        %v1824 = vadd.f32 %v1669, %v1819
        %v1825 = vadd.f32 %v1681, %v1819
        %v1826 = vadd.f32 %v1693, %v1819
        %v1827 = vadd.f32 %v1705, %v1819
        %v1828 = vadd.f32 %v1717, %v1819
        %v1829 = vadd.f32 %v1729, %v1819
        %v1830 = vadd.f32 %v1741, %v1819
        %v1831 = vadd.f32 %v1753, %v1819
        %v1832 = vadd.f32 %v1765, %v1819
        %v1833 = vadd.f32 %v1777, %v1819
        %v1834 = vadd.f32 %v1789, %v1819
        %v1835 = vadd.f32 %v1801, %v1819
        %v1836 = vadd.f32 %v1813, %v1819
        %v1837 = vmax.f32 %v1821, 0.0
        %v1838 = vmax.f32 %v1822, 0.0
        %v1839 = vmax.f32 %v1823, 0.0
        %v1840 = vmax.f32 %v1824, 0.0
        %v1841 = vmax.f32 %v1825, 0.0
        %v1842 = vmax.f32 %v1826, 0.0
        %v1843 = vmax.f32 %v1827, 0.0
        %v1844 = vmax.f32 %v1828, 0.0
        %v1845 = vmax.f32 %v1829, 0.0
        %v1846 = vmax.f32 %v1830, 0.0
        %v1847 = vmax.f32 %v1831, 0.0
        %v1848 = vmax.f32 %v1832, 0.0
        %v1849 = vmax.f32 %v1833, 0.0
        %v1850 = vmax.f32 %v1834, 0.0
        %v1851 = vmax.f32 %v1835, 0.0
        %v1852 = vmax.f32 %v1836, 0.0
        %v1853 = vpack.c.bf16 %v1837, %v1837
        %v1854 = vpack.c.bf16 %v1838, %v1838
        %v1855 = vpack.c.bf16 %v1839, %v1839
        %v1856 = vpack.c.bf16 %v1840, %v1840
        %v1857 = vpack.c.bf16 %v1841, %v1841
        %v1858 = vpack.c.bf16 %v1842, %v1842
        %v1859 = vpack.c.bf16 %v1843, %v1843
        %v1860 = vpack.c.bf16 %v1844, %v1844
        %v1861 = vpack.c.bf16 %v1845, %v1845
        %v1862 = vpack.c.bf16 %v1846, %v1846
        %v1863 = vpack.c.bf16 %v1847, %v1847
        %v1864 = vpack.c.bf16 %v1848, %v1848
        %v1865 = vpack.c.bf16 %v1849, %v1849
        %v1866 = vpack.c.bf16 %v1850, %v1850
        %v1867 = vpack.c.bf16 %v1851, %v1851
        %v1868 = vpack.c.bf16 %v1852, %v1852
        %v1869 = vld [vmem:[%s4] sm:$0xff]
        %v1870 = vld [vmem:[%s4 + $0x8] sm:$0xff]
        %v1871 = vld [vmem:[%s4 + $0x10] sm:$0xff]
        %v1872 = vld [vmem:[%s4 + $0x18] sm:$0xff]
        %v1873 = vld [vmem:[%s4 + $0x20] sm:$0xff]
        %v1874 = vld [vmem:[%s4 + $0x28] sm:$0xff]
        %v1875 = vld [vmem:[%s4 + $0x30] sm:$0xff]
        %v1876 = vld [vmem:[%s4 + $0x38] sm:$0xff]
        %v1877 = vld [vmem:[%s4 + $0x40] sm:$0xff]
        %v1878 = vld [vmem:[%s4 + $0x48] sm:$0xff]
        %v1879 = vld [vmem:[%s4 + $0x50] sm:$0xff]
        %v1880 = vld [vmem:[%s4 + $0x58] sm:$0xff]
        %v1881 = vld [vmem:[%s4 + $0x60] sm:$0xff]
        %v1882 = vld [vmem:[%s4 + $0x68] sm:$0xff]
        %v1883 = vld [vmem:[%s4 + $0x70] sm:$0xff]
        %v1884 = vld [vmem:[%s4 + $0x78] sm:$0xff]
        %v1885 = vld [vmem:[%s5] sm:$0x3]
        %v1887 = vlaneseq
        %v1888 = vshrl.u32 %v1887, 7
        %v1889 = vsub.s32 0, %v1888
        %v1890 = vrot.slane %v1885, %v1889
        %v1891 = vlaneseq
        %v1892 = vshrl.u32 %v1891, 7
        %v1893 = vsub.s32 1, %v1892
        %v1894 = vrot.slane %v1885, %v1893
        %v1913 = vunpack.c.l.b16 %v1853
        %v1914 = vunpack.c.l.b16 %v1854
        %v1915 = vunpack.c.l.b16 %v1855
        %v1916 = vunpack.c.l.b16 %v1856
        %v1917 = vunpack.c.l.b16 %v1857
        %v1918 = vunpack.c.l.b16 %v1858
        %v1919 = vunpack.c.l.b16 %v1859
        %v1920 = vunpack.c.l.b16 %v1860
        %v1921 = vunpack.c.l.b16 %v1861
        %v1922 = vunpack.c.l.b16 %v1862
        %v1923 = vunpack.c.l.b16 %v1863
        %v1924 = vunpack.c.l.b16 %v1864
        %v1925 = vunpack.c.l.b16 %v1865
        %v1926 = vunpack.c.l.b16 %v1866
        %v1927 = vunpack.c.l.b16 %v1867
        %v1928 = vunpack.c.l.b16 %v1868
        %v1929 = vrot.slane %v1914, 7
        %vm1930 = vcmask 1041409
        %v1931 = vsel %vm1930, %v1929, %v1913
        %v1932 = vrot.slane %v1915, 6
        %vm1933 = vcmask 1042434
        %v1934 = vsel %vm1933, %v1932, %v1931
        %v1935 = vrot.slane %v1916, 5
        %vm1936 = vcmask 1043459
        %v1937 = vsel %vm1936, %v1935, %v1934
        %v1938 = vrot.slane %v1917, 4
        %vm1939 = vcmask 1044484
        %v1940 = vsel %vm1939, %v1938, %v1937
        %v1941 = vrot.slane %v1918, 3
        %vm1942 = vcmask 1045509
        %v1943 = vsel %vm1942, %v1941, %v1940
        %v1944 = vrot.slane %v1919, 2
        %vm1945 = vcmask 1046534
        %v1946 = vsel %vm1945, %v1944, %v1943
        %v1947 = vrot.slane %v1920, 1
        %vm1948 = vcmask 1047559
        %v1949 = vsel %vm1948, %v1947, %v1946
        %v1950 = vrot.slane %v1922, 7
        %v1951 = vsel %vm1930, %v1950, %v1921
        %v1952 = vrot.slane %v1923, 6
        %v1953 = vsel %vm1933, %v1952, %v1951
        %v1954 = vrot.slane %v1924, 5
        %v1955 = vsel %vm1936, %v1954, %v1953
        %v1956 = vrot.slane %v1925, 4
        %v1957 = vsel %vm1939, %v1956, %v1955
        %v1958 = vrot.slane %v1926, 3
        %v1959 = vsel %vm1942, %v1958, %v1957
        %v1960 = vrot.slane %v1927, 2
        %v1961 = vsel %vm1945, %v1960, %v1959
        %v1962 = vrot.slane %v1928, 1
        %v1963 = vsel %vm1948, %v1962, %v1961
        %v1964 = vpack.c.b16 %v1963, %v1949
        %v1982 = vunpack.c.l.b16 %v1869
        %v1983 = vunpack.c.h.b16 %v1869
        %v1984 = vunpack.c.l.b16 %v1870
        %v1985 = vunpack.c.h.b16 %v1870
        %v1986 = vunpack.c.l.b16 %v1871
        %v1987 = vunpack.c.h.b16 %v1871
        %v1988 = vunpack.c.l.b16 %v1872
        %v1989 = vunpack.c.h.b16 %v1872
        %v1990 = vunpack.c.l.b16 %v1873
        %v1991 = vunpack.c.h.b16 %v1873
        %v1992 = vunpack.c.l.b16 %v1874
        %v1993 = vunpack.c.h.b16 %v1874
        %v1994 = vunpack.c.l.b16 %v1875
        %v1995 = vunpack.c.h.b16 %v1875
        %v1996 = vunpack.c.l.b16 %v1876
        %v1997 = vunpack.c.h.b16 %v1876
        %v1998 = vunpack.c.l.b16 %v1877
        %v1999 = vunpack.c.h.b16 %v1877
        %v2000 = vunpack.c.l.b16 %v1878
        %v2001 = vunpack.c.h.b16 %v1878
        %v2002 = vunpack.c.l.b16 %v1879
        %v2003 = vunpack.c.h.b16 %v1879
        %v2004 = vunpack.c.l.b16 %v1880
        %v2005 = vunpack.c.h.b16 %v1880
        %v2006 = vunpack.c.l.b16 %v1881
        %v2007 = vunpack.c.h.b16 %v1881
        %v2008 = vunpack.c.l.b16 %v1882
        %v2009 = vunpack.c.h.b16 %v1882
        %v2010 = vunpack.c.l.b16 %v1883
        %v2011 = vunpack.c.h.b16 %v1883
        %v2012 = vunpack.c.l.b16 %v1884
        %v2013 = vunpack.c.h.b16 %v1884
        %v2014 = vpack.c.b16 %v1984, %v1982
        %v2015 = vpack.c.b16 %v1985, %v1983
        %v2016 = vpack.c.b16 %v1988, %v1986
        %v2017 = vpack.c.b16 %v1989, %v1987
        %v2018 = vpack.c.b16 %v1992, %v1990
        %v2019 = vpack.c.b16 %v1993, %v1991
        %v2020 = vpack.c.b16 %v1996, %v1994
        %v2021 = vpack.c.b16 %v1997, %v1995
        %v2022 = vpack.c.b16 %v2000, %v1998
        %v2023 = vpack.c.b16 %v2001, %v1999
        %v2024 = vpack.c.b16 %v2004, %v2002
        %v2025 = vpack.c.b16 %v2005, %v2003
        %v2026 = vpack.c.b16 %v2008, %v2006
        %v2027 = vpack.c.b16 %v2009, %v2007
        %v2028 = vpack.c.b16 %v2012, %v2010
        %v2029 = vpack.c.b16 %v2013, %v2011
        %2046 = vmatprep.subr.bf16.mxu0 %v2015
        %2047 = vmatpush1.bf16.msra.mxu0 %v2014
        %2048 = vmatprep.subr.bf16.mxu0 %v2017
        %2049 = vmatpush1.bf16.msra.mxu0 %v2016
        %2050 = vmatprep.subr.bf16.mxu0 %v2019
        %2051 = vmatpush1.bf16.msra.mxu0 %v2018
        %2052 = vmatprep.subr.bf16.mxu0 %v2021
        %2053 = vmatpush1.bf16.msra.mxu0 %v2020
        %2054 = vmatprep.subr.bf16.mxu0 %v2023
        %2055 = vmatpush1.bf16.msra.mxu0 %v2022
        %2056 = vmatprep.subr.bf16.mxu0 %v2025
        %2057 = vmatpush1.bf16.msra.mxu0 %v2024
        %2058 = vmatprep.subr.bf16.mxu0 %v2027
        %2059 = vmatpush1.bf16.msra.mxu0 %v2026
        %2060 = vmatprep.subr.bf16.mxu0 %v2029
        %2061 = vmatpush1.bf16.msra.mxu0 %v2028
        %2062 = vmatprep.subr.bf16.mxu0 0
        %2063 = vmatpush1.bf16.msra.mxu0 0
        %2064 = vmatprep.subr.bf16.mxu0 0
        %2065 = vmatpush1.bf16.msra.mxu0 0
        %2066 = vmatprep.subr.bf16.mxu0 0
        %2067 = vmatpush1.bf16.msra.mxu0 0
        %2068 = vmatprep.subr.bf16.mxu0 0
        %2069 = vmatpush1.bf16.msra.mxu0 0
        %2070 = vmatprep.subr.bf16.mxu0 0
        %2071 = vmatpush1.bf16.msra.mxu0 0
        %2072 = vmatprep.subr.bf16.mxu0 0
        %2073 = vmatpush1.bf16.msra.mxu0 0
        %2074 = vmatprep.subr.bf16.mxu0 0
        %2075 = vmatpush1.bf16.msra.mxu0 0
        %2076 = vmatprep.subr.bf16.mxu0 0
        %2077 = vmatpush1.bf16.msra.mxu0 0
        %2078 = vmatprep.mubr.bf16.mxu0 0
        %2079 = vmatmul.mubr.bf16.gmra.mrb[0].mxu0 %v1964
        %v2080 = vpop.f32.mrb[0].mxu0
        %v2081 = vadd.f32 %v1890, %v2080
        %v2082 = vpop.f32.mrb[0].mxu0
        %v2083 = vadd.f32 %v1894, %v2082
        %v2084 = vpop.f32.mrb[0].mxu0
        %v2085 = vadd.f32 %v1890, %v2084
        %v2086 = vpop.f32.mrb[0].mxu0
        %v2087 = vadd.f32 %v1894, %v2086
        %2088 = vdwg.mxu0
        %v2089 = vmax.f32 %v2081, 0.0
        %v2090 = vmax.f32 %v2085, 0.0
        %v2091 = vxor.u32 %v2083, 2147483648
        %v2092 = vxor.u32 %v2087, 2147483648
        %v2093 = vmul.f32 %v2091, 1.442695
        %v2094 = vpow.pop %v2093
        %v2095 = vmul.f32 %v2092, 1.442695
        %v2096 = vpow.pop %v2095
        %v2097 = vadd.f32 %v2094, 1.0
        %v2098 = vadd.f32 %v2096, 1.0
        %v2099 = vrcp.pop %v2097
        %v2100 = vmul.f32 1.0, %v2099
        %v2101 = vrcp.pop %v2098
        %v2102 = vmul.f32 1.0, %v2101
        %v2119 = vrot.slane %v1838, 7
        %v2120 = vsel %vm1930, %v2119, %v1837
        %v2121 = vrot.slane %v1839, 6
        %v2122 = vsel %vm1933, %v2121, %v2120
        %v2123 = vrot.slane %v1840, 5
        %v2124 = vsel %vm1936, %v2123, %v2122
        %v2125 = vrot.slane %v1841, 4
        %v2126 = vsel %vm1939, %v2125, %v2124
        %v2127 = vrot.slane %v1842, 3
        %v2128 = vsel %vm1942, %v2127, %v2126
        %v2129 = vrot.slane %v1843, 2
        %v2130 = vsel %vm1945, %v2129, %v2128
        %v2131 = vrot.slane %v1844, 1
        %v2132 = vsel %vm1948, %v2131, %v2130
        %v2133 = vrot.slane %v1846, 7
        %v2134 = vsel %vm1930, %v2133, %v1845
        %v2135 = vrot.slane %v1847, 6
        %v2136 = vsel %vm1933, %v2135, %v2134
        %v2137 = vrot.slane %v1848, 5
        %v2138 = vsel %vm1936, %v2137, %v2136
        %v2139 = vrot.slane %v1849, 4
        %v2140 = vsel %vm1939, %v2139, %v2138
        %v2141 = vrot.slane %v1850, 3
        %v2142 = vsel %vm1942, %v2141, %v2140
        %v2143 = vrot.slane %v1851, 2
        %v2144 = vsel %vm1945, %v2143, %v2142
        %v2145 = vrot.slane %v1852, 1
        %v2146 = vsel %vm1948, %v2145, %v2144
        %v2149 = vmul.f32 %v2100, %v2132
        %v2150 = vmul.f32 %v2102, %v2146
        %v2151 = vsub.f32 1.0, %v2100
        %v2152 = vsub.f32 1.0, %v2102
        %v2153 = vmul.f32 %v2151, %v2089
        %v2154 = vmul.f32 %v2152, %v2090
        %v2155 = vadd.f32 %v2149, %v2153
        %v2156 = vadd.f32 %v2150, %v2154
        %v2157 = vpack.c.bf16 %v2156, %v2155
        %v2158 = vld [vmem:[%s6] sm:$0xf]
        %v2159 = vld [vmem:[%s6 + $0x4] sm:$0xf]
        %v2160 = vld [vmem:[%s6 + $0x8] sm:$0xf]
        %v2161 = vld [vmem:[%s6 + $0xc] sm:$0xf]
        %v2162 = vld [vmem:[%s6 + $0x10] sm:$0xf]
        %v2163 = vld [vmem:[%s6 + $0x14] sm:$0xf]
        %v2164 = vld [vmem:[%s6 + $0x18] sm:$0xf]
        %v2165 = vld [vmem:[%s6 + $0x1c] sm:$0xf]
        %v2166 = vld [vmem:[%s6 + $0x20] sm:$0xf]
        %v2167 = vld [vmem:[%s6 + $0x24] sm:$0xf]
        %v2168 = vld [vmem:[%s6 + $0x28] sm:$0xf]
        %v2169 = vld [vmem:[%s6 + $0x2c] sm:$0xf]
        %v2170 = vld [vmem:[%s6 + $0x30] sm:$0xf]
        %v2171 = vld [vmem:[%s6 + $0x34] sm:$0xf]
        %v2172 = vld [vmem:[%s6 + $0x38] sm:$0xf]
        %v2173 = vld [vmem:[%s6 + $0x3c] sm:$0xf]
        %v2174 = vld [vmem:[%s7] sm:$0x1]
        %v2176 = vlaneseq
        %v2177 = vshrl.u32 %v2176, 7
        %v2178 = vsub.s32 0, %v2177
        %v2179 = vrot.slane %v2174, %v2178
        %v2197 = vunpack.c.l.b16 %v2158
        %v2198 = vunpack.c.l.b16 %v2159
        %v2199 = vunpack.c.l.b16 %v2160
        %v2200 = vunpack.c.l.b16 %v2161
        %v2201 = vunpack.c.l.b16 %v2162
        %v2202 = vunpack.c.l.b16 %v2163
        %v2203 = vunpack.c.l.b16 %v2164
        %v2204 = vunpack.c.l.b16 %v2165
        %v2205 = vunpack.c.l.b16 %v2166
        %v2206 = vunpack.c.l.b16 %v2167
        %v2207 = vunpack.c.l.b16 %v2168
        %v2208 = vunpack.c.l.b16 %v2169
        %v2209 = vunpack.c.l.b16 %v2170
        %v2210 = vunpack.c.l.b16 %v2171
        %v2211 = vunpack.c.l.b16 %v2172
        %v2212 = vunpack.c.l.b16 %v2173
        %v2213 = vpack.c.b16 %v2198, %v2197
        %v2214 = vpack.c.b16 %v2200, %v2199
        %v2215 = vpack.c.b16 %v2202, %v2201
        %v2216 = vpack.c.b16 %v2204, %v2203
        %v2217 = vpack.c.b16 %v2206, %v2205
        %v2218 = vpack.c.b16 %v2208, %v2207
        %v2219 = vpack.c.b16 %v2210, %v2209
        %v2220 = vpack.c.b16 %v2212, %v2211
        %2229 = vmatprep.subr.bf16.mxu0 0
        %2230 = vmatpush1.bf16.msra.mxu0 %v2213
        %2231 = vmatprep.subr.bf16.mxu0 0
        %2232 = vmatpush1.bf16.msra.mxu0 %v2214
        %2233 = vmatprep.subr.bf16.mxu0 0
        %2234 = vmatpush1.bf16.msra.mxu0 %v2215
        %2235 = vmatprep.subr.bf16.mxu0 0
        %2236 = vmatpush1.bf16.msra.mxu0 %v2216
        %2237 = vmatprep.subr.bf16.mxu0 0
        %2238 = vmatpush1.bf16.msra.mxu0 %v2217
        %2239 = vmatprep.subr.bf16.mxu0 0
        %2240 = vmatpush1.bf16.msra.mxu0 %v2218
        %2241 = vmatprep.subr.bf16.mxu0 0
        %2242 = vmatpush1.bf16.msra.mxu0 %v2219
        %2243 = vmatprep.subr.bf16.mxu0 0
        %2244 = vmatpush1.bf16.msra.mxu0 %v2220
        %2245 = vmatprep.subr.bf16.mxu0 0
        %2246 = vmatpush1.bf16.msra.mxu0 0
        %2247 = vmatprep.subr.bf16.mxu0 0
        %2248 = vmatpush1.bf16.msra.mxu0 0
        %2249 = vmatprep.subr.bf16.mxu0 0
        %2250 = vmatpush1.bf16.msra.mxu0 0
        %2251 = vmatprep.subr.bf16.mxu0 0
        %2252 = vmatpush1.bf16.msra.mxu0 0
        %2253 = vmatprep.subr.bf16.mxu0 0
        %2254 = vmatpush1.bf16.msra.mxu0 0
        %2255 = vmatprep.subr.bf16.mxu0 0
        %2256 = vmatpush1.bf16.msra.mxu0 0
        %2257 = vmatprep.subr.bf16.mxu0 0
        %2258 = vmatpush1.bf16.msra.mxu0 0
        %2259 = vmatprep.subr.bf16.mxu0 0
        %2260 = vmatpush1.bf16.msra.mxu0 0
        %2261 = vmatprep.mubr.bf16.mxu0 0
        %2262 = vmatmul.mubr.bf16.gmra.mrb[0].mxu0 %v2157
        %v2263 = vpop.f32.mrb[0].mxu0
        %v2264 = vadd.f32 %v2179, %v2263
        %v2265 = vpop.f32.mrb[0].mxu0
        %v2266 = vpop.f32.mrb[0].mxu0
        %v2267 = vadd.f32 %v2179, %v2266
        %v2268 = vpop.f32.mrb[0].mxu0
        %2269 = vdwg.mxu0
        %v2270 = vlaneseq
        %v2271 = vand.u32 %v2270, 127
        %v2272 = vadd.s32 %v2271, 128
        %vm2273 = vcmp.lt.s32.totalorder %v2271, 0
        %v2274 = vsub.s32 0, %v2271
        %v2275 = vsel %vm2273, %v2274, %v2271
        %v2276 = vshrl.u32 %v2275, 6
        %v2277 = vand.u32 %v2275, 63
        %v2278 = vsub.s32 0, %v2277
        %v2279 = vsel %vm2273, %v2278, %v2277
        %vm2280 = vcmp.lt.s32.totalorder %v2272, 0
        %v2281 = vsub.s32 0, %v2272
        %v2282 = vsel %vm2280, %v2281, %v2272
        %v2283 = vshrl.u32 %v2282, 6
        %v2284 = vand.u32 %v2282, 63
        %v2285 = vsub.s32 0, %v2284
        %v2286 = vsel %vm2280, %v2285, %v2284
        %vm2287 = vcmp.ne.s32.totalorder %v2279, 0
        %vm2288 = vcmp.ne.s32.totalorder %v2286, 0
        %vm2289 = vcmp.lt.s32.totalorder %v2279, 0
        %vm2290 = vcmp.lt.s32.totalorder %v2286, 0
        %vm2291 = vmand %vm2289, %vm2287
        %vm2292 = vmand %vm2290, %vm2288
        %v2293 = vadd.s32 %v2279, 64
        %v2294 = vadd.s32 %v2286, 64
        %v2295 = vsel %vm2291, %v2293, %v2279
        %v2296 = vsel %vm2292, %v2294, %v2286
        %vm2297 = vcmp.lt.s32.totalorder %v2295, 32
        %vm2298 = vcmp.lt.s32.totalorder %v2296, 32
        %v2299 = vpack.c.bf16 %v2267, %v2264
        %v2300 = vld [vmem:[%s8] sm:$0xff]
        %v2301 = vld [vmem:[%s8 + $0x8] sm:$0xff]
        %v2302 = vld [vmem:[%s8 + $0x10] sm:$0xff]
        %v2303 = vld [vmem:[%s8 + $0x18] sm:$0xff]
        %v2304 = vld [vmem:[%s8 + $0x20] sm:$0xff]
        %v2305 = vld [vmem:[%s8 + $0x28] sm:$0xff]
        %v2306 = vld [vmem:[%s8 + $0x30] sm:$0xff]
        %v2307 = vld [vmem:[%s8 + $0x38] sm:$0xff]
        %v2308 = vld [vmem:[%s10] sm:$0x3]
        %v2310 = vlaneseq
        %v2311 = vshrl.u32 %v2310, 7
        %v2312 = vsub.s32 0, %v2311
        %v2313 = vrot.slane %v2308, %v2312
        %v2314 = vlaneseq
        %v2315 = vshrl.u32 %v2314, 7
        %v2316 = vsub.s32 1, %v2315
        %v2317 = vrot.slane %v2308, %v2316
        %v2328 = vunpack.c.l.b16 %v2300
        %v2329 = vunpack.c.h.b16 %v2300
        %v2330 = vunpack.c.l.b16 %v2301
        %v2331 = vunpack.c.h.b16 %v2301
        %v2332 = vunpack.c.l.b16 %v2302
        %v2333 = vunpack.c.h.b16 %v2302
        %v2334 = vunpack.c.l.b16 %v2303
        %v2335 = vunpack.c.h.b16 %v2303
        %v2336 = vunpack.c.l.b16 %v2304
        %v2337 = vunpack.c.h.b16 %v2304
        %v2338 = vunpack.c.l.b16 %v2305
        %v2339 = vunpack.c.h.b16 %v2305
        %v2340 = vunpack.c.l.b16 %v2306
        %v2341 = vunpack.c.h.b16 %v2306
        %v2342 = vunpack.c.l.b16 %v2307
        %v2343 = vunpack.c.h.b16 %v2307
        %v2344 = vpack.c.b16 %v2330, %v2328
        %v2345 = vpack.c.b16 %v2331, %v2329
        %v2346 = vpack.c.b16 %v2334, %v2332
        %v2347 = vpack.c.b16 %v2335, %v2333
        %v2348 = vpack.c.b16 %v2338, %v2336
        %v2349 = vpack.c.b16 %v2339, %v2337
        %v2350 = vpack.c.b16 %v2342, %v2340
        %v2351 = vpack.c.b16 %v2343, %v2341
        %v2361 = vsel %vm853, %v2299, 0
        %2363 = vmatprep.subr.bf16.mxu0 %v2345
        %2364 = vmatpush1.bf16.msra.mxu0 %v2344
        %2365 = vmatprep.subr.bf16.mxu0 %v2347
        %2366 = vmatpush1.bf16.msra.mxu0 %v2346
        %2367 = vmatprep.subr.bf16.mxu0 %v2349
        %2368 = vmatpush1.bf16.msra.mxu0 %v2348
        %2369 = vmatprep.subr.bf16.mxu0 %v2351
        %2370 = vmatpush1.bf16.msra.mxu0 %v2350
        %2371 = vmatprep.subr.bf16.mxu0 0
        %2372 = vmatpush1.bf16.msra.mxu0 0
        %2373 = vmatprep.subr.bf16.mxu0 0
        %2374 = vmatpush1.bf16.msra.mxu0 0
        %2375 = vmatprep.subr.bf16.mxu0 0
        %2376 = vmatpush1.bf16.msra.mxu0 0
        %2377 = vmatprep.subr.bf16.mxu0 0
        %2378 = vmatpush1.bf16.msra.mxu0 0
        %2379 = vmatprep.subr.bf16.mxu0 0
        %2380 = vmatpush1.bf16.msra.mxu0 0
        %2381 = vmatprep.subr.bf16.mxu0 0
        %2382 = vmatpush1.bf16.msra.mxu0 0
        %2383 = vmatprep.subr.bf16.mxu0 0
        %2384 = vmatpush1.bf16.msra.mxu0 0
        %2385 = vmatprep.subr.bf16.mxu0 0
        %2386 = vmatpush1.bf16.msra.mxu0 0
        %2387 = vmatprep.subr.bf16.mxu0 0
        %2388 = vmatpush1.bf16.msra.mxu0 0
        %2389 = vmatprep.subr.bf16.mxu0 0
        %2390 = vmatpush1.bf16.msra.mxu0 0
        %2391 = vmatprep.subr.bf16.mxu0 0
        %2392 = vmatpush1.bf16.msra.mxu0 0
        %2393 = vmatprep.subr.bf16.mxu0 0
        %2394 = vmatpush1.bf16.msra.mxu0 0
        %2395 = vmatprep.mubr.bf16.mxu0 0
        %2396 = vmatmul.mubr.bf16.gmra.mrb[0].mxu0 %v2361
        %v2397 = vpop.f32.mrb[0].mxu0
        %v2398 = vadd.f32 %v2313, %v2397
        %v2399 = vpop.f32.mrb[0].mxu0
        %v2400 = vadd.f32 %v2317, %v2399
        %v2401 = vpop.f32.mrb[0].mxu0
        %v2402 = vadd.f32 %v2313, %v2401
        %v2403 = vpop.f32.mrb[0].mxu0
        %v2404 = vadd.f32 %v2317, %v2403
        %2405 = vdwg.mxu0
        %v2408 = vrot.slane %v2402, 6
        %v2409 = vrot.slane %v2404, 6
        %v2412 = vrot.slane %v2402, 2
        %v2413 = vrot.slane %v2404, 2
        %v2418 = vrot.slane %v2398, 6
        %v2419 = vrot.slane %v2400, 6
        %v2422 = vrot.slane %v2398, 2
        %v2423 = vrot.slane %v2400, 2
        %vm2426 = vcmask 1041408
        %v2427 = vsel %vm2426, %v2408, %v2412
        %v2428 = vsel %vm2426, %v2409, %v2413
        %vm2429 = vcmask 1043456
        %v2430 = vsel %vm2429, %v2427, %v2408
        %v2431 = vsel %vm2429, %v2428, %v2409
        %vm2432 = vcmask 1045504
        %v2433 = vsel %vm2432, %v2430, %v2412
        %v2434 = vsel %vm2432, %v2431, %v2413
        %v2435 = vsel %vm2426, %v2418, %v2422
        %v2436 = vsel %vm2426, %v2419, %v2423
        %v2437 = vsel %vm2429, %v2435, %v2418
        %v2438 = vsel %vm2429, %v2436, %v2419
        %v2439 = vsel %vm2432, %v2437, %v2422
        %v2440 = vsel %vm2432, %v2438, %v2423
        %v2441 = vsel %vm2297, 1, 0
        %v2442 = vsel %vm2298, 1, 0
        %vm2443 = vcmp.eq.s32.totalorder %v2441, 1
        %vm2444 = vcmp.eq.s32.totalorder %v2442, 1
        %v2445 = vsel %vm2443, %v2398, %v2433
        %v2446 = vsel %vm2444, %v2400, %v2434
        %v2447 = vsel %vm2443, %v2402, %v2439
        %v2448 = vsel %vm2444, %v2404, %v2440
        %2449 = vst [vmem:[#allocation2] sm:$0xff] %v2445
        %2450 = vst [vmem:[#allocation2 + $0x8] sm:$0xff] %v2446
        %2451 = vst [vmem:[#allocation2 + $0x10] sm:$0xff] %v2447
        %2452 = vst [vmem:[#allocation2 + $0x18] sm:$0xff] %v2448
        %v2453 = vld [vmem:[%s9] sm:$0xff]
        %v2454 = vld [vmem:[%s9 + $0x8] sm:$0xff]
        %v2455 = vld [vmem:[%s9 + $0x10] sm:$0xff]
        %v2456 = vld [vmem:[%s9 + $0x18] sm:$0xff]
        %v2457 = vld [vmem:[%s9 + $0x20] sm:$0xff]
        %v2458 = vld [vmem:[%s9 + $0x28] sm:$0xff]
        %v2459 = vld [vmem:[%s9 + $0x30] sm:$0xff]
        %v2460 = vld [vmem:[%s9 + $0x38] sm:$0xff]
        %v2461 = vld [vmem:[#allocation2] sm:$0x3]
        %v2462 = vld [vmem:[#allocation2 + $0x8] sm:$0x3]
        %v2471 = vunpack.c.l.b16 %v2453
        %v2472 = vunpack.c.h.b16 %v2453
        %v2473 = vunpack.c.l.b16 %v2454
        %v2474 = vunpack.c.h.b16 %v2454
        %v2475 = vunpack.c.l.b16 %v2455
        %v2476 = vunpack.c.h.b16 %v2455
        %v2477 = vunpack.c.l.b16 %v2456
        %v2478 = vunpack.c.h.b16 %v2456
        %v2479 = vunpack.c.l.b16 %v2457
        %v2480 = vunpack.c.h.b16 %v2457
        %v2481 = vunpack.c.l.b16 %v2458
        %v2482 = vunpack.c.h.b16 %v2458
        %v2483 = vunpack.c.l.b16 %v2459
        %v2484 = vunpack.c.h.b16 %v2459
        %v2485 = vunpack.c.l.b16 %v2460
        %v2486 = vunpack.c.h.b16 %v2460
        %v2487 = vpack.c.b16 %v2473, %v2471
        %v2488 = vpack.c.b16 %v2474, %v2472
        %v2489 = vpack.c.b16 %v2477, %v2475
        %v2490 = vpack.c.b16 %v2478, %v2476
        %v2491 = vpack.c.b16 %v2481, %v2479
        %v2492 = vpack.c.b16 %v2482, %v2480
        %v2493 = vpack.c.b16 %v2485, %v2483
        %v2494 = vpack.c.b16 %v2486, %v2484
        %v2504 = vsel %vm853, 0, 0
        %2506 = vmatprep.subr.bf16.mxu0 %v2488
        %2507 = vmatpush1.bf16.msra.mxu0 %v2487
        %2508 = vmatprep.subr.bf16.mxu0 %v2490
        %2509 = vmatpush1.bf16.msra.mxu0 %v2489
        %2510 = vmatprep.subr.bf16.mxu0 %v2492
        %2511 = vmatpush1.bf16.msra.mxu0 %v2491
        %2512 = vmatprep.subr.bf16.mxu0 %v2494
        %2513 = vmatpush1.bf16.msra.mxu0 %v2493
        %2514 = vmatprep.subr.bf16.mxu0 0
        %2515 = vmatpush1.bf16.msra.mxu0 0
        %2516 = vmatprep.subr.bf16.mxu0 0
        %2517 = vmatpush1.bf16.msra.mxu0 0
        %2518 = vmatprep.subr.bf16.mxu0 0
        %2519 = vmatpush1.bf16.msra.mxu0 0
        %2520 = vmatprep.subr.bf16.mxu0 0
        %2521 = vmatpush1.bf16.msra.mxu0 0
        %2522 = vmatprep.subr.bf16.mxu0 0
        %2523 = vmatpush1.bf16.msra.mxu0 0
        %2524 = vmatprep.subr.bf16.mxu0 0
        %2525 = vmatpush1.bf16.msra.mxu0 0
        %2526 = vmatprep.subr.bf16.mxu0 0
        %2527 = vmatpush1.bf16.msra.mxu0 0
        %2528 = vmatprep.subr.bf16.mxu0 0
        %2529 = vmatpush1.bf16.msra.mxu0 0
        %2530 = vmatprep.subr.bf16.mxu0 0
        %2531 = vmatpush1.bf16.msra.mxu0 0
        %2532 = vmatprep.subr.bf16.mxu0 0
        %2533 = vmatpush1.bf16.msra.mxu0 0
        %2534 = vmatprep.subr.bf16.mxu0 0
        %2535 = vmatpush1.bf16.msra.mxu0 0
        %2536 = vmatprep.subr.bf16.mxu0 0
        %2537 = vmatpush1.bf16.msra.mxu0 0
        %2538 = vmatprep.mubr.bf16.mxu0 0
        %2539 = vmatmul.mubr.bf16.gmra.mrb[0].mxu0 %v2504
        %v2540 = vpop.f32.mrb[0].mxu0
        %v2541 = vadd.f32 0.0, %v2540
        %v2542 = vpop.f32.mrb[0].mxu0
        %v2543 = vadd.f32 0.0, %v2542
        %v2544 = vpop.f32.mrb[0].mxu0
        %v2545 = vpop.f32.mrb[0].mxu0
        %2546 = vdwg.mxu0
        %v2547 = vadd.f32 %v2461, %v2541
        %v2548 = vadd.f32 %v2462, %v2543
        %v2549 = vxor.u32 %v2547, 2147483648
        %v2550 = vxor.u32 %v2548, 2147483648
        %v2551 = vmul.f32 %v2549, 1.442695
        %v2552 = vpow.pop %v2551
        %v2553 = vmul.f32 %v2550, 1.442695
        %v2554 = vpow.pop %v2553
        %v2555 = vadd.f32 %v2552, 1.0
        %v2556 = vadd.f32 %v2554, 1.0
        %v2557 = vrcp.pop %v2555
        %v2558 = vmul.f32 1.0, %v2557
        %v2559 = vrcp.pop %v2556
        %v2560 = vmul.f32 1.0, %v2559
        %v2561 = vtanh.pop %v2548
        %v2562 = vmul.f32 %v2558, 0.0
        %2564 = vrot.lane.b32.xlu0 %v2561, 64
        %v2565 = vpop.permute.xlu0 %2564
        %v2567 = vmul.f32 %v2558, %v2565
        %2569 = vrot.lane.b32.xlu0 %v2567, 64
        %v2570 = vpop.permute.xlu0 %2569
        %v2572 = vadd.f32 %v2562, %v2570
        %v2573 = vtanh.pop %v2572
        %2575 = vrot.lane.b32.xlu0 %v2573, 64
        %v2576 = vpop.permute.xlu0 %2575
        %v2578 = vmul.f32 %v2560, %v2576
        %vm2579 = vcmask 517120
        %2580 = vst.msk [vmem:[#allocation3] sm:$0x3] %vm2579, %v2578
        %v2581 = vld [vmem:[#allocation2] sm:$0xc]
        %v2582 = vld [vmem:[#allocation2 + $0x8] sm:$0xc]
        %v2583 = vpack.c.bf16 %v2578, %v2578
        %v2585 = vsel %vm853, %v2583, 0
        %2587 = vmatprep.subr.bf16.mxu0 %v2488
        %2588 = vmatpush1.bf16.msra.mxu0 %v2487
        %2589 = vmatprep.subr.bf16.mxu0 %v2490
        %2590 = vmatpush1.bf16.msra.mxu0 %v2489
        %2591 = vmatprep.subr.bf16.mxu0 %v2492
        %2592 = vmatpush1.bf16.msra.mxu0 %v2491
        %2593 = vmatprep.subr.bf16.mxu0 %v2494
        %2594 = vmatpush1.bf16.msra.mxu0 %v2493
        %2595 = vmatprep.subr.bf16.mxu0 0
        %2596 = vmatpush1.bf16.msra.mxu0 0
        %2597 = vmatprep.subr.bf16.mxu0 0
        %2598 = vmatpush1.bf16.msra.mxu0 0
        %2599 = vmatprep.subr.bf16.mxu0 0
        %2600 = vmatpush1.bf16.msra.mxu0 0
        %2601 = vmatprep.subr.bf16.mxu0 0
        %2602 = vmatpush1.bf16.msra.mxu0 0
        %2603 = vmatprep.subr.bf16.mxu0 0
        %2604 = vmatpush1.bf16.msra.mxu0 0
        %2605 = vmatprep.subr.bf16.mxu0 0
        %2606 = vmatpush1.bf16.msra.mxu0 0
        %2607 = vmatprep.subr.bf16.mxu0 0
        %2608 = vmatpush1.bf16.msra.mxu0 0
        %2609 = vmatprep.subr.bf16.mxu0 0
        %2610 = vmatpush1.bf16.msra.mxu0 0
        %2611 = vmatprep.subr.bf16.mxu0 0
        %2612 = vmatpush1.bf16.msra.mxu0 0
        %2613 = vmatprep.subr.bf16.mxu0 0
        %2614 = vmatpush1.bf16.msra.mxu0 0
        %2615 = vmatprep.subr.bf16.mxu0 0
        %2616 = vmatpush1.bf16.msra.mxu0 0
        %2617 = vmatprep.subr.bf16.mxu0 0
        %2618 = vmatpush1.bf16.msra.mxu0 0
        %2619 = vmatprep.mubr.bf16.mxu0 0
        %2620 = vmatmul.mubr.bf16.gmra.mrb[0].mxu0 %v2585
        %v2621 = vpop.f32.mrb[0].mxu0
        %v2622 = vadd.f32 0.0, %v2621
        %v2623 = vpop.f32.mrb[0].mxu0
        %v2624 = vadd.f32 0.0, %v2623
        %v2625 = vpop.f32.mrb[0].mxu0
        %v2626 = vpop.f32.mrb[0].mxu0
        %2627 = vdwg.mxu0
        %v2630 = vrot.slane %v2622, 6
        %v2631 = vrot.slane %v2624, 6
        %v2634 = vadd.f32 %v2581, %v2630
        %v2635 = vadd.f32 %v2582, %v2631
        %v2636 = vxor.u32 %v2634, 2147483648
        %v2637 = vxor.u32 %v2635, 2147483648
        %v2638 = vmul.f32 %v2636, 1.442695
        %v2639 = vpow.pop %v2638
        %v2640 = vmul.f32 %v2637, 1.442695
        %v2641 = vpow.pop %v2640
        %v2642 = vadd.f32 %v2639, 1.0
        %v2643 = vadd.f32 %v2641, 1.0
        %v2644 = vrcp.pop %v2642
        %v2645 = vmul.f32 1.0, %v2644
        %v2646 = vrcp.pop %v2643
        %v2647 = vmul.f32 1.0, %v2646
        %v2648 = vtanh.pop %v2635
        %v2650 = vrot.slane %v2572, 6
        %v2652 = vmul.f32 %v2645, %v2650
        %2654 = vrot.lane.b32.xlu0 %v2648, 64
        %v2655 = vpop.permute.xlu0 %2654
        %v2657 = vmul.f32 %v2645, %v2655
        %2659 = vrot.lane.b32.xlu0 %v2657, 64
        %v2660 = vpop.permute.xlu0 %2659
        %v2662 = vadd.f32 %v2652, %v2660
        %v2663 = vtanh.pop %v2662
        %2665 = vrot.lane.b32.xlu0 %v2663, 64
        %v2666 = vpop.permute.xlu0 %2665
        %v2668 = vmul.f32 %v2647, %v2666
        %vm2669 = vcmask 519170
        %2670 = vst.msk [vmem:[#allocation3] sm:$0xc] %vm2669, %v2668
        %v2671 = vld [vmem:[#allocation2] sm:$0x30]
        %v2672 = vld [vmem:[#allocation2 + $0x8] sm:$0x30]
        %v2673 = vpack.c.bf16 %v2668, %v2668
        %v2675 = vrot.slane %v2673, 1
        %v2677 = vsel %vm853, %v2675, 0
        %2679 = vmatprep.subr.bf16.mxu0 %v2488
        %2680 = vmatpush1.bf16.msra.mxu0 %v2487
        %2681 = vmatprep.subr.bf16.mxu0 %v2490
        %2682 = vmatpush1.bf16.msra.mxu0 %v2489
        %2683 = vmatprep.subr.bf16.mxu0 %v2492
        %2684 = vmatpush1.bf16.msra.mxu0 %v2491
        %2685 = vmatprep.subr.bf16.mxu0 %v2494
        %2686 = vmatpush1.bf16.msra.mxu0 %v2493
        %2687 = vmatprep.subr.bf16.mxu0 0
        %2688 = vmatpush1.bf16.msra.mxu0 0
        %2689 = vmatprep.subr.bf16.mxu0 0
        %2690 = vmatpush1.bf16.msra.mxu0 0
        %2691 = vmatprep.subr.bf16.mxu0 0
        %2692 = vmatpush1.bf16.msra.mxu0 0
        %2693 = vmatprep.subr.bf16.mxu0 0
        %2694 = vmatpush1.bf16.msra.mxu0 0
        %2695 = vmatprep.subr.bf16.mxu0 0
        %2696 = vmatpush1.bf16.msra.mxu0 0
        %2697 = vmatprep.subr.bf16.mxu0 0
        %2698 = vmatpush1.bf16.msra.mxu0 0
        %2699 = vmatprep.subr.bf16.mxu0 0
        %2700 = vmatpush1.bf16.msra.mxu0 0
        %2701 = vmatprep.subr.bf16.mxu0 0
        %2702 = vmatpush1.bf16.msra.mxu0 0
        %2703 = vmatprep.subr.bf16.mxu0 0
        %2704 = vmatpush1.bf16.msra.mxu0 0
        %2705 = vmatprep.subr.bf16.mxu0 0
        %2706 = vmatpush1.bf16.msra.mxu0 0
        %2707 = vmatprep.subr.bf16.mxu0 0
        %2708 = vmatpush1.bf16.msra.mxu0 0
        %2709 = vmatprep.subr.bf16.mxu0 0
        %2710 = vmatpush1.bf16.msra.mxu0 0
        %2711 = vmatprep.mubr.bf16.mxu0 0
        %2712 = vmatmul.mubr.bf16.gmra.mrb[0].mxu0 %v2677
        %v2713 = vpop.f32.mrb[0].mxu0
        %v2714 = vadd.f32 0.0, %v2713
        %v2715 = vpop.f32.mrb[0].mxu0
        %v2716 = vadd.f32 0.0, %v2715
        %v2717 = vpop.f32.mrb[0].mxu0
        %v2718 = vpop.f32.mrb[0].mxu0
        %2719 = vdwg.mxu0
        %v2722 = vrot.slane %v2714, 4
        %v2723 = vrot.slane %v2716, 4
        %v2726 = vadd.f32 %v2671, %v2722
        %v2727 = vadd.f32 %v2672, %v2723
        %v2728 = vxor.u32 %v2726, 2147483648
        %v2729 = vxor.u32 %v2727, 2147483648
        %v2730 = vmul.f32 %v2728, 1.442695
        %v2731 = vpow.pop %v2730
        %v2732 = vmul.f32 %v2729, 1.442695
        %v2733 = vpow.pop %v2732
        %v2734 = vadd.f32 %v2731, 1.0
        %v2735 = vadd.f32 %v2733, 1.0
        %v2736 = vrcp.pop %v2734
        %v2737 = vmul.f32 1.0, %v2736
        %v2738 = vrcp.pop %v2735
        %v2739 = vmul.f32 1.0, %v2738
        %v2740 = vtanh.pop %v2727
        %v2742 = vrot.slane %v2662, 6
        %v2744 = vmul.f32 %v2737, %v2742
        %2746 = vrot.lane.b32.xlu0 %v2740, 64
        %v2747 = vpop.permute.xlu0 %2746
        %v2749 = vmul.f32 %v2737, %v2747
        %2751 = vrot.lane.b32.xlu0 %v2749, 64
        %v2752 = vpop.permute.xlu0 %2751
        %v2754 = vadd.f32 %v2744, %v2752
        %v2755 = vtanh.pop %v2754
        %2757 = vrot.lane.b32.xlu0 %v2755, 64
        %v2758 = vpop.permute.xlu0 %2757
        %v2760 = vmul.f32 %v2739, %v2758
        %vm2761 = vcmask 521220
        %2762 = vst.msk [vmem:[#allocation3] sm:$0x30] %vm2761, %v2760
        %v2763 = vld [vmem:[#allocation2] sm:$0xc0]
        %v2764 = vld [vmem:[#allocation2 + $0x8] sm:$0xc0]
        %v2765 = vpack.c.bf16 %v2760, %v2760
        %v2767 = vrot.slane %v2765, 2
        %v2769 = vsel %vm853, %v2767, 0
        %2771 = vmatprep.subr.bf16.mxu0 %v2488
        %2772 = vmatpush1.bf16.msra.mxu0 %v2487
        %2773 = vmatprep.subr.bf16.mxu0 %v2490
        %2774 = vmatpush1.bf16.msra.mxu0 %v2489
        %2775 = vmatprep.subr.bf16.mxu0 %v2492
        %2776 = vmatpush1.bf16.msra.mxu0 %v2491
        %2777 = vmatprep.subr.bf16.mxu0 %v2494
        %2778 = vmatpush1.bf16.msra.mxu0 %v2493
        %2779 = vmatprep.subr.bf16.mxu0 0
        %2780 = vmatpush1.bf16.msra.mxu0 0
        %2781 = vmatprep.subr.bf16.mxu0 0
        %2782 = vmatpush1.bf16.msra.mxu0 0
        %2783 = vmatprep.subr.bf16.mxu0 0
        %2784 = vmatpush1.bf16.msra.mxu0 0
        %2785 = vmatprep.subr.bf16.mxu0 0
        %2786 = vmatpush1.bf16.msra.mxu0 0
        %2787 = vmatprep.subr.bf16.mxu0 0
        %2788 = vmatpush1.bf16.msra.mxu0 0
        %2789 = vmatprep.subr.bf16.mxu0 0
        %2790 = vmatpush1.bf16.msra.mxu0 0
        %2791 = vmatprep.subr.bf16.mxu0 0
        %2792 = vmatpush1.bf16.msra.mxu0 0
        %2793 = vmatprep.subr.bf16.mxu0 0
        %2794 = vmatpush1.bf16.msra.mxu0 0
        %2795 = vmatprep.subr.bf16.mxu0 0
        %2796 = vmatpush1.bf16.msra.mxu0 0
        %2797 = vmatprep.subr.bf16.mxu0 0
        %2798 = vmatpush1.bf16.msra.mxu0 0
        %2799 = vmatprep.subr.bf16.mxu0 0
        %2800 = vmatpush1.bf16.msra.mxu0 0
        %2801 = vmatprep.subr.bf16.mxu0 0
        %2802 = vmatpush1.bf16.msra.mxu0 0
        %2803 = vmatprep.mubr.bf16.mxu0 0
        %2804 = vmatmul.mubr.bf16.gmra.mrb[0].mxu0 %v2769
        %v2805 = vpop.f32.mrb[0].mxu0
        %v2806 = vadd.f32 0.0, %v2805
        %v2807 = vpop.f32.mrb[0].mxu0
        %v2808 = vadd.f32 0.0, %v2807
        %v2809 = vpop.f32.mrb[0].mxu0
        %v2810 = vpop.f32.mrb[0].mxu0
        %2811 = vdwg.mxu0
        %v2814 = vrot.slane %v2806, 2
        %v2815 = vrot.slane %v2808, 2
        %v2818 = vadd.f32 %v2763, %v2814
        %v2819 = vadd.f32 %v2764, %v2815
        %v2820 = vxor.u32 %v2818, 2147483648
        %v2821 = vxor.u32 %v2819, 2147483648
        %v2822 = vmul.f32 %v2820, 1.442695
        %v2823 = vpow.pop %v2822
        %v2824 = vmul.f32 %v2821, 1.442695
        %v2825 = vpow.pop %v2824
        %v2826 = vadd.f32 %v2823, 1.0
        %v2827 = vadd.f32 %v2825, 1.0
        %v2828 = vrcp.pop %v2826
        %v2829 = vmul.f32 1.0, %v2828
        %v2830 = vrcp.pop %v2827
        %v2831 = vmul.f32 1.0, %v2830
        %v2832 = vtanh.pop %v2819
        %v2834 = vrot.slane %v2754, 6
        %v2836 = vmul.f32 %v2829, %v2834
        %2838 = vrot.lane.b32.xlu0 %v2832, 64
        %v2839 = vpop.permute.xlu0 %2838
        %v2841 = vmul.f32 %v2829, %v2839
        %2843 = vrot.lane.b32.xlu0 %v2841, 64
        %v2844 = vpop.permute.xlu0 %2843
        %v2846 = vadd.f32 %v2836, %v2844
        %v2847 = vtanh.pop %v2846
        %2849 = vrot.lane.b32.xlu0 %v2847, 64
        %v2850 = vpop.permute.xlu0 %2849
        %v2852 = vmul.f32 %v2831, %v2850
        %vm2853 = vcmask 523270
        %2854 = vst.msk [vmem:[#allocation3] sm:$0xc0] %vm2853, %v2852
        %v2855 = vld [vmem:[#allocation2 + $0x10] sm:$0x3]
        %v2856 = vld [vmem:[#allocation2 + $0x18] sm:$0x3]
        %v2857 = vpack.c.bf16 %v2852, %v2852
        %v2859 = vrot.slane %v2857, 3
        %v2861 = vsel %vm853, %v2859, 0
        %2863 = vmatprep.subr.bf16.mxu0 %v2488
        %2864 = vmatpush1.bf16.msra.mxu0 %v2487
        %2865 = vmatprep.subr.bf16.mxu0 %v2490
        %2866 = vmatpush1.bf16.msra.mxu0 %v2489
        %2867 = vmatprep.subr.bf16.mxu0 %v2492
        %2868 = vmatpush1.bf16.msra.mxu0 %v2491
        %2869 = vmatprep.subr.bf16.mxu0 %v2494
        %2870 = vmatpush1.bf16.msra.mxu0 %v2493
        %2871 = vmatprep.subr.bf16.mxu0 0
        %2872 = vmatpush1.bf16.msra.mxu0 0
        %2873 = vmatprep.subr.bf16.mxu0 0
        %2874 = vmatpush1.bf16.msra.mxu0 0
        %2875 = vmatprep.subr.bf16.mxu0 0
        %2876 = vmatpush1.bf16.msra.mxu0 0
        %2877 = vmatprep.subr.bf16.mxu0 0
        %2878 = vmatpush1.bf16.msra.mxu0 0
        %2879 = vmatprep.subr.bf16.mxu0 0
        %2880 = vmatpush1.bf16.msra.mxu0 0
        %2881 = vmatprep.subr.bf16.mxu0 0
        %2882 = vmatpush1.bf16.msra.mxu0 0
        %2883 = vmatprep.subr.bf16.mxu0 0
        %2884 = vmatpush1.bf16.msra.mxu0 0
        %2885 = vmatprep.subr.bf16.mxu0 0
        %2886 = vmatpush1.bf16.msra.mxu0 0
        %2887 = vmatprep.subr.bf16.mxu0 0
        %2888 = vmatpush1.bf16.msra.mxu0 0
        %2889 = vmatprep.subr.bf16.mxu0 0
        %2890 = vmatpush1.bf16.msra.mxu0 0
        %2891 = vmatprep.subr.bf16.mxu0 0
        %2892 = vmatpush1.bf16.msra.mxu0 0
        %2893 = vmatprep.subr.bf16.mxu0 0
        %2894 = vmatpush1.bf16.msra.mxu0 0
        %2895 = vmatprep.mubr.bf16.mxu0 0
        %2896 = vmatmul.mubr.bf16.gmra.mrb[0].mxu0 %v2861
        %v2897 = vpop.f32.mrb[0].mxu0
        %v2898 = vadd.f32 0.0, %v2897
        %v2899 = vpop.f32.mrb[0].mxu0
        %v2900 = vadd.f32 0.0, %v2899
        %v2901 = vpop.f32.mrb[0].mxu0
        %v2902 = vpop.f32.mrb[0].mxu0
        %2903 = vdwg.mxu0
        %v2904 = vadd.f32 %v2855, %v2898
        %v2905 = vadd.f32 %v2856, %v2900
        %v2906 = vxor.u32 %v2904, 2147483648
        %v2907 = vxor.u32 %v2905, 2147483648
        %v2908 = vmul.f32 %v2906, 1.442695
        %v2909 = vpow.pop %v2908
        %v2910 = vmul.f32 %v2907, 1.442695
        %v2911 = vpow.pop %v2910
        %v2912 = vadd.f32 %v2909, 1.0
        %v2913 = vadd.f32 %v2911, 1.0
        %v2914 = vrcp.pop %v2912
        %v2915 = vmul.f32 1.0, %v2914
        %v2916 = vrcp.pop %v2913
        %v2917 = vmul.f32 1.0, %v2916
        %v2918 = vtanh.pop %v2905
        %v2920 = vrot.slane %v2846, 6
        %v2922 = vmul.f32 %v2915, %v2920
        %2924 = vrot.lane.b32.xlu0 %v2918, 64
        %v2925 = vpop.permute.xlu0 %2924
        %v2927 = vmul.f32 %v2915, %v2925
        %2929 = vrot.lane.b32.xlu0 %v2927, 64
        %v2930 = vpop.permute.xlu0 %2929
        %v2932 = vadd.f32 %v2922, %v2930
        %v2933 = vtanh.pop %v2932
        %2935 = vrot.lane.b32.xlu0 %v2933, 64
        %v2936 = vpop.permute.xlu0 %2935
        %v2938 = vmul.f32 %v2917, %v2936
        %2939 = vst.msk [vmem:[#allocation3 + $0x8] sm:$0x3] %vm2579, %v2938
        %v2940 = vld [vmem:[#allocation2 + $0x10] sm:$0xc]
        %v2941 = vld [vmem:[#allocation2 + $0x18] sm:$0xc]
        %v2942 = vpack.c.bf16 %v2938, %v2938
        %v2944 = vsel %vm853, %v2942, 0
        %2946 = vmatprep.subr.bf16.mxu0 %v2488
        %2947 = vmatpush1.bf16.msra.mxu0 %v2487
        %2948 = vmatprep.subr.bf16.mxu0 %v2490
        %2949 = vmatpush1.bf16.msra.mxu0 %v2489
        %2950 = vmatprep.subr.bf16.mxu0 %v2492
        %2951 = vmatpush1.bf16.msra.mxu0 %v2491
        %2952 = vmatprep.subr.bf16.mxu0 %v2494
        %2953 = vmatpush1.bf16.msra.mxu0 %v2493
        %2954 = vmatprep.subr.bf16.mxu0 0
        %2955 = vmatpush1.bf16.msra.mxu0 0
        %2956 = vmatprep.subr.bf16.mxu0 0
        %2957 = vmatpush1.bf16.msra.mxu0 0
        %2958 = vmatprep.subr.bf16.mxu0 0
        %2959 = vmatpush1.bf16.msra.mxu0 0
        %2960 = vmatprep.subr.bf16.mxu0 0
        %2961 = vmatpush1.bf16.msra.mxu0 0
        %2962 = vmatprep.subr.bf16.mxu0 0
        %2963 = vmatpush1.bf16.msra.mxu0 0
        %2964 = vmatprep.subr.bf16.mxu0 0
        %2965 = vmatpush1.bf16.msra.mxu0 0
        %2966 = vmatprep.subr.bf16.mxu0 0
        %2967 = vmatpush1.bf16.msra.mxu0 0
        %2968 = vmatprep.subr.bf16.mxu0 0
        %2969 = vmatpush1.bf16.msra.mxu0 0
        %2970 = vmatprep.subr.bf16.mxu0 0
        %2971 = vmatpush1.bf16.msra.mxu0 0
        %2972 = vmatprep.subr.bf16.mxu0 0
        %2973 = vmatpush1.bf16.msra.mxu0 0
        %2974 = vmatprep.subr.bf16.mxu0 0
        %2975 = vmatpush1.bf16.msra.mxu0 0
        %2976 = vmatprep.subr.bf16.mxu0 0
        %2977 = vmatpush1.bf16.msra.mxu0 0
        %2978 = vmatprep.mubr.bf16.mxu0 0
        %2979 = vmatmul.mubr.bf16.gmra.mrb[0].mxu0 %v2944
        %v2980 = vpop.f32.mrb[0].mxu0
        %v2981 = vadd.f32 0.0, %v2980
        %v2982 = vpop.f32.mrb[0].mxu0
        %v2983 = vadd.f32 0.0, %v2982
        %v2984 = vpop.f32.mrb[0].mxu0
        %v2985 = vpop.f32.mrb[0].mxu0
        %2986 = vdwg.mxu0
        %v2989 = vrot.slane %v2981, 6
        %v2990 = vrot.slane %v2983, 6
        %v2993 = vadd.f32 %v2940, %v2989
        %v2994 = vadd.f32 %v2941, %v2990
        %v2995 = vxor.u32 %v2993, 2147483648
        %v2996 = vxor.u32 %v2994, 2147483648
        %v2997 = vmul.f32 %v2995, 1.442695
        %v2998 = vpow.pop %v2997
        %v2999 = vmul.f32 %v2996, 1.442695
        %v3000 = vpow.pop %v2999
        %v3001 = vadd.f32 %v2998, 1.0
        %v3002 = vadd.f32 %v3000, 1.0
        %v3003 = vrcp.pop %v3001
        %v3004 = vmul.f32 1.0, %v3003
        %v3005 = vrcp.pop %v3002
        %v3006 = vmul.f32 1.0, %v3005
        %v3007 = vtanh.pop %v2994
        %v3009 = vrot.slane %v2932, 6
        %v3011 = vmul.f32 %v3004, %v3009
        %3013 = vrot.lane.b32.xlu0 %v3007, 64
        %v3014 = vpop.permute.xlu0 %3013
        %v3016 = vmul.f32 %v3004, %v3014
        %3018 = vrot.lane.b32.xlu0 %v3016, 64
        %v3019 = vpop.permute.xlu0 %3018
        %v3021 = vadd.f32 %v3011, %v3019
        %v3022 = vtanh.pop %v3021
        %3024 = vrot.lane.b32.xlu0 %v3022, 64
        %v3025 = vpop.permute.xlu0 %3024
        %v3027 = vmul.f32 %v3006, %v3025
        %3028 = vst.msk [vmem:[#allocation3 + $0x8] sm:$0xc] %vm2669, %v3027
        %v3029 = vld [vmem:[#allocation2 + $0x10] sm:$0x30]
        %v3030 = vld [vmem:[#allocation2 + $0x18] sm:$0x30]
        %v3031 = vpack.c.bf16 %v3027, %v3027
        %v3033 = vrot.slane %v3031, 1
        %v3035 = vsel %vm853, %v3033, 0
        %3037 = vmatprep.subr.bf16.mxu0 %v2488
        %3038 = vmatpush1.bf16.msra.mxu0 %v2487
        %3039 = vmatprep.subr.bf16.mxu0 %v2490
        %3040 = vmatpush1.bf16.msra.mxu0 %v2489
        %3041 = vmatprep.subr.bf16.mxu0 %v2492
        %3042 = vmatpush1.bf16.msra.mxu0 %v2491
        %3043 = vmatprep.subr.bf16.mxu0 %v2494
        %3044 = vmatpush1.bf16.msra.mxu0 %v2493
        %3045 = vmatprep.subr.bf16.mxu0 0
        %3046 = vmatpush1.bf16.msra.mxu0 0
        %3047 = vmatprep.subr.bf16.mxu0 0
        %3048 = vmatpush1.bf16.msra.mxu0 0
        %3049 = vmatprep.subr.bf16.mxu0 0
        %3050 = vmatpush1.bf16.msra.mxu0 0
        %3051 = vmatprep.subr.bf16.mxu0 0
        %3052 = vmatpush1.bf16.msra.mxu0 0
        %3053 = vmatprep.subr.bf16.mxu0 0
        %3054 = vmatpush1.bf16.msra.mxu0 0
        %3055 = vmatprep.subr.bf16.mxu0 0
        %3056 = vmatpush1.bf16.msra.mxu0 0
        %3057 = vmatprep.subr.bf16.mxu0 0
        %3058 = vmatpush1.bf16.msra.mxu0 0
        %3059 = vmatprep.subr.bf16.mxu0 0
        %3060 = vmatpush1.bf16.msra.mxu0 0
        %3061 = vmatprep.subr.bf16.mxu0 0
        %3062 = vmatpush1.bf16.msra.mxu0 0
        %3063 = vmatprep.subr.bf16.mxu0 0
        %3064 = vmatpush1.bf16.msra.mxu0 0
        %3065 = vmatprep.subr.bf16.mxu0 0
        %3066 = vmatpush1.bf16.msra.mxu0 0
        %3067 = vmatprep.subr.bf16.mxu0 0
        %3068 = vmatpush1.bf16.msra.mxu0 0
        %3069 = vmatprep.mubr.bf16.mxu0 0
        %3070 = vmatmul.mubr.bf16.gmra.mrb[0].mxu0 %v3035
        %v3071 = vpop.f32.mrb[0].mxu0
        %v3072 = vadd.f32 0.0, %v3071
        %v3073 = vpop.f32.mrb[0].mxu0
        %v3074 = vadd.f32 0.0, %v3073
        %v3075 = vpop.f32.mrb[0].mxu0
        %v3076 = vpop.f32.mrb[0].mxu0
        %3077 = vdwg.mxu0
        %v3080 = vrot.slane %v3072, 4
        %v3081 = vrot.slane %v3074, 4
        %v3084 = vadd.f32 %v3029, %v3080
        %v3085 = vadd.f32 %v3030, %v3081
        %v3086 = vxor.u32 %v3084, 2147483648
        %v3087 = vxor.u32 %v3085, 2147483648
        %v3088 = vmul.f32 %v3086, 1.442695
        %v3089 = vpow.pop %v3088
        %v3090 = vmul.f32 %v3087, 1.442695
        %v3091 = vpow.pop %v3090
        %v3092 = vadd.f32 %v3089, 1.0
        %v3093 = vadd.f32 %v3091, 1.0
        %v3094 = vrcp.pop %v3092
        %v3095 = vmul.f32 1.0, %v3094
        %v3096 = vrcp.pop %v3093
        %v3097 = vmul.f32 1.0, %v3096
        %v3098 = vtanh.pop %v3085
        %v3100 = vrot.slane %v3021, 6
        %v3102 = vmul.f32 %v3095, %v3100
        %3104 = vrot.lane.b32.xlu0 %v3098, 64
        %v3105 = vpop.permute.xlu0 %3104
        %v3107 = vmul.f32 %v3095, %v3105
        %3109 = vrot.lane.b32.xlu0 %v3107, 64
        %v3110 = vpop.permute.xlu0 %3109
        %v3112 = vadd.f32 %v3102, %v3110
        %v3113 = vtanh.pop %v3112
        %3115 = vrot.lane.b32.xlu0 %v3113, 64
        %v3116 = vpop.permute.xlu0 %3115
        %v3118 = vmul.f32 %v3097, %v3116
        %3119 = vst.msk [vmem:[#allocation3 + $0x8] sm:$0x30] %vm2761, %v3118
        %v3120 = vld [vmem:[#allocation2 + $0x10] sm:$0xc0]
        %v3121 = vld [vmem:[#allocation2 + $0x18] sm:$0xc0]
        %v3122 = vpack.c.bf16 %v3118, %v3118
        %v3124 = vrot.slane %v3122, 2
        %v3126 = vsel %vm853, %v3124, 0
        %3128 = vmatprep.subr.bf16.mxu0 %v2488
        %3129 = vmatpush1.bf16.msra.mxu0 %v2487
        %3130 = vmatprep.subr.bf16.mxu0 %v2490
        %3131 = vmatpush1.bf16.msra.mxu0 %v2489
        %3132 = vmatprep.subr.bf16.mxu0 %v2492
        %3133 = vmatpush1.bf16.msra.mxu0 %v2491
        %3134 = vmatprep.subr.bf16.mxu0 %v2494
        %3135 = vmatpush1.bf16.msra.mxu0 %v2493
        %3136 = vmatprep.subr.bf16.mxu0 0
        %3137 = vmatpush1.bf16.msra.mxu0 0
        %3138 = vmatprep.subr.bf16.mxu0 0
        %3139 = vmatpush1.bf16.msra.mxu0 0
        %3140 = vmatprep.subr.bf16.mxu0 0
        %3141 = vmatpush1.bf16.msra.mxu0 0
        %3142 = vmatprep.subr.bf16.mxu0 0
        %3143 = vmatpush1.bf16.msra.mxu0 0
        %3144 = vmatprep.subr.bf16.mxu0 0
        %3145 = vmatpush1.bf16.msra.mxu0 0
        %3146 = vmatprep.subr.bf16.mxu0 0
        %3147 = vmatpush1.bf16.msra.mxu0 0
        %3148 = vmatprep.subr.bf16.mxu0 0
        %3149 = vmatpush1.bf16.msra.mxu0 0
        %3150 = vmatprep.subr.bf16.mxu0 0
        %3151 = vmatpush1.bf16.msra.mxu0 0
        %3152 = vmatprep.subr.bf16.mxu0 0
        %3153 = vmatpush1.bf16.msra.mxu0 0
        %3154 = vmatprep.subr.bf16.mxu0 0
        %3155 = vmatpush1.bf16.msra.mxu0 0
        %3156 = vmatprep.subr.bf16.mxu0 0
        %3157 = vmatpush1.bf16.msra.mxu0 0
        %3158 = vmatprep.subr.bf16.mxu0 0
        %3159 = vmatpush1.bf16.msra.mxu0 0
        %3160 = vmatprep.mubr.bf16.mxu0 0
        %3161 = vmatmul.mubr.bf16.gmra.mrb[0].mxu0 %v3126
        %v3162 = vpop.f32.mrb[0].mxu0
        %v3163 = vadd.f32 0.0, %v3162
        %v3164 = vpop.f32.mrb[0].mxu0
        %v3165 = vadd.f32 0.0, %v3164
        %v3166 = vpop.f32.mrb[0].mxu0
        %v3167 = vpop.f32.mrb[0].mxu0
        %3168 = vdwg.mxu0
        %v3171 = vrot.slane %v3163, 2
        %v3172 = vrot.slane %v3165, 2
        %v3175 = vadd.f32 %v3120, %v3171
        %v3176 = vadd.f32 %v3121, %v3172
        %v3177 = vxor.u32 %v3175, 2147483648
        %v3178 = vxor.u32 %v3176, 2147483648
        %v3179 = vmul.f32 %v3177, 1.442695
        %v3180 = vpow.pop %v3179
        %v3181 = vmul.f32 %v3178, 1.442695
        %v3182 = vpow.pop %v3181
        %v3183 = vadd.f32 %v3180, 1.0
        %v3184 = vadd.f32 %v3182, 1.0
        %v3185 = vrcp.pop %v3183
        %v3186 = vmul.f32 1.0, %v3185
        %v3187 = vrcp.pop %v3184
        %v3188 = vmul.f32 1.0, %v3187
        %v3189 = vtanh.pop %v3176
        %v3191 = vrot.slane %v3112, 6
        %v3193 = vmul.f32 %v3186, %v3191
        %3195 = vrot.lane.b32.xlu0 %v3189, 64
        %v3196 = vpop.permute.xlu0 %3195
        %v3198 = vmul.f32 %v3186, %v3196
        %3200 = vrot.lane.b32.xlu0 %v3198, 64
        %v3201 = vpop.permute.xlu0 %3200
        %v3203 = vadd.f32 %v3193, %v3201
        %v3204 = vtanh.pop %v3203
        %3206 = vrot.lane.b32.xlu0 %v3204, 64
        %v3207 = vpop.permute.xlu0 %3206
        %v3209 = vmul.f32 %v3188, %v3207
        %3210 = vst.msk [vmem:[#allocation3 + $0x8] sm:$0xc0] %vm2853, %v3209
        %v3211 = vld [vmem:[#allocation3] sm:$0xff]
        %v3212 = vld [vmem:[#allocation3 + $0x8] sm:$0xff]
        %v3213 = vpack.c.bf16 %v3212, %v3211
        %s3214 = scalar_lea.vmem %s8, 64
        %v3215 = vld [vmem:[%s3214] sm:$0xff]
        %v3216 = vld [vmem:[%s3214 + $0x8] sm:$0xff]
        %v3217 = vld [vmem:[%s3214 + $0x10] sm:$0xff]
        %v3218 = vld [vmem:[%s3214 + $0x18] sm:$0xff]
        %v3219 = vld [vmem:[%s3214 + $0x20] sm:$0xff]
        %v3220 = vld [vmem:[%s3214 + $0x28] sm:$0xff]
        %v3221 = vld [vmem:[%s3214 + $0x30] sm:$0xff]
        %v3222 = vld [vmem:[%s3214 + $0x38] sm:$0xff]
        %s3223 = scalar_lea.vmem %s10, 2
        %v3224 = vld [vmem:[%s3223] sm:$0x3]
        %v3226 = vlaneseq
        %v3227 = vshrl.u32 %v3226, 7
        %v3228 = vsub.s32 0, %v3227
        %v3229 = vrot.slane %v3224, %v3228
        %v3230 = vlaneseq
        %v3231 = vshrl.u32 %v3230, 7
        %v3232 = vsub.s32 1, %v3231
        %v3233 = vrot.slane %v3224, %v3232
        %v3244 = vunpack.c.l.b16 %v3215
        %v3245 = vunpack.c.h.b16 %v3215
        %v3246 = vunpack.c.l.b16 %v3216
        %v3247 = vunpack.c.h.b16 %v3216
        %v3248 = vunpack.c.l.b16 %v3217
        %v3249 = vunpack.c.h.b16 %v3217
        %v3250 = vunpack.c.l.b16 %v3218
        %v3251 = vunpack.c.h.b16 %v3218
        %v3252 = vunpack.c.l.b16 %v3219
        %v3253 = vunpack.c.h.b16 %v3219
        %v3254 = vunpack.c.l.b16 %v3220
        %v3255 = vunpack.c.h.b16 %v3220
        %v3256 = vunpack.c.l.b16 %v3221
        %v3257 = vunpack.c.h.b16 %v3221
        %v3258 = vunpack.c.l.b16 %v3222
        %v3259 = vunpack.c.h.b16 %v3222
        %v3260 = vpack.c.b16 %v3246, %v3244
        %v3261 = vpack.c.b16 %v3247, %v3245
        %v3262 = vpack.c.b16 %v3250, %v3248
        %v3263 = vpack.c.b16 %v3251, %v3249
        %v3264 = vpack.c.b16 %v3254, %v3252
        %v3265 = vpack.c.b16 %v3255, %v3253
        %v3266 = vpack.c.b16 %v3258, %v3256
        %v3267 = vpack.c.b16 %v3259, %v3257
        %v3277 = vsel %vm853, %v3213, 0
        %3279 = vmatprep.subr.bf16.mxu0 %v3261
        %3280 = vmatpush1.bf16.msra.mxu0 %v3260
        %3281 = vmatprep.subr.bf16.mxu0 %v3263
        %3282 = vmatpush1.bf16.msra.mxu0 %v3262
        %3283 = vmatprep.subr.bf16.mxu0 %v3265
        %3284 = vmatpush1.bf16.msra.mxu0 %v3264
        %3285 = vmatprep.subr.bf16.mxu0 %v3267
        %3286 = vmatpush1.bf16.msra.mxu0 %v3266
        %3287 = vmatprep.subr.bf16.mxu0 0
        %3288 = vmatpush1.bf16.msra.mxu0 0
        %3289 = vmatprep.subr.bf16.mxu0 0
        %3290 = vmatpush1.bf16.msra.mxu0 0
        %3291 = vmatprep.subr.bf16.mxu0 0
        %3292 = vmatpush1.bf16.msra.mxu0 0
        %3293 = vmatprep.subr.bf16.mxu0 0
        %3294 = vmatpush1.bf16.msra.mxu0 0
        %3295 = vmatprep.subr.bf16.mxu0 0
        %3296 = vmatpush1.bf16.msra.mxu0 0
        %3297 = vmatprep.subr.bf16.mxu0 0
        %3298 = vmatpush1.bf16.msra.mxu0 0
        %3299 = vmatprep.subr.bf16.mxu0 0
        %3300 = vmatpush1.bf16.msra.mxu0 0
        %3301 = vmatprep.subr.bf16.mxu0 0
        %3302 = vmatpush1.bf16.msra.mxu0 0
        %3303 = vmatprep.subr.bf16.mxu0 0
        %3304 = vmatpush1.bf16.msra.mxu0 0
        %3305 = vmatprep.subr.bf16.mxu0 0
        %3306 = vmatpush1.bf16.msra.mxu0 0
        %3307 = vmatprep.subr.bf16.mxu0 0
        %3308 = vmatpush1.bf16.msra.mxu0 0
        %3309 = vmatprep.subr.bf16.mxu0 0
        %3310 = vmatpush1.bf16.msra.mxu0 0
        %3311 = vmatprep.mubr.bf16.mxu0 0
        %3312 = vmatmul.mubr.bf16.gmra.mrb[0].mxu0 %v3277
        %v3313 = vpop.f32.mrb[0].mxu0
        %v3314 = vadd.f32 %v3229, %v3313
        %v3315 = vpop.f32.mrb[0].mxu0
        %v3316 = vadd.f32 %v3233, %v3315
        %v3317 = vpop.f32.mrb[0].mxu0
        %v3318 = vadd.f32 %v3229, %v3317
        %v3319 = vpop.f32.mrb[0].mxu0
        %v3320 = vadd.f32 %v3233, %v3319
        %3321 = vdwg.mxu0
        %3322 = vst [vmem:[#allocation2] sm:$0xff] %v3314
        %3323 = vst [vmem:[#allocation2 + $0x8] sm:$0xff] %v3316
        %3324 = vst [vmem:[#allocation2 + $0x10] sm:$0xff] %v3318
        %3325 = vst [vmem:[#allocation2 + $0x18] sm:$0xff] %v3320
        %s3326 = scalar_lea.vmem %s9, 64
        %v3327 = vld [vmem:[%s3326] sm:$0xff]
        %v3328 = vld [vmem:[%s3326 + $0x8] sm:$0xff]
        %v3329 = vld [vmem:[%s3326 + $0x10] sm:$0xff]
        %v3330 = vld [vmem:[%s3326 + $0x18] sm:$0xff]
        %v3331 = vld [vmem:[%s3326 + $0x20] sm:$0xff]
        %v3332 = vld [vmem:[%s3326 + $0x28] sm:$0xff]
        %v3333 = vld [vmem:[%s3326 + $0x30] sm:$0xff]
        %v3334 = vld [vmem:[%s3326 + $0x38] sm:$0xff]
        %v3335 = vld [vmem:[#allocation2] sm:$0x3]
        %v3336 = vld [vmem:[#allocation2 + $0x8] sm:$0x3]
        %v3345 = vunpack.c.l.b16 %v3327
        %v3346 = vunpack.c.h.b16 %v3327
        %v3347 = vunpack.c.l.b16 %v3328
        %v3348 = vunpack.c.h.b16 %v3328
        %v3349 = vunpack.c.l.b16 %v3329
        %v3350 = vunpack.c.h.b16 %v3329
        %v3351 = vunpack.c.l.b16 %v3330
        %v3352 = vunpack.c.h.b16 %v3330
        %v3353 = vunpack.c.l.b16 %v3331
        %v3354 = vunpack.c.h.b16 %v3331
        %v3355 = vunpack.c.l.b16 %v3332
        %v3356 = vunpack.c.h.b16 %v3332
        %v3357 = vunpack.c.l.b16 %v3333
        %v3358 = vunpack.c.h.b16 %v3333
        %v3359 = vunpack.c.l.b16 %v3334
        %v3360 = vunpack.c.h.b16 %v3334
        %v3361 = vpack.c.b16 %v3347, %v3345
        %v3362 = vpack.c.b16 %v3348, %v3346
        %v3363 = vpack.c.b16 %v3351, %v3349
        %v3364 = vpack.c.b16 %v3352, %v3350
        %v3365 = vpack.c.b16 %v3355, %v3353
        %v3366 = vpack.c.b16 %v3356, %v3354
        %v3367 = vpack.c.b16 %v3359, %v3357
        %v3368 = vpack.c.b16 %v3360, %v3358
        %3377 = vmatprep.subr.bf16.mxu0 %v3362
        %3378 = vmatpush1.bf16.msra.mxu0 %v3361
        %3379 = vmatprep.subr.bf16.mxu0 %v3364
        %3380 = vmatpush1.bf16.msra.mxu0 %v3363
        %3381 = vmatprep.subr.bf16.mxu0 %v3366
        %3382 = vmatpush1.bf16.msra.mxu0 %v3365
        %3383 = vmatprep.subr.bf16.mxu0 %v3368
        %3384 = vmatpush1.bf16.msra.mxu0 %v3367
        %3385 = vmatprep.subr.bf16.mxu0 0
        %3386 = vmatpush1.bf16.msra.mxu0 0
        %3387 = vmatprep.subr.bf16.mxu0 0
        %3388 = vmatpush1.bf16.msra.mxu0 0
        %3389 = vmatprep.subr.bf16.mxu0 0
        %3390 = vmatpush1.bf16.msra.mxu0 0
        %3391 = vmatprep.subr.bf16.mxu0 0
        %3392 = vmatpush1.bf16.msra.mxu0 0
        %3393 = vmatprep.subr.bf16.mxu0 0
        %3394 = vmatpush1.bf16.msra.mxu0 0
        %3395 = vmatprep.subr.bf16.mxu0 0
        %3396 = vmatpush1.bf16.msra.mxu0 0
        %3397 = vmatprep.subr.bf16.mxu0 0
        %3398 = vmatpush1.bf16.msra.mxu0 0
        %3399 = vmatprep.subr.bf16.mxu0 0
        %3400 = vmatpush1.bf16.msra.mxu0 0
        %3401 = vmatprep.subr.bf16.mxu0 0
        %3402 = vmatpush1.bf16.msra.mxu0 0
        %3403 = vmatprep.subr.bf16.mxu0 0
        %3404 = vmatpush1.bf16.msra.mxu0 0
        %3405 = vmatprep.subr.bf16.mxu0 0
        %3406 = vmatpush1.bf16.msra.mxu0 0
        %3407 = vmatprep.subr.bf16.mxu0 0
        %3408 = vmatpush1.bf16.msra.mxu0 0
        %3409 = vmatprep.mubr.bf16.mxu0 0
        %3410 = vmatmul.mubr.bf16.gmra.mrb[0].mxu0 %v2504
        %v3411 = vpop.f32.mrb[0].mxu0
        %v3412 = vadd.f32 0.0, %v3411
        %v3413 = vpop.f32.mrb[0].mxu0
        %v3414 = vadd.f32 0.0, %v3413
        %v3415 = vpop.f32.mrb[0].mxu0
        %v3416 = vpop.f32.mrb[0].mxu0
        %3417 = vdwg.mxu0
        %v3418 = vadd.f32 %v3335, %v3412
        %v3419 = vadd.f32 %v3336, %v3414
        %v3420 = vxor.u32 %v3418, 2147483648
        %v3421 = vxor.u32 %v3419, 2147483648
        %v3422 = vmul.f32 %v3420, 1.442695
        %v3423 = vpow.pop %v3422
        %v3424 = vmul.f32 %v3421, 1.442695
        %v3425 = vpow.pop %v3424
        %v3426 = vadd.f32 %v3423, 1.0
        %v3427 = vadd.f32 %v3425, 1.0
        %v3428 = vrcp.pop %v3426
        %v3429 = vmul.f32 1.0, %v3428
        %v3430 = vrcp.pop %v3427
        %v3431 = vmul.f32 1.0, %v3430
        %v3432 = vtanh.pop %v3419
        %v3433 = vmul.f32 %v3429, 0.0
        %3435 = vrot.lane.b32.xlu0 %v3432, 64
        %v3436 = vpop.permute.xlu0 %3435
        %v3438 = vmul.f32 %v3429, %v3436
        %3440 = vrot.lane.b32.xlu0 %v3438, 64
        %v3441 = vpop.permute.xlu0 %3440
        %v3443 = vadd.f32 %v3433, %v3441
        %v3444 = vtanh.pop %v3443
        %3446 = vrot.lane.b32.xlu0 %v3444, 64
        %v3447 = vpop.permute.xlu0 %3446
        %v3449 = vmul.f32 %v3431, %v3447
        %3450 = vst.msk [vmem:[#allocation4] sm:$0x3] %vm2579, %v3449
        %v3451 = vld [vmem:[#allocation2] sm:$0xc]
        %v3452 = vld [vmem:[#allocation2 + $0x8] sm:$0xc]
        %v3453 = vpack.c.bf16 %v3449, %v3449
        %v3455 = vsel %vm853, %v3453, 0
        %3457 = vmatprep.subr.bf16.mxu0 %v3362
        %3458 = vmatpush1.bf16.msra.mxu0 %v3361
        %3459 = vmatprep.subr.bf16.mxu0 %v3364
        %3460 = vmatpush1.bf16.msra.mxu0 %v3363
        %3461 = vmatprep.subr.bf16.mxu0 %v3366
        %3462 = vmatpush1.bf16.msra.mxu0 %v3365
        %3463 = vmatprep.subr.bf16.mxu0 %v3368
        %3464 = vmatpush1.bf16.msra.mxu0 %v3367
        %3465 = vmatprep.subr.bf16.mxu0 0
        %3466 = vmatpush1.bf16.msra.mxu0 0
        %3467 = vmatprep.subr.bf16.mxu0 0
        %3468 = vmatpush1.bf16.msra.mxu0 0
        %3469 = vmatprep.subr.bf16.mxu0 0
        %3470 = vmatpush1.bf16.msra.mxu0 0
        %3471 = vmatprep.subr.bf16.mxu0 0
        %3472 = vmatpush1.bf16.msra.mxu0 0
        %3473 = vmatprep.subr.bf16.mxu0 0
        %3474 = vmatpush1.bf16.msra.mxu0 0
        %3475 = vmatprep.subr.bf16.mxu0 0
        %3476 = vmatpush1.bf16.msra.mxu0 0
        %3477 = vmatprep.subr.bf16.mxu0 0
        %3478 = vmatpush1.bf16.msra.mxu0 0
        %3479 = vmatprep.subr.bf16.mxu0 0
        %3480 = vmatpush1.bf16.msra.mxu0 0
        %3481 = vmatprep.subr.bf16.mxu0 0
        %3482 = vmatpush1.bf16.msra.mxu0 0
        %3483 = vmatprep.subr.bf16.mxu0 0
        %3484 = vmatpush1.bf16.msra.mxu0 0
        %3485 = vmatprep.subr.bf16.mxu0 0
        %3486 = vmatpush1.bf16.msra.mxu0 0
        %3487 = vmatprep.subr.bf16.mxu0 0
        %3488 = vmatpush1.bf16.msra.mxu0 0
        %3489 = vmatprep.mubr.bf16.mxu0 0
        %3490 = vmatmul.mubr.bf16.gmra.mrb[0].mxu0 %v3455
        %v3491 = vpop.f32.mrb[0].mxu0
        %v3492 = vadd.f32 0.0, %v3491
        %v3493 = vpop.f32.mrb[0].mxu0
        %v3494 = vadd.f32 0.0, %v3493
        %v3495 = vpop.f32.mrb[0].mxu0
        %v3496 = vpop.f32.mrb[0].mxu0
        %3497 = vdwg.mxu0
        %v3500 = vrot.slane %v3492, 6
        %v3501 = vrot.slane %v3494, 6
        %v3504 = vadd.f32 %v3451, %v3500
        %v3505 = vadd.f32 %v3452, %v3501
        %v3506 = vxor.u32 %v3504, 2147483648
        %v3507 = vxor.u32 %v3505, 2147483648
        %v3508 = vmul.f32 %v3506, 1.442695
        %v3509 = vpow.pop %v3508
        %v3510 = vmul.f32 %v3507, 1.442695
        %v3511 = vpow.pop %v3510
        %v3512 = vadd.f32 %v3509, 1.0
        %v3513 = vadd.f32 %v3511, 1.0
        %v3514 = vrcp.pop %v3512
        %v3515 = vmul.f32 1.0, %v3514
        %v3516 = vrcp.pop %v3513
        %v3517 = vmul.f32 1.0, %v3516
        %v3518 = vtanh.pop %v3505
        %v3520 = vrot.slane %v3443, 6
        %v3522 = vmul.f32 %v3515, %v3520
        %3524 = vrot.lane.b32.xlu0 %v3518, 64
        %v3525 = vpop.permute.xlu0 %3524
        %v3527 = vmul.f32 %v3515, %v3525
        %3529 = vrot.lane.b32.xlu0 %v3527, 64
        %v3530 = vpop.permute.xlu0 %3529
        %v3532 = vadd.f32 %v3522, %v3530
        %v3533 = vtanh.pop %v3532
        %3535 = vrot.lane.b32.xlu0 %v3533, 64
        %v3536 = vpop.permute.xlu0 %3535
        %v3538 = vmul.f32 %v3517, %v3536
        %3539 = vst.msk [vmem:[#allocation4] sm:$0xc] %vm2669, %v3538
        %v3540 = vld [vmem:[#allocation2] sm:$0x30]
        %v3541 = vld [vmem:[#allocation2 + $0x8] sm:$0x30]
        %v3542 = vpack.c.bf16 %v3538, %v3538
        %v3544 = vrot.slane %v3542, 1
        %v3546 = vsel %vm853, %v3544, 0
        %3548 = vmatprep.subr.bf16.mxu0 %v3362
        %3549 = vmatpush1.bf16.msra.mxu0 %v3361
        %3550 = vmatprep.subr.bf16.mxu0 %v3364
        %3551 = vmatpush1.bf16.msra.mxu0 %v3363
        %3552 = vmatprep.subr.bf16.mxu0 %v3366
        %3553 = vmatpush1.bf16.msra.mxu0 %v3365
        %3554 = vmatprep.subr.bf16.mxu0 %v3368
        %3555 = vmatpush1.bf16.msra.mxu0 %v3367
        %3556 = vmatprep.subr.bf16.mxu0 0
        %3557 = vmatpush1.bf16.msra.mxu0 0
        %3558 = vmatprep.subr.bf16.mxu0 0
        %3559 = vmatpush1.bf16.msra.mxu0 0
        %3560 = vmatprep.subr.bf16.mxu0 0
        %3561 = vmatpush1.bf16.msra.mxu0 0
        %3562 = vmatprep.subr.bf16.mxu0 0
        %3563 = vmatpush1.bf16.msra.mxu0 0
        %3564 = vmatprep.subr.bf16.mxu0 0
        %3565 = vmatpush1.bf16.msra.mxu0 0
        %3566 = vmatprep.subr.bf16.mxu0 0
        %3567 = vmatpush1.bf16.msra.mxu0 0
        %3568 = vmatprep.subr.bf16.mxu0 0
        %3569 = vmatpush1.bf16.msra.mxu0 0
        %3570 = vmatprep.subr.bf16.mxu0 0
        %3571 = vmatpush1.bf16.msra.mxu0 0
        %3572 = vmatprep.subr.bf16.mxu0 0
        %3573 = vmatpush1.bf16.msra.mxu0 0
        %3574 = vmatprep.subr.bf16.mxu0 0
        %3575 = vmatpush1.bf16.msra.mxu0 0
        %3576 = vmatprep.subr.bf16.mxu0 0
        %3577 = vmatpush1.bf16.msra.mxu0 0
        %3578 = vmatprep.subr.bf16.mxu0 0
        %3579 = vmatpush1.bf16.msra.mxu0 0
        %3580 = vmatprep.mubr.bf16.mxu0 0
        %3581 = vmatmul.mubr.bf16.gmra.mrb[0].mxu0 %v3546
        %v3582 = vpop.f32.mrb[0].mxu0
        %v3583 = vadd.f32 0.0, %v3582
        %v3584 = vpop.f32.mrb[0].mxu0
        %v3585 = vadd.f32 0.0, %v3584
        %v3586 = vpop.f32.mrb[0].mxu0
        %v3587 = vpop.f32.mrb[0].mxu0
        %3588 = vdwg.mxu0
        %v3591 = vrot.slane %v3583, 4
        %v3592 = vrot.slane %v3585, 4
        %v3595 = vadd.f32 %v3540, %v3591
        %v3596 = vadd.f32 %v3541, %v3592
        %v3597 = vxor.u32 %v3595, 2147483648
        %v3598 = vxor.u32 %v3596, 2147483648
        %v3599 = vmul.f32 %v3597, 1.442695
        %v3600 = vpow.pop %v3599
        %v3601 = vmul.f32 %v3598, 1.442695
        %v3602 = vpow.pop %v3601
        %v3603 = vadd.f32 %v3600, 1.0
        %v3604 = vadd.f32 %v3602, 1.0
        %v3605 = vrcp.pop %v3603
        %v3606 = vmul.f32 1.0, %v3605
        %v3607 = vrcp.pop %v3604
        %v3608 = vmul.f32 1.0, %v3607
        %v3609 = vtanh.pop %v3596
        %v3611 = vrot.slane %v3532, 6
        %v3613 = vmul.f32 %v3606, %v3611
        %3615 = vrot.lane.b32.xlu0 %v3609, 64
        %v3616 = vpop.permute.xlu0 %3615
        %v3618 = vmul.f32 %v3606, %v3616
        %3620 = vrot.lane.b32.xlu0 %v3618, 64
        %v3621 = vpop.permute.xlu0 %3620
        %v3623 = vadd.f32 %v3613, %v3621
        %v3624 = vtanh.pop %v3623
        %3626 = vrot.lane.b32.xlu0 %v3624, 64
        %v3627 = vpop.permute.xlu0 %3626
        %v3629 = vmul.f32 %v3608, %v3627
        %3630 = vst.msk [vmem:[#allocation4] sm:$0x30] %vm2761, %v3629
        %v3631 = vld [vmem:[#allocation2] sm:$0xc0]
        %v3632 = vld [vmem:[#allocation2 + $0x8] sm:$0xc0]
        %v3633 = vpack.c.bf16 %v3629, %v3629
        %v3635 = vrot.slane %v3633, 2
        %v3637 = vsel %vm853, %v3635, 0
        %3639 = vmatprep.subr.bf16.mxu0 %v3362
        %3640 = vmatpush1.bf16.msra.mxu0 %v3361
        %3641 = vmatprep.subr.bf16.mxu0 %v3364
        %3642 = vmatpush1.bf16.msra.mxu0 %v3363
        %3643 = vmatprep.subr.bf16.mxu0 %v3366
        %3644 = vmatpush1.bf16.msra.mxu0 %v3365
        %3645 = vmatprep.subr.bf16.mxu0 %v3368
        %3646 = vmatpush1.bf16.msra.mxu0 %v3367
        %3647 = vmatprep.subr.bf16.mxu0 0
        %3648 = vmatpush1.bf16.msra.mxu0 0
        %3649 = vmatprep.subr.bf16.mxu0 0
        %3650 = vmatpush1.bf16.msra.mxu0 0
        %3651 = vmatprep.subr.bf16.mxu0 0
        %3652 = vmatpush1.bf16.msra.mxu0 0
        %3653 = vmatprep.subr.bf16.mxu0 0
        %3654 = vmatpush1.bf16.msra.mxu0 0
        %3655 = vmatprep.subr.bf16.mxu0 0
        %3656 = vmatpush1.bf16.msra.mxu0 0
        %3657 = vmatprep.subr.bf16.mxu0 0
        %3658 = vmatpush1.bf16.msra.mxu0 0
        %3659 = vmatprep.subr.bf16.mxu0 0
        %3660 = vmatpush1.bf16.msra.mxu0 0
        %3661 = vmatprep.subr.bf16.mxu0 0
        %3662 = vmatpush1.bf16.msra.mxu0 0
        %3663 = vmatprep.subr.bf16.mxu0 0
        %3664 = vmatpush1.bf16.msra.mxu0 0
        %3665 = vmatprep.subr.bf16.mxu0 0
        %3666 = vmatpush1.bf16.msra.mxu0 0
        %3667 = vmatprep.subr.bf16.mxu0 0
        %3668 = vmatpush1.bf16.msra.mxu0 0
        %3669 = vmatprep.subr.bf16.mxu0 0
        %3670 = vmatpush1.bf16.msra.mxu0 0
        %3671 = vmatprep.mubr.bf16.mxu0 0
        %3672 = vmatmul.mubr.bf16.gmra.mrb[0].mxu0 %v3637
        %v3673 = vpop.f32.mrb[0].mxu0
        %v3674 = vadd.f32 0.0, %v3673
        %v3675 = vpop.f32.mrb[0].mxu0
        %v3676 = vadd.f32 0.0, %v3675
        %v3677 = vpop.f32.mrb[0].mxu0
        %v3678 = vpop.f32.mrb[0].mxu0
        %3679 = vdwg.mxu0
        %v3682 = vrot.slane %v3674, 2
        %v3683 = vrot.slane %v3676, 2
        %v3686 = vadd.f32 %v3631, %v3682
        %v3687 = vadd.f32 %v3632, %v3683
        %v3688 = vxor.u32 %v3686, 2147483648
        %v3689 = vxor.u32 %v3687, 2147483648
        %v3690 = vmul.f32 %v3688, 1.442695
        %v3691 = vpow.pop %v3690
        %v3692 = vmul.f32 %v3689, 1.442695
        %v3693 = vpow.pop %v3692
        %v3694 = vadd.f32 %v3691, 1.0
        %v3695 = vadd.f32 %v3693, 1.0
        %v3696 = vrcp.pop %v3694
        %v3697 = vmul.f32 1.0, %v3696
        %v3698 = vrcp.pop %v3695
        %v3699 = vmul.f32 1.0, %v3698
        %v3700 = vtanh.pop %v3687
        %v3702 = vrot.slane %v3623, 6
        %v3704 = vmul.f32 %v3697, %v3702
        %3706 = vrot.lane.b32.xlu0 %v3700, 64
        %v3707 = vpop.permute.xlu0 %3706
        %v3709 = vmul.f32 %v3697, %v3707
        %3711 = vrot.lane.b32.xlu0 %v3709, 64
        %v3712 = vpop.permute.xlu0 %3711
        %v3714 = vadd.f32 %v3704, %v3712
        %v3715 = vtanh.pop %v3714
        %3717 = vrot.lane.b32.xlu0 %v3715, 64
        %v3718 = vpop.permute.xlu0 %3717
        %v3720 = vmul.f32 %v3699, %v3718
        %3721 = vst.msk [vmem:[#allocation4] sm:$0xc0] %vm2853, %v3720
        %v3722 = vld [vmem:[#allocation2 + $0x10] sm:$0x3]
        %v3723 = vld [vmem:[#allocation2 + $0x18] sm:$0x3]
        %v3724 = vpack.c.bf16 %v3720, %v3720
        %v3726 = vrot.slane %v3724, 3
        %v3728 = vsel %vm853, %v3726, 0
        %3730 = vmatprep.subr.bf16.mxu0 %v3362
        %3731 = vmatpush1.bf16.msra.mxu0 %v3361
        %3732 = vmatprep.subr.bf16.mxu0 %v3364
        %3733 = vmatpush1.bf16.msra.mxu0 %v3363
        %3734 = vmatprep.subr.bf16.mxu0 %v3366
        %3735 = vmatpush1.bf16.msra.mxu0 %v3365
        %3736 = vmatprep.subr.bf16.mxu0 %v3368
        %3737 = vmatpush1.bf16.msra.mxu0 %v3367
        %3738 = vmatprep.subr.bf16.mxu0 0
        %3739 = vmatpush1.bf16.msra.mxu0 0
        %3740 = vmatprep.subr.bf16.mxu0 0
        %3741 = vmatpush1.bf16.msra.mxu0 0
        %3742 = vmatprep.subr.bf16.mxu0 0
        %3743 = vmatpush1.bf16.msra.mxu0 0
        %3744 = vmatprep.subr.bf16.mxu0 0
        %3745 = vmatpush1.bf16.msra.mxu0 0
        %3746 = vmatprep.subr.bf16.mxu0 0
        %3747 = vmatpush1.bf16.msra.mxu0 0
        %3748 = vmatprep.subr.bf16.mxu0 0
        %3749 = vmatpush1.bf16.msra.mxu0 0
        %3750 = vmatprep.subr.bf16.mxu0 0
        %3751 = vmatpush1.bf16.msra.mxu0 0
        %3752 = vmatprep.subr.bf16.mxu0 0
        %3753 = vmatpush1.bf16.msra.mxu0 0
        %3754 = vmatprep.subr.bf16.mxu0 0
        %3755 = vmatpush1.bf16.msra.mxu0 0
        %3756 = vmatprep.subr.bf16.mxu0 0
        %3757 = vmatpush1.bf16.msra.mxu0 0
        %3758 = vmatprep.subr.bf16.mxu0 0
        %3759 = vmatpush1.bf16.msra.mxu0 0
        %3760 = vmatprep.subr.bf16.mxu0 0
        %3761 = vmatpush1.bf16.msra.mxu0 0
        %3762 = vmatprep.mubr.bf16.mxu0 0
        %3763 = vmatmul.mubr.bf16.gmra.mrb[0].mxu0 %v3728
        %v3764 = vpop.f32.mrb[0].mxu0
        %v3765 = vadd.f32 0.0, %v3764
        %v3766 = vpop.f32.mrb[0].mxu0
        %v3767 = vadd.f32 0.0, %v3766
        %v3768 = vpop.f32.mrb[0].mxu0
        %v3769 = vpop.f32.mrb[0].mxu0
        %3770 = vdwg.mxu0
        %v3771 = vadd.f32 %v3722, %v3765
        %v3772 = vadd.f32 %v3723, %v3767
        %v3773 = vxor.u32 %v3771, 2147483648
        %v3774 = vxor.u32 %v3772, 2147483648
        %v3775 = vmul.f32 %v3773, 1.442695
        %v3776 = vpow.pop %v3775
        %v3777 = vmul.f32 %v3774, 1.442695
        %v3778 = vpow.pop %v3777
        %v3779 = vadd.f32 %v3776, 1.0
        %v3780 = vadd.f32 %v3778, 1.0
        %v3781 = vrcp.pop %v3779
        %v3782 = vmul.f32 1.0, %v3781
        %v3783 = vrcp.pop %v3780
        %v3784 = vmul.f32 1.0, %v3783
        %v3785 = vtanh.pop %v3772
        %v3787 = vrot.slane %v3714, 6
        %v3789 = vmul.f32 %v3782, %v3787
        %3791 = vrot.lane.b32.xlu0 %v3785, 64
        %v3792 = vpop.permute.xlu0 %3791
        %v3794 = vmul.f32 %v3782, %v3792
        %3796 = vrot.lane.b32.xlu0 %v3794, 64
        %v3797 = vpop.permute.xlu0 %3796
        %v3799 = vadd.f32 %v3789, %v3797
        %v3800 = vtanh.pop %v3799
        %3802 = vrot.lane.b32.xlu0 %v3800, 64
        %v3803 = vpop.permute.xlu0 %3802
        %v3805 = vmul.f32 %v3784, %v3803
        %3806 = vst.msk [vmem:[#allocation4 + $0x8] sm:$0x3] %vm2579, %v3805
        %v3807 = vld [vmem:[#allocation2 + $0x10] sm:$0xc]
        %v3808 = vld [vmem:[#allocation2 + $0x18] sm:$0xc]
        %v3809 = vpack.c.bf16 %v3805, %v3805
        %v3811 = vsel %vm853, %v3809, 0
        %3813 = vmatprep.subr.bf16.mxu0 %v3362
        %3814 = vmatpush1.bf16.msra.mxu0 %v3361
        %3815 = vmatprep.subr.bf16.mxu0 %v3364
        %3816 = vmatpush1.bf16.msra.mxu0 %v3363
        %3817 = vmatprep.subr.bf16.mxu0 %v3366
        %3818 = vmatpush1.bf16.msra.mxu0 %v3365
        %3819 = vmatprep.subr.bf16.mxu0 %v3368
        %3820 = vmatpush1.bf16.msra.mxu0 %v3367
        %3821 = vmatprep.subr.bf16.mxu0 0
        %3822 = vmatpush1.bf16.msra.mxu0 0
        %3823 = vmatprep.subr.bf16.mxu0 0
        %3824 = vmatpush1.bf16.msra.mxu0 0
        %3825 = vmatprep.subr.bf16.mxu0 0
        %3826 = vmatpush1.bf16.msra.mxu0 0
        %3827 = vmatprep.subr.bf16.mxu0 0
        %3828 = vmatpush1.bf16.msra.mxu0 0
        %3829 = vmatprep.subr.bf16.mxu0 0
        %3830 = vmatpush1.bf16.msra.mxu0 0
        %3831 = vmatprep.subr.bf16.mxu0 0
        %3832 = vmatpush1.bf16.msra.mxu0 0
        %3833 = vmatprep.subr.bf16.mxu0 0
        %3834 = vmatpush1.bf16.msra.mxu0 0
        %3835 = vmatprep.subr.bf16.mxu0 0
        %3836 = vmatpush1.bf16.msra.mxu0 0
        %3837 = vmatprep.subr.bf16.mxu0 0
        %3838 = vmatpush1.bf16.msra.mxu0 0
        %3839 = vmatprep.subr.bf16.mxu0 0
        %3840 = vmatpush1.bf16.msra.mxu0 0
        %3841 = vmatprep.subr.bf16.mxu0 0
        %3842 = vmatpush1.bf16.msra.mxu0 0
        %3843 = vmatprep.subr.bf16.mxu0 0
        %3844 = vmatpush1.bf16.msra.mxu0 0
        %3845 = vmatprep.mubr.bf16.mxu0 0
        %3846 = vmatmul.mubr.bf16.gmra.mrb[0].mxu0 %v3811
        %v3847 = vpop.f32.mrb[0].mxu0
        %v3848 = vadd.f32 0.0, %v3847
        %v3849 = vpop.f32.mrb[0].mxu0
        %v3850 = vadd.f32 0.0, %v3849
        %v3851 = vpop.f32.mrb[0].mxu0
        %v3852 = vpop.f32.mrb[0].mxu0
        %3853 = vdwg.mxu0
        %v3856 = vrot.slane %v3848, 6
        %v3857 = vrot.slane %v3850, 6
        %v3860 = vadd.f32 %v3807, %v3856
        %v3861 = vadd.f32 %v3808, %v3857
        %v3862 = vxor.u32 %v3860, 2147483648
        %v3863 = vxor.u32 %v3861, 2147483648
        %v3864 = vmul.f32 %v3862, 1.442695
        %v3865 = vpow.pop %v3864
        %v3866 = vmul.f32 %v3863, 1.442695
        %v3867 = vpow.pop %v3866
        %v3868 = vadd.f32 %v3865, 1.0
        %v3869 = vadd.f32 %v3867, 1.0
        %v3870 = vrcp.pop %v3868
        %v3871 = vmul.f32 1.0, %v3870
        %v3872 = vrcp.pop %v3869
        %v3873 = vmul.f32 1.0, %v3872
        %v3874 = vtanh.pop %v3861
        %v3876 = vrot.slane %v3799, 6
        %v3878 = vmul.f32 %v3871, %v3876
        %3880 = vrot.lane.b32.xlu0 %v3874, 64
        %v3881 = vpop.permute.xlu0 %3880
        %v3883 = vmul.f32 %v3871, %v3881
        %3885 = vrot.lane.b32.xlu0 %v3883, 64
        %v3886 = vpop.permute.xlu0 %3885
        %v3888 = vadd.f32 %v3878, %v3886
        %v3889 = vtanh.pop %v3888
        %3891 = vrot.lane.b32.xlu0 %v3889, 64
        %v3892 = vpop.permute.xlu0 %3891
        %v3894 = vmul.f32 %v3873, %v3892
        %3895 = vst.msk [vmem:[#allocation4 + $0x8] sm:$0xc] %vm2669, %v3894
        %v3896 = vld [vmem:[#allocation2 + $0x10] sm:$0x30]
        %v3897 = vld [vmem:[#allocation2 + $0x18] sm:$0x30]
        %v3898 = vpack.c.bf16 %v3894, %v3894
        %v3900 = vrot.slane %v3898, 1
        %v3902 = vsel %vm853, %v3900, 0
        %3904 = vmatprep.subr.bf16.mxu0 %v3362
        %3905 = vmatpush1.bf16.msra.mxu0 %v3361
        %3906 = vmatprep.subr.bf16.mxu0 %v3364
        %3907 = vmatpush1.bf16.msra.mxu0 %v3363
        %3908 = vmatprep.subr.bf16.mxu0 %v3366
        %3909 = vmatpush1.bf16.msra.mxu0 %v3365
        %3910 = vmatprep.subr.bf16.mxu0 %v3368
        %3911 = vmatpush1.bf16.msra.mxu0 %v3367
        %3912 = vmatprep.subr.bf16.mxu0 0
        %3913 = vmatpush1.bf16.msra.mxu0 0
        %3914 = vmatprep.subr.bf16.mxu0 0
        %3915 = vmatpush1.bf16.msra.mxu0 0
        %3916 = vmatprep.subr.bf16.mxu0 0
        %3917 = vmatpush1.bf16.msra.mxu0 0
        %3918 = vmatprep.subr.bf16.mxu0 0
        %3919 = vmatpush1.bf16.msra.mxu0 0
        %3920 = vmatprep.subr.bf16.mxu0 0
        %3921 = vmatpush1.bf16.msra.mxu0 0
        %3922 = vmatprep.subr.bf16.mxu0 0
        %3923 = vmatpush1.bf16.msra.mxu0 0
        %3924 = vmatprep.subr.bf16.mxu0 0
        %3925 = vmatpush1.bf16.msra.mxu0 0
        %3926 = vmatprep.subr.bf16.mxu0 0
        %3927 = vmatpush1.bf16.msra.mxu0 0
        %3928 = vmatprep.subr.bf16.mxu0 0
        %3929 = vmatpush1.bf16.msra.mxu0 0
        %3930 = vmatprep.subr.bf16.mxu0 0
        %3931 = vmatpush1.bf16.msra.mxu0 0
        %3932 = vmatprep.subr.bf16.mxu0 0
        %3933 = vmatpush1.bf16.msra.mxu0 0
        %3934 = vmatprep.subr.bf16.mxu0 0
        %3935 = vmatpush1.bf16.msra.mxu0 0
        %3936 = vmatprep.mubr.bf16.mxu0 0
        %3937 = vmatmul.mubr.bf16.gmra.mrb[0].mxu0 %v3902
        %v3938 = vpop.f32.mrb[0].mxu0
        %v3939 = vadd.f32 0.0, %v3938
        %v3940 = vpop.f32.mrb[0].mxu0
        %v3941 = vadd.f32 0.0, %v3940
        %v3942 = vpop.f32.mrb[0].mxu0
        %v3943 = vpop.f32.mrb[0].mxu0
        %3944 = vdwg.mxu0
        %v3947 = vrot.slane %v3939, 4
        %v3948 = vrot.slane %v3941, 4
        %v3951 = vadd.f32 %v3896, %v3947
        %v3952 = vadd.f32 %v3897, %v3948
        %v3953 = vxor.u32 %v3951, 2147483648
        %v3954 = vxor.u32 %v3952, 2147483648
        %v3955 = vmul.f32 %v3953, 1.442695
        %v3956 = vpow.pop %v3955
        %v3957 = vmul.f32 %v3954, 1.442695
        %v3958 = vpow.pop %v3957
        %v3959 = vadd.f32 %v3956, 1.0
        %v3960 = vadd.f32 %v3958, 1.0
        %v3961 = vrcp.pop %v3959
        %v3962 = vmul.f32 1.0, %v3961
        %v3963 = vrcp.pop %v3960
        %v3964 = vmul.f32 1.0, %v3963
        %v3965 = vtanh.pop %v3952
        %v3967 = vrot.slane %v3888, 6
        %v3969 = vmul.f32 %v3962, %v3967
        %3971 = vrot.lane.b32.xlu0 %v3965, 64
        %v3972 = vpop.permute.xlu0 %3971
        %v3974 = vmul.f32 %v3962, %v3972
        %3976 = vrot.lane.b32.xlu0 %v3974, 64
        %v3977 = vpop.permute.xlu0 %3976
        %v3979 = vadd.f32 %v3969, %v3977
        %v3980 = vtanh.pop %v3979
        %3982 = vrot.lane.b32.xlu0 %v3980, 64
        %v3983 = vpop.permute.xlu0 %3982
        %v3985 = vmul.f32 %v3964, %v3983
        %3986 = vst.msk [vmem:[#allocation4 + $0x8] sm:$0x30] %vm2761, %v3985
        %v3987 = vld [vmem:[#allocation2 + $0x10] sm:$0xc0]
        %v3988 = vld [vmem:[#allocation2 + $0x18] sm:$0xc0]
        %v3989 = vpack.c.bf16 %v3985, %v3985
        %v3991 = vrot.slane %v3989, 2
        %v3993 = vsel %vm853, %v3991, 0
        %3995 = vmatprep.subr.bf16.mxu0 %v3362
        %3996 = vmatpush1.bf16.msra.mxu0 %v3361
        %3997 = vmatprep.subr.bf16.mxu0 %v3364
        %3998 = vmatpush1.bf16.msra.mxu0 %v3363
        %3999 = vmatprep.subr.bf16.mxu0 %v3366
        %4000 = vmatpush1.bf16.msra.mxu0 %v3365
        %4001 = vmatprep.subr.bf16.mxu0 %v3368
        %4002 = vmatpush1.bf16.msra.mxu0 %v3367
        %4003 = vmatprep.subr.bf16.mxu0 0
        %4004 = vmatpush1.bf16.msra.mxu0 0
        %4005 = vmatprep.subr.bf16.mxu0 0
        %4006 = vmatpush1.bf16.msra.mxu0 0
        %4007 = vmatprep.subr.bf16.mxu0 0
        %4008 = vmatpush1.bf16.msra.mxu0 0
        %4009 = vmatprep.subr.bf16.mxu0 0
        %4010 = vmatpush1.bf16.msra.mxu0 0
        %4011 = vmatprep.subr.bf16.mxu0 0
        %4012 = vmatpush1.bf16.msra.mxu0 0
        %4013 = vmatprep.subr.bf16.mxu0 0
        %4014 = vmatpush1.bf16.msra.mxu0 0
        %4015 = vmatprep.subr.bf16.mxu0 0
        %4016 = vmatpush1.bf16.msra.mxu0 0
        %4017 = vmatprep.subr.bf16.mxu0 0
        %4018 = vmatpush1.bf16.msra.mxu0 0
        %4019 = vmatprep.subr.bf16.mxu0 0
        %4020 = vmatpush1.bf16.msra.mxu0 0
        %4021 = vmatprep.subr.bf16.mxu0 0
        %4022 = vmatpush1.bf16.msra.mxu0 0
        %4023 = vmatprep.subr.bf16.mxu0 0
        %4024 = vmatpush1.bf16.msra.mxu0 0
        %4025 = vmatprep.subr.bf16.mxu0 0
        %4026 = vmatpush1.bf16.msra.mxu0 0
        %4027 = vmatprep.mubr.bf16.mxu0 0
        %4028 = vmatmul.mubr.bf16.gmra.mrb[0].mxu0 %v3993
        %v4029 = vpop.f32.mrb[0].mxu0
        %v4030 = vadd.f32 0.0, %v4029
        %v4031 = vpop.f32.mrb[0].mxu0
        %v4032 = vadd.f32 0.0, %v4031
        %v4033 = vpop.f32.mrb[0].mxu0
        %v4034 = vpop.f32.mrb[0].mxu0
        %4035 = vdwg.mxu0
        %v4038 = vrot.slane %v4030, 2
        %v4039 = vrot.slane %v4032, 2
        %v4042 = vadd.f32 %v3987, %v4038
        %v4043 = vadd.f32 %v3988, %v4039
        %v4044 = vxor.u32 %v4042, 2147483648
        %v4045 = vxor.u32 %v4043, 2147483648
        %v4046 = vmul.f32 %v4044, 1.442695
        %v4047 = vpow.pop %v4046
        %v4048 = vmul.f32 %v4045, 1.442695
        %v4049 = vpow.pop %v4048
        %v4050 = vadd.f32 %v4047, 1.0
        %v4051 = vadd.f32 %v4049, 1.0
        %v4052 = vrcp.pop %v4050
        %v4053 = vmul.f32 1.0, %v4052
        %v4054 = vrcp.pop %v4051
        %v4055 = vmul.f32 1.0, %v4054
        %v4056 = vtanh.pop %v4043
        %v4058 = vrot.slane %v3979, 6
        %v4060 = vmul.f32 %v4053, %v4058
        %4062 = vrot.lane.b32.xlu0 %v4056, 64
        %v4063 = vpop.permute.xlu0 %4062
        %v4065 = vmul.f32 %v4053, %v4063
        %4067 = vrot.lane.b32.xlu0 %v4065, 64
        %v4068 = vpop.permute.xlu0 %4067
        %v4070 = vadd.f32 %v4060, %v4068
        %v4071 = vtanh.pop %v4070
        %4073 = vrot.lane.b32.xlu0 %v4071, 64
        %v4074 = vpop.permute.xlu0 %4073
        %v4076 = vmul.f32 %v4055, %v4074
        %4077 = vst.msk [vmem:[#allocation4 + $0x8] sm:$0xc0] %vm2853, %v4076
        %vm4078 = vcmp.lt.s32.totalorder %v2271, 32
        %v4080 = vrot.slane %v3212, 6
        %v4082 = vrot.slane %v3212, 2
        %v4085 = vrot.slane %v3211, 6
        %v4087 = vrot.slane %v3211, 2
        %v4089 = vsel %vm2426, %v4080, %v4082
        %v4090 = vsel %vm2429, %v4089, %v4080
        %v4091 = vsel %vm2432, %v4090, %v4082
        %v4092 = vsel %vm2426, %v4085, %v4087
        %v4093 = vsel %vm2429, %v4092, %v4085
        %v4094 = vsel %vm2432, %v4093, %v4087
        %v4095 = vsel %vm4078, 1, 0
        %vm4096 = vcmp.eq.s32.totalorder %v4095, 1
        %v4097 = vsel %vm4096, %v3211, %v4091
        %v4098 = vsel %vm4096, %v3212, %v4094
        %v4099 = vld [vmem:[#allocation4] sm:$0xff]
        %v4100 = vld [vmem:[#allocation4 + $0x8] sm:$0xff]
        %v4102 = vrot.slane %v4100, 6
        %v4104 = vrot.slane %v4100, 2
        %v4107 = vrot.slane %v4099, 6
        %v4109 = vrot.slane %v4099, 2
        %v4111 = vsel %vm2426, %v4102, %v4104
        %v4112 = vsel %vm2429, %v4111, %v4102
        %v4113 = vsel %vm2432, %v4112, %v4104
        %v4114 = vsel %vm2426, %v4107, %v4109
        %v4115 = vsel %vm2429, %v4114, %v4107
        %v4116 = vsel %vm2432, %v4115, %v4109
        %v4117 = vsel %vm4096, %v4099, %v4113
        %v4118 = vsel %vm4096, %v4100, %v4116
        %s4119 = sld [smem:[#allocation5]]
        %v4120 = vstv %s4119
        %v4121 = vmul.f32 %v4120, %v2264
        %v4122 = vmul.f32 %v4120, %v2267
        %s4123 = sld [smem:[#allocation5 + $0x1]]
        %v4124 = vstv %s4123
        %v4125 = vmul.f32 %v4124, %v4097
        %v4126 = vmul.f32 %v4124, %v4098
        %v4127 = vadd.f32 %v4121, %v4125
        %v4128 = vadd.f32 %v4122, %v4126
        %s4129 = sld [smem:[#allocation5 + $0x2]]
        %v4130 = vstv %s4129
        %v4131 = vmul.f32 %v4130, %v4117
        %v4132 = vmul.f32 %v4130, %v4118
        %v4133 = vadd.f32 %v4127, %v4131
        %v4134 = vadd.f32 %v4128, %v4132
        %v4135 = vsel %vm853, %v4133, 0.0
        %v4136 = vsel %vm853, %v4134, 0.0
        %4137 = vst [vmem:[%s427] sm:$0xff] %v4135
        %4138 = vst [vmem:[%s427 + $0x8] sm:$0xff] %v4136
        %p4139 = scmp.lt.s32.totalorder %s24, 1
        %s4140 = scalar_select %p4139, %s24, 1
        %s4141 = smul.addr %s4140, 2
        %s4142 = smul.addr %s4141, 8
        %s4143 = scalar_lea.vmem %s12, %s4142
        // Predicated region
        $region73: #{elmo_token_embedder_forward.1} parent=67 // pred_check
          %p4144 = pneg %p299
        $region74: #{elmo_token_embedder_forward.1} parent=67 // pred_check_branch
          %4146 = sbr.rel (%p4144) target = $region76
        $region75: #{elmo_token_embedder_forward.1} parent=67 // pred_region
          _
        $region76: #{elmo_token_embedder_forward.1} parent=67 // pred_fallthru
          _
      $region68: #{elmo_token_embedder_forward.1} parent=5 // pred_fallthru
        _
      %p4147 = scmp.le.s32.totalorder 2, %s19
      // Predicated region
      $region77: #{elmo_token_embedder_forward.1} parent=5 // pred_check
        %p4148 = pneg %p4147
      $region78: #{elmo_token_embedder_forward.1} parent=5 // pred_check_branch
        %4150 = sbr.rel (%p4148) target = $region80
      $region79: #{elmo_token_embedder_forward.1} parent=5 // pred_region
        %s4151 = ssub.s32 %s19, 2
        // Predicated region
        $region81: #{elmo_token_embedder_forward.1} parent=79 // pred_check
          %p4152 = pneg %p305
        $region82: #{elmo_token_embedder_forward.1} parent=79 // pred_check_branch
          %4154 = sbr.rel (%p4152) target = $region84
        $region83: #{elmo_token_embedder_forward.1} parent=79 // pred_region
          %p4155 = scmp.lt.s32.totalorder %s25, 1
          %s4156 = scalar_select %p4155, %s25, 1
          %s4157 = smul.addr %s4156, 2
          %s4158 = smul.addr %s4157, 8
          %s4159 = scalar_lea.vmem %s12, %s4158
        $region84: #{elmo_token_embedder_forward.1} parent=79 // pred_fallthru
          _
      $region80: #{elmo_token_embedder_forward.1} parent=5 // pred_fallthru
        _
    $region6: #{elmo_token_embedder_forward.1} parent=1 // loop_footer
      %s23 = sadd.s32 1, %s19
    $region7: #{elmo_token_embedder_forward.1} parent=1 // loop_footer_branch
      %18 = sbr.rel target = $region3
    $region8: #{elmo_token_embedder_forward.1} parent=1 // loop_exit
      _
    %4160 = vsyncpa [#allocation6], 1
    %s4161 = scalar_lea.sflag [#allocation6], 1
    %4162 = vsyncpa %s4161, 1

</llo_original>
